<compile_context>
chip_gen: v6e
topology: v6e:2x2x1
jax: 0.10.0
libtpu: 0.0.40
codegen_flags: <defaults>
</compile_context>

<pallas_src>
import functools

import jax
import jax.numpy as jnp
from jax import lax
from jax.experimental import pallas as pl
from jax.experimental.pallas import tpu as pltpu


# ----------------------------------------------------------------------------
# Kernel
# ----------------------------------------------------------------------------
def _transformer_layer_kernel(
    xq_ref, xkv_ref,
    wq_ref, wk_ref, wv_ref, wo_ref,
    ln1g_ref, ln1b_ref, ln2g_ref, ln2b_ref,
    w1_ref, b1_ref, w2_ref, b2_ref,
    o_ref, *, heads, prenorm,
):
    """One grid point = (batch element, query block).

    xq_ref : (tq, D)  query block of x
    xkv_ref: (T,  D)  full sequence (for K / V)
    wq/wk/wv_ref : (H, D, dh)   head-major projections (scale folded into wq)
    wo_ref       : (H, dh, D)   head-major output projection
    """
    f32 = jnp.float32
    cd = wq_ref.dtype                       # MXU compute dtype (bf16 or f32)
    exact = jnp.dtype(cd) == jnp.dtype(jnp.float32)

    xq = xq_ref[...].astype(f32)            # residual / LayerNorm path in f32
    xkv = xkv_ref[...].astype(f32)
    tq, D = xq.shape

    def layer_norm(v, g_ref, b_ref, eps=1e-5):
        mu = jnp.mean(v, axis=-1, keepdims=True)
        vc = v - mu
        var = jnp.mean(vc * vc, axis=-1, keepdims=True)
        return vc * lax.rsqrt(var + eps) * g_ref[...] + b_ref[...]

    def gelu_tanh(v):
        c = 0.7978845608028654  # sqrt(2/pi)
        return 0.5 * v * (1.0 + jnp.tanh(c * (v + 0.044715 * v * v * v)))

    # --- attention inputs -----------------------------------------------------
    if prenorm:
        a_q = layer_norm(xq, ln1g_ref, ln1b_ref)
        a_kv = layer_norm(xkv, ln1g_ref, ln1b_ref)
    else:
        a_q, a_kv = xq, xkv
    a_q = a_q.astype(cd)
    a_kv = a_kv.astype(cd)

    # --- multi-head self attention (head-batched weights, accumulated W_0) ----
    def head_body(h, acc):
        # Rank-2 MXU matmuls only; weight indexing is on the leading axis.
        q_h = jnp.dot(a_q, wq_ref[h], preferred_element_type=f32)    # (tq, dh)
        k_h = jnp.dot(a_kv, wk_ref[h], preferred_element_type=f32)   # (T,  dh)
        v_h = jnp.dot(a_kv, wv_ref[h], preferred_element_type=f32)   # (T,  dh)

        # scores = q_h @ k_h^T (NT dot_general); scale already folded into wq.
        s = lax.dot_general(q_h.astype(cd), k_h.astype(cd),
                            (((1,), (1,)), ((), ())),
                            preferred_element_type=f32)              # (tq, T)
        s = s - jnp.max(s, axis=-1, keepdims=True)
        p = jnp.exp(s)
        denom = jnp.sum(p, axis=-1, keepdims=True)
        if exact:
            p = p / denom
        else:
            p = p * pl.reciprocal(denom, approx=True)                # EUP slot

        o_h = jnp.dot(p.astype(cd), v_h.astype(cd),
                      preferred_element_type=f32)                    # (tq, dh)
        # Per-head partial output projection, accumulated in f32.
        return acc + jnp.dot(o_h.astype(cd), wo_ref[h],
                             preferred_element_type=f32)             # (tq, D)

    mhsa = lax.fori_loop(0, heads, head_body,
                         jnp.zeros((tq, D), f32), unroll=True)

    # --- residual / norms / MLP ----------------------------------------------
    if prenorm:
        y = mhsa + xq
        ff_in = layer_norm(y, ln2g_ref, ln2b_ref)
    else:
        y = layer_norm(mhsa + xq, ln1g_ref, ln1b_ref)
        ff_in = y

    h1 = jnp.dot(ff_in.astype(cd), w1_ref[...],
                 preferred_element_type=f32) + b1_ref[...]
    h1 = gelu_tanh(h1)
    ff = jnp.dot(h1.astype(cd), w2_ref[...],
                 preferred_element_type=f32) + b2_ref[...]

    out = (ff + y) if prenorm else layer_norm(ff + y, ln2g_ref, ln2b_ref)
    o_ref[...] = out.astype(o_ref.dtype)


# ----------------------------------------------------------------------------
# Wrapper
# ----------------------------------------------------------------------------
def transformer_layer_pallas(x, params, *, heads, prenorm=False,
                             compute_dtype=jnp.bfloat16, q_block=None):
    """Forward pass of TransformerLayer.

    x      : (B, T, D) float32
    params : dict with
        w_qkv : (D, 3*H*dh)  -- nn.Linear(dim, 3*_dim, bias=False), (in, out)
        w_o   : (H*dh, D)    -- nn.Linear(_dim, dim, bias=False),  (in, out)
        ln1_g, ln1_b, ln2_g, ln2_b : (D,)
        w1 : (D, F), b1 : (F,), w2 : (F, D), b2 : (D,)
    compute_dtype : dtype fed to the MXU (accumulation is always f32).
    q_block       : query-block size (defaults to T); must divide T and be a
                    multiple of 8 (or equal T).
    """
    B, T, D = x.shape
    H = heads
    assert D % H == 0
    dh = D // H
    F = params["w1"].shape[1]
    scale = float(dh) ** -0.5

    tq = T if q_block is None else q_block
    assert T % tq == 0
    nq = T // tq

    # Split the fused qkv weight according to the module's rearrange
    # 'b t (d k h) -> k b h t d' (d slowest, then k in {q,k,v}, then h),
    # into head-major (H, D, dh) tensors.
    w_qkv_r = params["w_qkv"].reshape(D, dh, 3, H)            # (in, d, k, h)

    def _take(kk):
        return jnp.transpose(w_qkv_r[:, :, kk, :], (2, 0, 1))  # (H, D, dh)

    w_q = (_take(0) * scale).astype(compute_dtype)  # softmax scale folded in
    w_k = _take(1).astype(compute_dtype)
    w_v = _take(2).astype(compute_dtype)
    # W_0 input features are ordered '(h d)' -> head-major (H, dh, D).
    w_o = params["w_o"].reshape(H, dh, D).astype(compute_dtype)

    ln1g = params["ln1_g"].reshape(1, D).astype(jnp.float32)
    ln1b = params["ln1_b"].reshape(1, D).astype(jnp.float32)
    ln2g = params["ln2_g"].reshape(1, D).astype(jnp.float32)
    ln2b = params["ln2_b"].reshape(1, D).astype(jnp.float32)
    w1 = params["w1"].astype(compute_dtype)
    b1 = params["b1"].reshape(1, F).astype(jnp.float32)
    w2 = params["w2"].astype(compute_dtype)
    b2 = params["b2"].reshape(1, D).astype(jnp.float32)

    kern = functools.partial(_transformer_layer_kernel, heads=H, prenorm=prenorm)

    def const_spec(shape):
        return pl.BlockSpec(shape, lambda b, qi: (0,) * len(shape))

    return pl.pallas_call(
        kern,
        out_shape=jax.ShapeDtypeStruct((B, T, D), x.dtype),
        grid=(B, nq),
        in_specs=[
            pl.BlockSpec((None, tq, D), lambda b, qi: (b, qi, 0)),  # x (Q block)
            pl.BlockSpec((None, T, D), lambda b, qi: (b, 0, 0)),    # x (full, K/V)
            const_spec((H, D, dh)),   # w_q (scale folded)
            const_spec((H, D, dh)),   # w_k
            const_spec((H, D, dh)),   # w_v
            const_spec((H, dh, D)),   # w_o
            const_spec((1, D)),       # ln1 gamma
            const_spec((1, D)),       # ln1 beta
            const_spec((1, D)),       # ln2 gamma
            const_spec((1, D)),       # ln2 beta
            const_spec((D, F)),       # w1
            const_spec((1, F)),       # b1
            const_spec((F, D)),       # w2
            const_spec((1, D)),       # b2
        ],
        out_specs=pl.BlockSpec((None, tq, D), lambda b, qi: (b, qi, 0)),
        compiler_params=pltpu.CompilerParams(
            dimension_semantics=("parallel", "parallel"),
            vmem_limit_bytes=32 * 1024 * 1024,
        ),
    )(x, x, w_q, w_k, w_v, w_o, ln1g, ln1b, ln2g, ln2b, w1, b1, w2, b2)


# ----------------------------------------------------------------------------
# Pure-JAX reference (same math as the PyTorch module, no Pallas)
# ----------------------------------------------------------------------------
def transformer_layer_ref(x, params, *, heads, prenorm=False):
    B, T, D = x.shape
    H = heads
    dh = D // H
    scale = float(dh) ** -0.5

    def layer_norm(v, g, b, eps=1e-5):
        mu = jnp.mean(v, axis=-1, keepdims=True)
        var = jnp.mean((v - mu) ** 2, axis=-1, keepdims=True)
        return (v - mu) * lax.rsqrt(var + eps) * g + b

    def gelu_tanh(v):
        c = 0.7978845608028654
        return 0.5 * v * (1.0 + jnp.tanh(c * (v + 0.044715 * v * v * v)))

    def mhsa(v):
        qkv = v @ params["w_qkv"]                             # (B, T, 3*H*dh)
        qkv = qkv.reshape(B, T, dh, 3, H)                     # '(d k h)' split
        q = jnp.transpose(qkv[:, :, :, 0, :], (0, 3, 1, 2))   # (B, H, T, dh)
        k = jnp.transpose(qkv[:, :, :, 1, :], (0, 3, 1, 2))
        vv = jnp.transpose(qkv[:, :, :, 2, :], (0, 3, 1, 2))
        s = jnp.einsum("bhid,bhjd->bhij", q, k) * scale
        a = jax.nn.softmax(s, axis=-1)
        o = jnp.einsum("bhij,bhjd->bhid", a, vv)
        o = jnp.transpose(o, (0, 2, 1, 3)).reshape(B, T, H * dh)  # 'b t (h d)'
        return o @ params["w_o"]

    def ffn(v):
        h = gelu_tanh(v @ params["w1"] + params["b1"])
        return h @ params["w2"] + params["b2"]

    if prenorm:
        y = mhsa(layer_norm(x, params["ln1_g"], params["ln1_b"])) + x
        out = ffn(layer_norm(y, params["ln2_g"], params["ln2_b"])) + y
    else:
        y = layer_norm(mhsa(x) + x, params["ln1_g"], params["ln1_b"])
        out = layer_norm(ffn(y) + y, params["ln2_g"], params["ln2_b"])
    return out


# ----------------------------------------------------------------------------
if __name__ == "__main__":
    # Small shapes consistent with the module:
    #   batch=2, seq=16, dim=32, heads=8 (-> dim_head=4), dim_linear_block=64
    # q_block=8 exercises the query-block tiling path (grid = (2, 2)).
    B, T, D = 2, 16, 32
    heads = 8
    F = 64
    dh = D // heads
    Hd = heads * dh

    key = jax.random.PRNGKey(0)
    ks = jax.random.split(key, 11)

    params = dict(
        w_qkv=jax.random.normal(ks[0], (D, 3 * Hd), jnp.float32) * 0.05,
        w_o=jax.random.normal(ks[1], (Hd, D), jnp.float32) * 0.05,
        ln1_g=1.0 + 0.1 * jax.random.normal(ks[2], (D,), jnp.float32),
        ln1_b=0.1 * jax.random.normal(ks[3], (D,), jnp.float32),
        ln2_g=1.0 + 0.1 * jax.random.normal(ks[4], (D,), jnp.float32),
        ln2_b=0.1 * jax.random.normal(ks[5], (D,), jnp.float32),
        w1=jax.random.normal(ks[6], (D, F), jnp.float32) * 0.05,
        b1=0.1 * jax.random.normal(ks[7], (F,), jnp.float32),
        w2=jax.random.normal(ks[8], (F, D), jnp.float32) * 0.05,
        b2=0.1 * jax.random.normal(ks[9], (D,), jnp.float32),
    )
    x = jax.random.normal(ks[10], (B, T, D), jnp.float32)

    for prenorm in (False, True):  # module default is prenorm=False
        ref = transformer_layer_ref(x, params, heads=heads, prenorm=prenorm)

        # Exact-semantics check: f32 MXU operands, tight tolerance.
        out_f32 = transformer_layer_pallas(
            x, params, heads=heads, prenorm=prenorm,
            compute_dtype=jnp.float32, q_block=8)
        out_f32 = jax.block_until_ready(out_f32)
        assert out_f32.shape == (B, T, D)
        assert jnp.allclose(out_f32, ref, atol=1e-4, rtol=1e-4), (
            f"f32 kernel mismatch vs reference (prenorm={prenorm})"
        )

        # Performance configuration: bf16 MXU operands, f32 accumulation.
        out_bf16 = transformer_layer_pallas(
            x, params, heads=heads, prenorm=prenorm,
            compute_dtype=jnp.bfloat16, q_block=8)
        out_bf16 = jax.block_until_ready(out_bf16)
        assert out_bf16.shape == (B, T, D)
        assert jnp.allclose(out_bf16, ref, atol=1e-1, rtol=1e-1), (
            f"bf16 kernel mismatch vs reference (prenorm={prenorm})"
        )

    print("KERNEL_OK")
</pallas_src>

<mosaic_0001>
module attributes {stable_mosaic.version = 11 : i64} {
  func.func @_transformer_layer_kernel(%arg0: i32, %arg1: i32, %arg2: memref<1x8x32xf32, #tpu.memory_space<vmem>>, %arg3: memref<1x16x32xf32, #tpu.memory_space<vmem>>, %arg4: memref<8x32x4xf32, #tpu.memory_space<vmem>>, %arg5: memref<8x32x4xf32, #tpu.memory_space<vmem>>, %arg6: memref<8x32x4xf32, #tpu.memory_space<vmem>>, %arg7: memref<8x4x32xf32, #tpu.memory_space<vmem>>, %arg8: memref<1x32xf32, #tpu.memory_space<vmem>>, %arg9: memref<1x32xf32, #tpu.memory_space<vmem>>, %arg10: memref<1x32xf32, #tpu.memory_space<vmem>>, %arg11: memref<1x32xf32, #tpu.memory_space<vmem>>, %arg12: memref<32x64xf32, #tpu.memory_space<vmem>>, %arg13: memref<1x64xf32, #tpu.memory_space<vmem>>, %arg14: memref<64x32xf32, #tpu.memory_space<vmem>>, %arg15: memref<1x32xf32, #tpu.memory_space<vmem>>, %arg16: memref<1x8x32xf32, #tpu.memory_space<vmem>>) attributes {dimension_semantics = [#tpu.dimension_semantics<parallel>, #tpu.dimension_semantics<parallel>], iteration_bounds = array<i64: 2, 2>, scalar_prefetch = 0 : i64, scratch_operands = 0 : i64, tpu.core_type = #tpu.core_type<tc>, window_params = [{transform_indices = @transform_0, window_bounds = array<i64: 1, 8, 32>}, {transform_indices = @transform_1, window_bounds = array<i64: 1, 16, 32>}, {pipeline_mode = #tpu.pipeline_mode<synchronous>, transform_indices = @transform_2, window_bounds = array<i64: 8, 32, 4>}, {pipeline_mode = #tpu.pipeline_mode<synchronous>, transform_indices = @transform_3, window_bounds = array<i64: 8, 32, 4>}, {pipeline_mode = #tpu.pipeline_mode<synchronous>, transform_indices = @transform_4, window_bounds = array<i64: 8, 32, 4>}, {pipeline_mode = #tpu.pipeline_mode<synchronous>, transform_indices = @transform_5, window_bounds = array<i64: 8, 4, 32>}, {pipeline_mode = #tpu.pipeline_mode<synchronous>, transform_indices = @transform_6, window_bounds = array<i64: 1, 32>}, {pipeline_mode = #tpu.pipeline_mode<synchronous>, transform_indices = @transform_7, window_bounds = array<i64: 1, 32>}, {pipeline_mode = #tpu.pipeline_mode<synchronous>, transform_indices = @transform_8, window_bounds = array<i64: 1, 32>}, {pipeline_mode = #tpu.pipeline_mode<synchronous>, transform_indices = @transform_9, window_bounds = array<i64: 1, 32>}, {pipeline_mode = #tpu.pipeline_mode<synchronous>, transform_indices = @transform_10, window_bounds = array<i64: 32, 64>}, {pipeline_mode = #tpu.pipeline_mode<synchronous>, transform_indices = @transform_11, window_bounds = array<i64: 1, 64>}, {pipeline_mode = #tpu.pipeline_mode<synchronous>, transform_indices = @transform_12, window_bounds = array<i64: 64, 32>}, {pipeline_mode = #tpu.pipeline_mode<synchronous>, transform_indices = @transform_13, window_bounds = array<i64: 1, 32>}, {transform_indices = @transform_14, window_bounds = array<i64: 1, 8, 32>}]} {
    %c0 = arith.constant 0 : index
    %c0_0 = arith.constant 0 : index
    %c0_1 = arith.constant 0 : index
    %0 = vector.load %arg2[%c0, %c0_0, %c0_1] : memref<1x8x32xf32, #tpu.memory_space<vmem>>, vector<1x8x32xf32>
    %1 = vector.shape_cast %0 : vector<1x8x32xf32> to vector<8x32xf32>
    %c0_2 = arith.constant 0 : index
    %c0_3 = arith.constant 0 : index
    %c0_4 = arith.constant 0 : index
    %2 = vector.load %arg3[%c0_2, %c0_3, %c0_4] : memref<1x16x32xf32, #tpu.memory_space<vmem>>, vector<1x16x32xf32>
    %3 = vector.shape_cast %2 : vector<1x16x32xf32> to vector<16x32xf32>
    %cst = arith.constant 0.000000e+00 : f32
    %4 = vector.broadcast %cst : f32 to vector<8x32xf32>
    %c0_i32 = arith.constant 0 : i32
    %5 = arith.index_cast %c0_i32 : i32 to index
    %c0_5 = arith.constant 0 : index
    %c0_6 = arith.constant 0 : index
    %6 = vector.load %arg4[%5, %c0_5, %c0_6] : memref<8x32x4xf32, #tpu.memory_space<vmem>>, vector<1x32x4xf32>
    %7 = vector.shape_cast %6 : vector<1x32x4xf32> to vector<32x4xf32>
    %cst_7 = arith.constant dense<0.000000e+00> : vector<8x4xf32>
    %8 = tpu.matmul %1, %7, %cst_7 {dimension_numbers = #tpu.dot_dimension_numbers<[1], [0], [0], [1], [0, 0, 1, 1], [], []>} : vector<8x32xf32>, vector<32x4xf32>, vector<8x4xf32> -> vector<8x4xf32>
    %9 = arith.index_cast %c0_i32 : i32 to index
    %c0_8 = arith.constant 0 : index
    %c0_9 = arith.constant 0 : index
    %10 = vector.load %arg5[%9, %c0_8, %c0_9] : memref<8x32x4xf32, #tpu.memory_space<vmem>>, vector<1x32x4xf32>
    %11 = vector.shape_cast %10 : vector<1x32x4xf32> to vector<32x4xf32>
    %cst_10 = arith.constant dense<0.000000e+00> : vector<16x4xf32>
    %12 = tpu.matmul %3, %11, %cst_10 {dimension_numbers = #tpu.dot_dimension_numbers<[1], [0], [0], [1], [0, 0, 1, 1], [], []>} : vector<16x32xf32>, vector<32x4xf32>, vector<16x4xf32> -> vector<16x4xf32>
    %13 = arith.index_cast %c0_i32 : i32 to index
    %c0_11 = arith.constant 0 : index
    %c0_12 = arith.constant 0 : index
    %14 = vector.load %arg6[%13, %c0_11, %c0_12] : memref<8x32x4xf32, #tpu.memory_space<vmem>>, vector<1x32x4xf32>
    %15 = vector.shape_cast %14 : vector<1x32x4xf32> to vector<32x4xf32>
    %cst_13 = arith.constant dense<0.000000e+00> : vector<16x4xf32>
    %16 = tpu.matmul %3, %15, %cst_13 {dimension_numbers = #tpu.dot_dimension_numbers<[1], [0], [0], [1], [0, 0, 1, 1], [], []>} : vector<16x32xf32>, vector<32x4xf32>, vector<16x4xf32> -> vector<16x4xf32>
    %cst_14 = arith.constant dense<0.000000e+00> : vector<8x16xf32>
    %17 = tpu.matmul %8, %12, %cst_14 {dimension_numbers = #tpu.dot_dimension_numbers<[1], [1], [0], [0], [0, 0, 1, 0], [], []>} : vector<8x4xf32>, vector<16x4xf32>, vector<8x16xf32> -> vector<8x16xf32>
    %cst_15 = arith.constant dense<0xFF800000> : vector<8xf32>
    %18 = vector.multi_reduction <maximumf>, %17, %cst_15 [1] : vector<8x16xf32> to vector<8xf32>
    %19 = vector.shape_cast %18 : vector<8xf32> to vector<8x1xf32>
    %20 = vector.broadcast %19 : vector<8x1xf32> to vector<8x16xf32>
    %21 = arith.subf %17, %20 : vector<8x16xf32>
    %22 = math.exp %21 : vector<8x16xf32>
    %cst_16 = arith.constant dense<0.000000e+00> : vector<8xf32>
    %23 = vector.multi_reduction <add>, %22, %cst_16 [1] : vector<8x16xf32> to vector<8xf32>
    %24 = vector.shape_cast %23 : vector<8xf32> to vector<8x1xf32>
    %25 = vector.broadcast %24 : vector<8x1xf32> to vector<8x16xf32>
    %26 = arith.divf %22, %25 : vector<8x16xf32>
    %cst_17 = arith.constant dense<0.000000e+00> : vector<8x4xf32>
    %27 = tpu.matmul %26, %16, %cst_17 {dimension_numbers = #tpu.dot_dimension_numbers<[1], [0], [0], [1], [0, 0, 1, 1], [], []>} : vector<8x16xf32>, vector<16x4xf32>, vector<8x4xf32> -> vector<8x4xf32>
    %28 = arith.index_cast %c0_i32 : i32 to index
    %c0_18 = arith.constant 0 : index
    %c0_19 = arith.constant 0 : index
    %29 = vector.load %arg7[%28, %c0_18, %c0_19] : memref<8x4x32xf32, #tpu.memory_space<vmem>>, vector<1x4x32xf32>
    %30 = vector.shape_cast %29 : vector<1x4x32xf32> to vector<4x32xf32>
    %cst_20 = arith.constant dense<0.000000e+00> : vector<8x32xf32>
    %31 = tpu.matmul %27, %30, %cst_20 {dimension_numbers = #tpu.dot_dimension_numbers<[1], [0], [0], [1], [0, 0, 1, 1], [], []>} : vector<8x4xf32>, vector<4x32xf32>, vector<8x32xf32> -> vector<8x32xf32>
    %32 = arith.addf %4, %31 : vector<8x32xf32>
    %c1_i32 = arith.constant 1 : i32
    %33 = arith.index_cast %c1_i32 : i32 to index
    %c0_21 = arith.constant 0 : index
    %c0_22 = arith.constant 0 : index
    %34 = vector.load %arg4[%33, %c0_21, %c0_22] : memref<8x32x4xf32, #tpu.memory_space<vmem>>, vector<1x32x4xf32>
    %35 = vector.shape_cast %34 : vector<1x32x4xf32> to vector<32x4xf32>
    %cst_23 = arith.constant dense<0.000000e+00> : vector<8x4xf32>
    %36 = tpu.matmul %1, %35, %cst_23 {dimension_numbers = #tpu.dot_dimension_numbers<[1], [0], [0], [1], [0, 0, 1, 1], [], []>} : vector<8x32xf32>, vector<32x4xf32>, vector<8x4xf32> -> vector<8x4xf32>
    %37 = arith.index_cast %c1_i32 : i32 to index
    %c0_24 = arith.constant 0 : index
    %c0_25 = arith.constant 0 : index
    %38 = vector.load %arg5[%37, %c0_24, %c0_25] : memref<8x32x4xf32, #tpu.memory_space<vmem>>, vector<1x32x4xf32>
    %39 = vector.shape_cast %38 : vector<1x32x4xf32> to vector<32x4xf32>
    %cst_26 = arith.constant dense<0.000000e+00> : vector<16x4xf32>
    %40 = tpu.matmul %3, %39, %cst_26 {dimension_numbers = #tpu.dot_dimension_numbers<[1], [0], [0], [1], [0, 0, 1, 1], [], []>} : vector<16x32xf32>, vector<32x4xf32>, vector<16x4xf32> -> vector<16x4xf32>
    %41 = arith.index_cast %c1_i32 : i32 to index
    %c0_27 = arith.constant 0 : index
    %c0_28 = arith.constant 0 : index
    %42 = vector.load %arg6[%41, %c0_27, %c0_28] : memref<8x32x4xf32, #tpu.memory_space<vmem>>, vector<1x32x4xf32>
    %43 = vector.shape_cast %42 : vector<1x32x4xf32> to vector<32x4xf32>
    %cst_29 = arith.constant dense<0.000000e+00> : vector<16x4xf32>
    %44 = tpu.matmul %3, %43, %cst_29 {dimension_numbers = #tpu.dot_dimension_numbers<[1], [0], [0], [1], [0, 0, 1, 1], [], []>} : vector<16x32xf32>, vector<32x4xf32>, vector<16x4xf32> -> vector<16x4xf32>
    %cst_30 = arith.constant dense<0.000000e+00> : vector<8x16xf32>
    %45 = tpu.matmul %36, %40, %cst_30 {dimension_numbers = #tpu.dot_dimension_numbers<[1], [1], [0], [0], [0, 0, 1, 0], [], []>} : vector<8x4xf32>, vector<16x4xf32>, vector<8x16xf32> -> vector<8x16xf32>
    %cst_31 = arith.constant dense<0xFF800000> : vector<8xf32>
    %46 = vector.multi_reduction <maximumf>, %45, %cst_31 [1] : vector<8x16xf32> to vector<8xf32>
    %47 = vector.shape_cast %46 : vector<8xf32> to vector<8x1xf32>
    %48 = vector.broadcast %47 : vector<8x1xf32> to vector<8x16xf32>
    %49 = arith.subf %45, %48 : vector<8x16xf32>
    %50 = math.exp %49 : vector<8x16xf32>
    %cst_32 = arith.constant dense<0.000000e+00> : vector<8xf32>
    %51 = vector.multi_reduction <add>, %50, %cst_32 [1] : vector<8x16xf32> to vector<8xf32>
    %52 = vector.shape_cast %51 : vector<8xf32> to vector<8x1xf32>
    %53 = vector.broadcast %52 : vector<8x1xf32> to vector<8x16xf32>
    %54 = arith.divf %50, %53 : vector<8x16xf32>
    %cst_33 = arith.constant dense<0.000000e+00> : vector<8x4xf32>
    %55 = tpu.matmul %54, %44, %cst_33 {dimension_numbers = #tpu.dot_dimension_numbers<[1], [0], [0], [1], [0, 0, 1, 1], [], []>} : vector<8x16xf32>, vector<16x4xf32>, vector<8x4xf32> -> vector<8x4xf32>
    %56 = arith.index_cast %c1_i32 : i32 to index
    %c0_34 = arith.constant 0 : index
    %c0_35 = arith.constant 0 : index
    %57 = vector.load %arg7[%56, %c0_34, %c0_35] : memref<8x4x32xf32, #tpu.memory_space<vmem>>, vector<1x4x32xf32>
    %58 = vector.shape_cast %57 : vector<1x4x32xf32> to vector<4x32xf32>
    %cst_36 = arith.constant dense<0.000000e+00> : vector<8x32xf32>
    %59 = tpu.matmul %55, %58, %cst_36 {dimension_numbers = #tpu.dot_dimension_numbers<[1], [0], [0], [1], [0, 0, 1, 1], [], []>} : vector<8x4xf32>, vector<4x32xf32>, vector<8x32xf32> -> vector<8x32xf32>
    %60 = arith.addf %32, %59 : vector<8x32xf32>
    %c2_i32 = arith.constant 2 : i32
    %61 = arith.index_cast %c2_i32 : i32 to index
    %c0_37 = arith.constant 0 : index
    %c0_38 = arith.constant 0 : index
    %62 = vector.load %arg4[%61, %c0_37, %c0_38] : memref<8x32x4xf32, #tpu.memory_space<vmem>>, vector<1x32x4xf32>
    %63 = vector.shape_cast %62 : vector<1x32x4xf32> to vector<32x4xf32>
    %cst_39 = arith.constant dense<0.000000e+00> : vector<8x4xf32>
    %64 = tpu.matmul %1, %63, %cst_39 {dimension_numbers = #tpu.dot_dimension_numbers<[1], [0], [0], [1], [0, 0, 1, 1], [], []>} : vector<8x32xf32>, vector<32x4xf32>, vector<8x4xf32> -> vector<8x4xf32>
    %65 = arith.index_cast %c2_i32 : i32 to index
    %c0_40 = arith.constant 0 : index
    %c0_41 = arith.constant 0 : index
    %66 = vector.load %arg5[%65, %c0_40, %c0_41] : memref<8x32x4xf32, #tpu.memory_space<vmem>>, vector<1x32x4xf32>
    %67 = vector.shape_cast %66 : vector<1x32x4xf32> to vector<32x4xf32>
    %cst_42 = arith.constant dense<0.000000e+00> : vector<16x4xf32>
    %68 = tpu.matmul %3, %67, %cst_42 {dimension_numbers = #tpu.dot_dimension_numbers<[1], [0], [0], [1], [0, 0, 1, 1], [], []>} : vector<16x32xf32>, vector<32x4xf32>, vector<16x4xf32> -> vector<16x4xf32>
    %69 = arith.index_cast %c2_i32 : i32 to index
    %c0_43 = arith.constant 0 : index
    %c0_44 = arith.constant 0 : index
    %70 = vector.load %arg6[%69, %c0_43, %c0_44] : memref<8x32x4xf32, #tpu.memory_space<vmem>>, vector<1x32x4xf32>
    %71 = vector.shape_cast %70 : vector<1x32x4xf32> to vector<32x4xf32>
    %cst_45 = arith.constant dense<0.000000e+00> : vector<16x4xf32>
    %72 = tpu.matmul %3, %71, %cst_45 {dimension_numbers = #tpu.dot_dimension_numbers<[1], [0], [0], [1], [0, 0, 1, 1], [], []>} : vector<16x32xf32>, vector<32x4xf32>, vector<16x4xf32> -> vector<16x4xf32>
    %cst_46 = arith.constant dense<0.000000e+00> : vector<8x16xf32>
    %73 = tpu.matmul %64, %68, %cst_46 {dimension_numbers = #tpu.dot_dimension_numbers<[1], [1], [0], [0], [0, 0, 1, 0], [], []>} : vector<8x4xf32>, vector<16x4xf32>, vector<8x16xf32> -> vector<8x16xf32>
    %cst_47 = arith.constant dense<0xFF800000> : vector<8xf32>
    %74 = vector.multi_reduction <maximumf>, %73, %cst_47 [1] : vector<8x16xf32> to vector<8xf32>
    %75 = vector.shape_cast %74 : vector<8xf32> to vector<8x1xf32>
    %76 = vector.broadcast %75 : vector<8x1xf32> to vector<8x16xf32>
    %77 = arith.subf %73, %76 : vector<8x16xf32>
    %78 = math.exp %77 : vector<8x16xf32>
    %cst_48 = arith.constant dense<0.000000e+00> : vector<8xf32>
    %79 = vector.multi_reduction <add>, %78, %cst_48 [1] : vector<8x16xf32> to vector<8xf32>
    %80 = vector.shape_cast %79 : vector<8xf32> to vector<8x1xf32>
    %81 = vector.broadcast %80 : vector<8x1xf32> to vector<8x16xf32>
    %82 = arith.divf %78, %81 : vector<8x16xf32>
    %cst_49 = arith.constant dense<0.000000e+00> : vector<8x4xf32>
    %83 = tpu.matmul %82, %72, %cst_49 {dimension_numbers = #tpu.dot_dimension_numbers<[1], [0], [0], [1], [0, 0, 1, 1], [], []>} : vector<8x16xf32>, vector<16x4xf32>, vector<8x4xf32> -> vector<8x4xf32>
    %84 = arith.index_cast %c2_i32 : i32 to index
    %c0_50 = arith.constant 0 : index
    %c0_51 = arith.constant 0 : index
    %85 = vector.load %arg7[%84, %c0_50, %c0_51] : memref<8x4x32xf32, #tpu.memory_space<vmem>>, vector<1x4x32xf32>
    %86 = vector.shape_cast %85 : vector<1x4x32xf32> to vector<4x32xf32>
    %cst_52 = arith.constant dense<0.000000e+00> : vector<8x32xf32>
    %87 = tpu.matmul %83, %86, %cst_52 {dimension_numbers = #tpu.dot_dimension_numbers<[1], [0], [0], [1], [0, 0, 1, 1], [], []>} : vector<8x4xf32>, vector<4x32xf32>, vector<8x32xf32> -> vector<8x32xf32>
    %88 = arith.addf %60, %87 : vector<8x32xf32>
    %c3_i32 = arith.constant 3 : i32
    %89 = arith.index_cast %c3_i32 : i32 to index
    %c0_53 = arith.constant 0 : index
    %c0_54 = arith.constant 0 : index
    %90 = vector.load %arg4[%89, %c0_53, %c0_54] : memref<8x32x4xf32, #tpu.memory_space<vmem>>, vector<1x32x4xf32>
    %91 = vector.shape_cast %90 : vector<1x32x4xf32> to vector<32x4xf32>
    %cst_55 = arith.constant dense<0.000000e+00> : vector<8x4xf32>
    %92 = tpu.matmul %1, %91, %cst_55 {dimension_numbers = #tpu.dot_dimension_numbers<[1], [0], [0], [1], [0, 0, 1, 1], [], []>} : vector<8x32xf32>, vector<32x4xf32>, vector<8x4xf32> -> vector<8x4xf32>
    %93 = arith.index_cast %c3_i32 : i32 to index
    %c0_56 = arith.constant 0 : index
    %c0_57 = arith.constant 0 : index
    %94 = vector.load %arg5[%93, %c0_56, %c0_57] : memref<8x32x4xf32, #tpu.memory_space<vmem>>, vector<1x32x4xf32>
    %95 = vector.shape_cast %94 : vector<1x32x4xf32> to vector<32x4xf32>
    %cst_58 = arith.constant dense<0.000000e+00> : vector<16x4xf32>
    %96 = tpu.matmul %3, %95, %cst_58 {dimension_numbers = #tpu.dot_dimension_numbers<[1], [0], [0], [1], [0, 0, 1, 1], [], []>} : vector<16x32xf32>, vector<32x4xf32>, vector<16x4xf32> -> vector<16x4xf32>
    %97 = arith.index_cast %c3_i32 : i32 to index
    %c0_59 = arith.constant 0 : index
    %c0_60 = arith.constant 0 : index
    %98 = vector.load %arg6[%97, %c0_59, %c0_60] : memref<8x32x4xf32, #tpu.memory_space<vmem>>, vector<1x32x4xf32>
    %99 = vector.shape_cast %98 : vector<1x32x4xf32> to vector<32x4xf32>
    %cst_61 = arith.constant dense<0.000000e+00> : vector<16x4xf32>
    %100 = tpu.matmul %3, %99, %cst_61 {dimension_numbers = #tpu.dot_dimension_numbers<[1], [0], [0], [1], [0, 0, 1, 1], [], []>} : vector<16x32xf32>, vector<32x4xf32>, vector<16x4xf32> -> vector<16x4xf32>
    %cst_62 = arith.constant dense<0.000000e+00> : vector<8x16xf32>
    %101 = tpu.matmul %92, %96, %cst_62 {dimension_numbers = #tpu.dot_dimension_numbers<[1], [1], [0], [0], [0, 0, 1, 0], [], []>} : vector<8x4xf32>, vector<16x4xf32>, vector<8x16xf32> -> vector<8x16xf32>
    %cst_63 = arith.constant dense<0xFF800000> : vector<8xf32>
    %102 = vector.multi_reduction <maximumf>, %101, %cst_63 [1] : vector<8x16xf32> to vector<8xf32>
    %103 = vector.shape_cast %102 : vector<8xf32> to vector<8x1xf32>
    %104 = vector.broadcast %103 : vector<8x1xf32> to vector<8x16xf32>
    %105 = arith.subf %101, %104 : vector<8x16xf32>
    %106 = math.exp %105 : vector<8x16xf32>
    %cst_64 = arith.constant dense<0.000000e+00> : vector<8xf32>
    %107 = vector.multi_reduction <add>, %106, %cst_64 [1] : vector<8x16xf32> to vector<8xf32>
    %108 = vector.shape_cast %107 : vector<8xf32> to vector<8x1xf32>
    %109 = vector.broadcast %108 : vector<8x1xf32> to vector<8x16xf32>
    %110 = arith.divf %106, %109 : vector<8x16xf32>
    %cst_65 = arith.constant dense<0.000000e+00> : vector<8x4xf32>
    %111 = tpu.matmul %110, %100, %cst_65 {dimension_numbers = #tpu.dot_dimension_numbers<[1], [0], [0], [1], [0, 0, 1, 1], [], []>} : vector<8x16xf32>, vector<16x4xf32>, vector<8x4xf32> -> vector<8x4xf32>
    %112 = arith.index_cast %c3_i32 : i32 to index
    %c0_66 = arith.constant 0 : index
    %c0_67 = arith.constant 0 : index
    %113 = vector.load %arg7[%112, %c0_66, %c0_67] : memref<8x4x32xf32, #tpu.memory_space<vmem>>, vector<1x4x32xf32>
    %114 = vector.shape_cast %113 : vector<1x4x32xf32> to vector<4x32xf32>
    %cst_68 = arith.constant dense<0.000000e+00> : vector<8x32xf32>
    %115 = tpu.matmul %111, %114, %cst_68 {dimension_numbers = #tpu.dot_dimension_numbers<[1], [0], [0], [1], [0, 0, 1, 1], [], []>} : vector<8x4xf32>, vector<4x32xf32>, vector<8x32xf32> -> vector<8x32xf32>
    %116 = arith.addf %88, %115 : vector<8x32xf32>
    %c4_i32 = arith.constant 4 : i32
    %117 = arith.index_cast %c4_i32 : i32 to index
    %c0_69 = arith.constant 0 : index
    %c0_70 = arith.constant 0 : index
    %118 = vector.load %arg4[%117, %c0_69, %c0_70] : memref<8x32x4xf32, #tpu.memory_space<vmem>>, vector<1x32x4xf32>
    %119 = vector.shape_cast %118 : vector<1x32x4xf32> to vector<32x4xf32>
    %cst_71 = arith.constant dense<0.000000e+00> : vector<8x4xf32>
    %120 = tpu.matmul %1, %119, %cst_71 {dimension_numbers = #tpu.dot_dimension_numbers<[1], [0], [0], [1], [0, 0, 1, 1], [], []>} : vector<8x32xf32>, vector<32x4xf32>, vector<8x4xf32> -> vector<8x4xf32>
    %121 = arith.index_cast %c4_i32 : i32 to index
    %c0_72 = arith.constant 0 : index
    %c0_73 = arith.constant 0 : index
    %122 = vector.load %arg5[%121, %c0_72, %c0_73] : memref<8x32x4xf32, #tpu.memory_space<vmem>>, vector<1x32x4xf32>
    %123 = vector.shape_cast %122 : vector<1x32x4xf32> to vector<32x4xf32>
    %cst_74 = arith.constant dense<0.000000e+00> : vector<16x4xf32>
    %124 = tpu.matmul %3, %123, %cst_74 {dimension_numbers = #tpu.dot_dimension_numbers<[1], [0], [0], [1], [0, 0, 1, 1], [], []>} : vector<16x32xf32>, vector<32x4xf32>, vector<16x4xf32> -> vector<16x4xf32>
    %125 = arith.index_cast %c4_i32 : i32 to index
    %c0_75 = arith.constant 0 : index
    %c0_76 = arith.constant 0 : index
    %126 = vector.load %arg6[%125, %c0_75, %c0_76] : memref<8x32x4xf32, #tpu.memory_space<vmem>>, vector<1x32x4xf32>
    %127 = vector.shape_cast %126 : vector<1x32x4xf32> to vector<32x4xf32>
    %cst_77 = arith.constant dense<0.000000e+00> : vector<16x4xf32>
    %128 = tpu.matmul %3, %127, %cst_77 {dimension_numbers = #tpu.dot_dimension_numbers<[1], [0], [0], [1], [0, 0, 1, 1], [], []>} : vector<16x32xf32>, vector<32x4xf32>, vector<16x4xf32> -> vector<16x4xf32>
    %cst_78 = arith.constant dense<0.000000e+00> : vector<8x16xf32>
    %129 = tpu.matmul %120, %124, %cst_78 {dimension_numbers = #tpu.dot_dimension_numbers<[1], [1], [0], [0], [0, 0, 1, 0], [], []>} : vector<8x4xf32>, vector<16x4xf32>, vector<8x16xf32> -> vector<8x16xf32>
    %cst_79 = arith.constant dense<0xFF800000> : vector<8xf32>
    %130 = vector.multi_reduction <maximumf>, %129, %cst_79 [1] : vector<8x16xf32> to vector<8xf32>
    %131 = vector.shape_cast %130 : vector<8xf32> to vector<8x1xf32>
    %132 = vector.broadcast %131 : vector<8x1xf32> to vector<8x16xf32>
    %133 = arith.subf %129, %132 : vector<8x16xf32>
    %134 = math.exp %133 : vector<8x16xf32>
    %cst_80 = arith.constant dense<0.000000e+00> : vector<8xf32>
    %135 = vector.multi_reduction <add>, %134, %cst_80 [1] : vector<8x16xf32> to vector<8xf32>
    %136 = vector.shape_cast %135 : vector<8xf32> to vector<8x1xf32>
    %137 = vector.broadcast %136 : vector<8x1xf32> to vector<8x16xf32>
    %138 = arith.divf %134, %137 : vector<8x16xf32>
    %cst_81 = arith.constant dense<0.000000e+00> : vector<8x4xf32>
    %139 = tpu.matmul %138, %128, %cst_81 {dimension_numbers = #tpu.dot_dimension_numbers<[1], [0], [0], [1], [0, 0, 1, 1], [], []>} : vector<8x16xf32>, vector<16x4xf32>, vector<8x4xf32> -> vector<8x4xf32>
    %140 = arith.index_cast %c4_i32 : i32 to index
    %c0_82 = arith.constant 0 : index
    %c0_83 = arith.constant 0 : index
    %141 = vector.load %arg7[%140, %c0_82, %c0_83] : memref<8x4x32xf32, #tpu.memory_space<vmem>>, vector<1x4x32xf32>
    %142 = vector.shape_cast %141 : vector<1x4x32xf32> to vector<4x32xf32>
    %cst_84 = arith.constant dense<0.000000e+00> : vector<8x32xf32>
    %143 = tpu.matmul %139, %142, %cst_84 {dimension_numbers = #tpu.dot_dimension_numbers<[1], [0], [0], [1], [0, 0, 1, 1], [], []>} : vector<8x4xf32>, vector<4x32xf32>, vector<8x32xf32> -> vector<8x32xf32>
    %144 = arith.addf %116, %143 : vector<8x32xf32>
    %c5_i32 = arith.constant 5 : i32
    %145 = arith.index_cast %c5_i32 : i32 to index
    %c0_85 = arith.constant 0 : index
    %c0_86 = arith.constant 0 : index
    %146 = vector.load %arg4[%145, %c0_85, %c0_86] : memref<8x32x4xf32, #tpu.memory_space<vmem>>, vector<1x32x4xf32>
    %147 = vector.shape_cast %146 : vector<1x32x4xf32> to vector<32x4xf32>
    %cst_87 = arith.constant dense<0.000000e+00> : vector<8x4xf32>
    %148 = tpu.matmul %1, %147, %cst_87 {dimension_numbers = #tpu.dot_dimension_numbers<[1], [0], [0], [1], [0, 0, 1, 1], [], []>} : vector<8x32xf32>, vector<32x4xf32>, vector<8x4xf32> -> vector<8x4xf32>
    %149 = arith.index_cast %c5_i32 : i32 to index
    %c0_88 = arith.constant 0 : index
    %c0_89 = arith.constant 0 : index
    %150 = vector.load %arg5[%149, %c0_88, %c0_89] : memref<8x32x4xf32, #tpu.memory_space<vmem>>, vector<1x32x4xf32>
    %151 = vector.shape_cast %150 : vector<1x32x4xf32> to vector<32x4xf32>
    %cst_90 = arith.constant dense<0.000000e+00> : vector<16x4xf32>
    %152 = tpu.matmul %3, %151, %cst_90 {dimension_numbers = #tpu.dot_dimension_numbers<[1], [0], [0], [1], [0, 0, 1, 1], [], []>} : vector<16x32xf32>, vector<32x4xf32>, vector<16x4xf32> -> vector<16x4xf32>
    %153 = arith.index_cast %c5_i32 : i32 to index
    %c0_91 = arith.constant 0 : index
    %c0_92 = arith.constant 0 : index
    %154 = vector.load %arg6[%153, %c0_91, %c0_92] : memref<8x32x4xf32, #tpu.memory_space<vmem>>, vector<1x32x4xf32>
    %155 = vector.shape_cast %154 : vector<1x32x4xf32> to vector<32x4xf32>
    %cst_93 = arith.constant dense<0.000000e+00> : vector<16x4xf32>
    %156 = tpu.matmul %3, %155, %cst_93 {dimension_numbers = #tpu.dot_dimension_numbers<[1], [0], [0], [1], [0, 0, 1, 1], [], []>} : vector<16x32xf32>, vector<32x4xf32>, vector<16x4xf32> -> vector<16x4xf32>
    %cst_94 = arith.constant dense<0.000000e+00> : vector<8x16xf32>
    %157 = tpu.matmul %148, %152, %cst_94 {dimension_numbers = #tpu.dot_dimension_numbers<[1], [1], [0], [0], [0, 0, 1, 0], [], []>} : vector<8x4xf32>, vector<16x4xf32>, vector<8x16xf32> -> vector<8x16xf32>
    %cst_95 = arith.constant dense<0xFF800000> : vector<8xf32>
    %158 = vector.multi_reduction <maximumf>, %157, %cst_95 [1] : vector<8x16xf32> to vector<8xf32>
    %159 = vector.shape_cast %158 : vector<8xf32> to vector<8x1xf32>
    %160 = vector.broadcast %159 : vector<8x1xf32> to vector<8x16xf32>
    %161 = arith.subf %157, %160 : vector<8x16xf32>
    %162 = math.exp %161 : vector<8x16xf32>
    %cst_96 = arith.constant dense<0.000000e+00> : vector<8xf32>
    %163 = vector.multi_reduction <add>, %162, %cst_96 [1] : vector<8x16xf32> to vector<8xf32>
    %164 = vector.shape_cast %163 : vector<8xf32> to vector<8x1xf32>
    %165 = vector.broadcast %164 : vector<8x1xf32> to vector<8x16xf32>
    %166 = arith.divf %162, %165 : vector<8x16xf32>
    %cst_97 = arith.constant dense<0.000000e+00> : vector<8x4xf32>
    %167 = tpu.matmul %166, %156, %cst_97 {dimension_numbers = #tpu.dot_dimension_numbers<[1], [0], [0], [1], [0, 0, 1, 1], [], []>} : vector<8x16xf32>, vector<16x4xf32>, vector<8x4xf32> -> vector<8x4xf32>
    %168 = arith.index_cast %c5_i32 : i32 to index
    %c0_98 = arith.constant 0 : index
    %c0_99 = arith.constant 0 : index
    %169 = vector.load %arg7[%168, %c0_98, %c0_99] : memref<8x4x32xf32, #tpu.memory_space<vmem>>, vector<1x4x32xf32>
    %170 = vector.shape_cast %169 : vector<1x4x32xf32> to vector<4x32xf32>
    %cst_100 = arith.constant dense<0.000000e+00> : vector<8x32xf32>
    %171 = tpu.matmul %167, %170, %cst_100 {dimension_numbers = #tpu.dot_dimension_numbers<[1], [0], [0], [1], [0, 0, 1, 1], [], []>} : vector<8x4xf32>, vector<4x32xf32>, vector<8x32xf32> -> vector<8x32xf32>
    %172 = arith.addf %144, %171 : vector<8x32xf32>
    %c6_i32 = arith.constant 6 : i32
    %173 = arith.index_cast %c6_i32 : i32 to index
    %c0_101 = arith.constant 0 : index
    %c0_102 = arith.constant 0 : index
    %174 = vector.load %arg4[%173, %c0_101, %c0_102] : memref<8x32x4xf32, #tpu.memory_space<vmem>>, vector<1x32x4xf32>
    %175 = vector.shape_cast %174 : vector<1x32x4xf32> to vector<32x4xf32>
    %cst_103 = arith.constant dense<0.000000e+00> : vector<8x4xf32>
    %176 = tpu.matmul %1, %175, %cst_103 {dimension_numbers = #tpu.dot_dimension_numbers<[1], [0], [0], [1], [0, 0, 1, 1], [], []>} : vector<8x32xf32>, vector<32x4xf32>, vector<8x4xf32> -> vector<8x4xf32>
    %177 = arith.index_cast %c6_i32 : i32 to index
    %c0_104 = arith.constant 0 : index
    %c0_105 = arith.constant 0 : index
    %178 = vector.load %arg5[%177, %c0_104, %c0_105] : memref<8x32x4xf32, #tpu.memory_space<vmem>>, vector<1x32x4xf32>
    %179 = vector.shape_cast %178 : vector<1x32x4xf32> to vector<32x4xf32>
    %cst_106 = arith.constant dense<0.000000e+00> : vector<16x4xf32>
    %180 = tpu.matmul %3, %179, %cst_106 {dimension_numbers = #tpu.dot_dimension_numbers<[1], [0], [0], [1], [0, 0, 1, 1], [], []>} : vector<16x32xf32>, vector<32x4xf32>, vector<16x4xf32> -> vector<16x4xf32>
    %181 = arith.index_cast %c6_i32 : i32 to index
    %c0_107 = arith.constant 0 : index
    %c0_108 = arith.constant 0 : index
    %182 = vector.load %arg6[%181, %c0_107, %c0_108] : memref<8x32x4xf32, #tpu.memory_space<vmem>>, vector<1x32x4xf32>
    %183 = vector.shape_cast %182 : vector<1x32x4xf32> to vector<32x4xf32>
    %cst_109 = arith.constant dense<0.000000e+00> : vector<16x4xf32>
    %184 = tpu.matmul %3, %183, %cst_109 {dimension_numbers = #tpu.dot_dimension_numbers<[1], [0], [0], [1], [0, 0, 1, 1], [], []>} : vector<16x32xf32>, vector<32x4xf32>, vector<16x4xf32> -> vector<16x4xf32>
    %cst_110 = arith.constant dense<0.000000e+00> : vector<8x16xf32>
    %185 = tpu.matmul %176, %180, %cst_110 {dimension_numbers = #tpu.dot_dimension_numbers<[1], [1], [0], [0], [0, 0, 1, 0], [], []>} : vector<8x4xf32>, vector<16x4xf32>, vector<8x16xf32> -> vector<8x16xf32>
    %cst_111 = arith.constant dense<0xFF800000> : vector<8xf32>
    %186 = vector.multi_reduction <maximumf>, %185, %cst_111 [1] : vector<8x16xf32> to vector<8xf32>
    %187 = vector.shape_cast %186 : vector<8xf32> to vector<8x1xf32>
    %188 = vector.broadcast %187 : vector<8x1xf32> to vector<8x16xf32>
    %189 = arith.subf %185, %188 : vector<8x16xf32>
    %190 = math.exp %189 : vector<8x16xf32>
    %cst_112 = arith.constant dense<0.000000e+00> : vector<8xf32>
    %191 = vector.multi_reduction <add>, %190, %cst_112 [1] : vector<8x16xf32> to vector<8xf32>
    %192 = vector.shape_cast %191 : vector<8xf32> to vector<8x1xf32>
    %193 = vector.broadcast %192 : vector<8x1xf32> to vector<8x16xf32>
    %194 = arith.divf %190, %193 : vector<8x16xf32>
    %cst_113 = arith.constant dense<0.000000e+00> : vector<8x4xf32>
    %195 = tpu.matmul %194, %184, %cst_113 {dimension_numbers = #tpu.dot_dimension_numbers<[1], [0], [0], [1], [0, 0, 1, 1], [], []>} : vector<8x16xf32>, vector<16x4xf32>, vector<8x4xf32> -> vector<8x4xf32>
    %196 = arith.index_cast %c6_i32 : i32 to index
    %c0_114 = arith.constant 0 : index
    %c0_115 = arith.constant 0 : index
    %197 = vector.load %arg7[%196, %c0_114, %c0_115] : memref<8x4x32xf32, #tpu.memory_space<vmem>>, vector<1x4x32xf32>
    %198 = vector.shape_cast %197 : vector<1x4x32xf32> to vector<4x32xf32>
    %cst_116 = arith.constant dense<0.000000e+00> : vector<8x32xf32>
    %199 = tpu.matmul %195, %198, %cst_116 {dimension_numbers = #tpu.dot_dimension_numbers<[1], [0], [0], [1], [0, 0, 1, 1], [], []>} : vector<8x4xf32>, vector<4x32xf32>, vector<8x32xf32> -> vector<8x32xf32>
    %200 = arith.addf %172, %199 : vector<8x32xf32>
    %c7_i32 = arith.constant 7 : i32
    %201 = arith.index_cast %c7_i32 : i32 to index
    %c0_117 = arith.constant 0 : index
    %c0_118 = arith.constant 0 : index
    %202 = vector.load %arg4[%201, %c0_117, %c0_118] : memref<8x32x4xf32, #tpu.memory_space<vmem>>, vector<1x32x4xf32>
    %203 = vector.shape_cast %202 : vector<1x32x4xf32> to vector<32x4xf32>
    %cst_119 = arith.constant dense<0.000000e+00> : vector<8x4xf32>
    %204 = tpu.matmul %1, %203, %cst_119 {dimension_numbers = #tpu.dot_dimension_numbers<[1], [0], [0], [1], [0, 0, 1, 1], [], []>} : vector<8x32xf32>, vector<32x4xf32>, vector<8x4xf32> -> vector<8x4xf32>
    %205 = arith.index_cast %c7_i32 : i32 to index
    %c0_120 = arith.constant 0 : index
    %c0_121 = arith.constant 0 : index
    %206 = vector.load %arg5[%205, %c0_120, %c0_121] : memref<8x32x4xf32, #tpu.memory_space<vmem>>, vector<1x32x4xf32>
    %207 = vector.shape_cast %206 : vector<1x32x4xf32> to vector<32x4xf32>
    %cst_122 = arith.constant dense<0.000000e+00> : vector<16x4xf32>
    %208 = tpu.matmul %3, %207, %cst_122 {dimension_numbers = #tpu.dot_dimension_numbers<[1], [0], [0], [1], [0, 0, 1, 1], [], []>} : vector<16x32xf32>, vector<32x4xf32>, vector<16x4xf32> -> vector<16x4xf32>
    %209 = arith.index_cast %c7_i32 : i32 to index
    %c0_123 = arith.constant 0 : index
    %c0_124 = arith.constant 0 : index
    %210 = vector.load %arg6[%209, %c0_123, %c0_124] : memref<8x32x4xf32, #tpu.memory_space<vmem>>, vector<1x32x4xf32>
    %211 = vector.shape_cast %210 : vector<1x32x4xf32> to vector<32x4xf32>
    %cst_125 = arith.constant dense<0.000000e+00> : vector<16x4xf32>
    %212 = tpu.matmul %3, %211, %cst_125 {dimension_numbers = #tpu.dot_dimension_numbers<[1], [0], [0], [1], [0, 0, 1, 1], [], []>} : vector<16x32xf32>, vector<32x4xf32>, vector<16x4xf32> -> vector<16x4xf32>
    %cst_126 = arith.constant dense<0.000000e+00> : vector<8x16xf32>
    %213 = tpu.matmul %204, %208, %cst_126 {dimension_numbers = #tpu.dot_dimension_numbers<[1], [1], [0], [0], [0, 0, 1, 0], [], []>} : vector<8x4xf32>, vector<16x4xf32>, vector<8x16xf32> -> vector<8x16xf32>
    %cst_127 = arith.constant dense<0xFF800000> : vector<8xf32>
    %214 = vector.multi_reduction <maximumf>, %213, %cst_127 [1] : vector<8x16xf32> to vector<8xf32>
    %215 = vector.shape_cast %214 : vector<8xf32> to vector<8x1xf32>
    %216 = vector.broadcast %215 : vector<8x1xf32> to vector<8x16xf32>
    %217 = arith.subf %213, %216 : vector<8x16xf32>
    %218 = math.exp %217 : vector<8x16xf32>
    %cst_128 = arith.constant dense<0.000000e+00> : vector<8xf32>
    %219 = vector.multi_reduction <add>, %218, %cst_128 [1] : vector<8x16xf32> to vector<8xf32>
    %220 = vector.shape_cast %219 : vector<8xf32> to vector<8x1xf32>
    %221 = vector.broadcast %220 : vector<8x1xf32> to vector<8x16xf32>
    %222 = arith.divf %218, %221 : vector<8x16xf32>
    %cst_129 = arith.constant dense<0.000000e+00> : vector<8x4xf32>
    %223 = tpu.matmul %222, %212, %cst_129 {dimension_numbers = #tpu.dot_dimension_numbers<[1], [0], [0], [1], [0, 0, 1, 1], [], []>} : vector<8x16xf32>, vector<16x4xf32>, vector<8x4xf32> -> vector<8x4xf32>
    %224 = arith.index_cast %c7_i32 : i32 to index
    %c0_130 = arith.constant 0 : index
    %c0_131 = arith.constant 0 : index
    %225 = vector.load %arg7[%224, %c0_130, %c0_131] : memref<8x4x32xf32, #tpu.memory_space<vmem>>, vector<1x4x32xf32>
    %226 = vector.shape_cast %225 : vector<1x4x32xf32> to vector<4x32xf32>
    %cst_132 = arith.constant dense<0.000000e+00> : vector<8x32xf32>
    %227 = tpu.matmul %223, %226, %cst_132 {dimension_numbers = #tpu.dot_dimension_numbers<[1], [0], [0], [1], [0, 0, 1, 1], [], []>} : vector<8x4xf32>, vector<4x32xf32>, vector<8x32xf32> -> vector<8x32xf32>
    %228 = arith.addf %200, %227 : vector<8x32xf32>
    %c8_i32 = arith.constant 8 : i32
    %229 = arith.addf %228, %1 : vector<8x32xf32>
    %cst_133 = arith.constant dense<0.000000e+00> : vector<8xf32>
    %230 = vector.multi_reduction <add>, %229, %cst_133 [1] : vector<8x32xf32> to vector<8xf32>
    %231 = vector.shape_cast %230 : vector<8xf32> to vector<8x1xf32>
    %cst_134 = arith.constant 3.200000e+01 : f32
    %232 = vector.broadcast %cst_134 : f32 to vector<8x1xf32>
    %233 = arith.divf %231, %232 : vector<8x1xf32>
    %234 = vector.broadcast %233 : vector<8x1xf32> to vector<8x32xf32>
    %235 = arith.subf %229, %234 : vector<8x32xf32>
    %236 = arith.mulf %235, %235 : vector<8x32xf32>
    %cst_135 = arith.constant dense<0.000000e+00> : vector<8xf32>
    %237 = vector.multi_reduction <add>, %236, %cst_135 [1] : vector<8x32xf32> to vector<8xf32>
    %238 = vector.shape_cast %237 : vector<8xf32> to vector<8x1xf32>
    %cst_136 = arith.constant 3.200000e+01 : f32
    %239 = vector.broadcast %cst_136 : f32 to vector<8x1xf32>
    %240 = arith.divf %238, %239 : vector<8x1xf32>
    %cst_137 = arith.constant 9.99999974E-6 : f32
    %241 = vector.broadcast %cst_137 : f32 to vector<8x1xf32>
    %242 = arith.addf %240, %241 : vector<8x1xf32>
    %243 = math.rsqrt %242 : vector<8x1xf32>
    %244 = vector.broadcast %243 : vector<8x1xf32> to vector<8x32xf32>
    %245 = arith.mulf %235, %244 : vector<8x32xf32>
    %c0_138 = arith.constant 0 : index
    %c0_139 = arith.constant 0 : index
    %246 = vector.load %arg8[%c0_138, %c0_139] : memref<1x32xf32, #tpu.memory_space<vmem>>, vector<1x32xf32>
    %247 = vector.broadcast %246 : vector<1x32xf32> to vector<8x32xf32>
    %248 = arith.mulf %245, %247 : vector<8x32xf32>
    %c0_140 = arith.constant 0 : index
    %c0_141 = arith.constant 0 : index
    %249 = vector.load %arg9[%c0_140, %c0_141] : memref<1x32xf32, #tpu.memory_space<vmem>>, vector<1x32xf32>
    %250 = vector.broadcast %249 : vector<1x32xf32> to vector<8x32xf32>
    %251 = arith.addf %248, %250 : vector<8x32xf32>
    %c0_142 = arith.constant 0 : index
    %c0_143 = arith.constant 0 : index
    %252 = vector.load %arg12[%c0_142, %c0_143] : memref<32x64xf32, #tpu.memory_space<vmem>>, vector<32x64xf32>
    %cst_144 = arith.constant dense<0.000000e+00> : vector<8x64xf32>
    %253 = tpu.matmul %251, %252, %cst_144 {dimension_numbers = #tpu.dot_dimension_numbers<[1], [0], [0], [1], [0, 0, 1, 1], [], []>} : vector<8x32xf32>, vector<32x64xf32>, vector<8x64xf32> -> vector<8x64xf32>
    %c0_145 = arith.constant 0 : index
    %c0_146 = arith.constant 0 : index
    %254 = vector.load %arg13[%c0_145, %c0_146] : memref<1x64xf32, #tpu.memory_space<vmem>>, vector<1x64xf32>
    %255 = vector.broadcast %254 : vector<1x64xf32> to vector<8x64xf32>
    %256 = arith.addf %253, %255 : vector<8x64xf32>
    %cst_147 = arith.constant 5.000000e-01 : f32
    %257 = vector.broadcast %cst_147 : f32 to vector<8x64xf32>
    %258 = arith.mulf %257, %256 : vector<8x64xf32>
    %cst_148 = arith.constant 4.471500e-02 : f32
    %259 = vector.broadcast %cst_148 : f32 to vector<8x64xf32>
    %260 = arith.mulf %259, %256 : vector<8x64xf32>
    %261 = arith.mulf %260, %256 : vector<8x64xf32>
    %262 = arith.mulf %261, %256 : vector<8x64xf32>
    %263 = arith.addf %256, %262 : vector<8x64xf32>
    %cst_149 = arith.constant 0.797884583 : f32
    %264 = vector.broadcast %cst_149 : f32 to vector<8x64xf32>
    %265 = arith.mulf %264, %263 : vector<8x64xf32>
    %266 = math.tanh %265 : vector<8x64xf32>
    %cst_150 = arith.constant 1.000000e+00 : f32
    %267 = vector.broadcast %cst_150 : f32 to vector<8x64xf32>
    %268 = arith.addf %267, %266 : vector<8x64xf32>
    %269 = arith.mulf %258, %268 : vector<8x64xf32>
    %c0_151 = arith.constant 0 : index
    %c0_152 = arith.constant 0 : index
    %270 = vector.load %arg14[%c0_151, %c0_152] : memref<64x32xf32, #tpu.memory_space<vmem>>, vector<64x32xf32>
    %cst_153 = arith.constant dense<0.000000e+00> : vector<8x32xf32>
    %271 = tpu.matmul %269, %270, %cst_153 {dimension_numbers = #tpu.dot_dimension_numbers<[1], [0], [0], [1], [0, 0, 1, 1], [], []>} : vector<8x64xf32>, vector<64x32xf32>, vector<8x32xf32> -> vector<8x32xf32>
    %c0_154 = arith.constant 0 : index
    %c0_155 = arith.constant 0 : index
    %272 = vector.load %arg15[%c0_154, %c0_155] : memref<1x32xf32, #tpu.memory_space<vmem>>, vector<1x32xf32>
    %273 = vector.broadcast %272 : vector<1x32xf32> to vector<8x32xf32>
    %274 = arith.addf %271, %273 : vector<8x32xf32>
    %275 = arith.addf %274, %251 : vector<8x32xf32>
    %cst_156 = arith.constant dense<0.000000e+00> : vector<8xf32>
    %276 = vector.multi_reduction <add>, %275, %cst_156 [1] : vector<8x32xf32> to vector<8xf32>
    %277 = vector.shape_cast %276 : vector<8xf32> to vector<8x1xf32>
    %cst_157 = arith.constant 3.200000e+01 : f32
    %278 = vector.broadcast %cst_157 : f32 to vector<8x1xf32>
    %279 = arith.divf %277, %278 : vector<8x1xf32>
    %280 = vector.broadcast %279 : vector<8x1xf32> to vector<8x32xf32>
    %281 = arith.subf %275, %280 : vector<8x32xf32>
    %282 = arith.mulf %281, %281 : vector<8x32xf32>
    %cst_158 = arith.constant dense<0.000000e+00> : vector<8xf32>
    %283 = vector.multi_reduction <add>, %282, %cst_158 [1] : vector<8x32xf32> to vector<8xf32>
    %284 = vector.shape_cast %283 : vector<8xf32> to vector<8x1xf32>
    %cst_159 = arith.constant 3.200000e+01 : f32
    %285 = vector.broadcast %cst_159 : f32 to vector<8x1xf32>
    %286 = arith.divf %284, %285 : vector<8x1xf32>
    %cst_160 = arith.constant 9.99999974E-6 : f32
    %287 = vector.broadcast %cst_160 : f32 to vector<8x1xf32>
    %288 = arith.addf %286, %287 : vector<8x1xf32>
    %289 = math.rsqrt %288 : vector<8x1xf32>
    %290 = vector.broadcast %289 : vector<8x1xf32> to vector<8x32xf32>
    %291 = arith.mulf %281, %290 : vector<8x32xf32>
    %c0_161 = arith.constant 0 : index
    %c0_162 = arith.constant 0 : index
    %292 = vector.load %arg10[%c0_161, %c0_162] : memref<1x32xf32, #tpu.memory_space<vmem>>, vector<1x32xf32>
    %293 = vector.broadcast %292 : vector<1x32xf32> to vector<8x32xf32>
    %294 = arith.mulf %291, %293 : vector<8x32xf32>
    %c0_163 = arith.constant 0 : index
    %c0_164 = arith.constant 0 : index
    %295 = vector.load %arg11[%c0_163, %c0_164] : memref<1x32xf32, #tpu.memory_space<vmem>>, vector<1x32xf32>
    %296 = vector.broadcast %295 : vector<1x32xf32> to vector<8x32xf32>
    %297 = arith.addf %294, %296 : vector<8x32xf32>
    %c0_165 = arith.constant 0 : index
    %c0_166 = arith.constant 0 : index
    %c0_167 = arith.constant 0 : index
    %298 = vector.load %arg16[%c0_165, %c0_166, %c0_167] : memref<1x8x32xf32, #tpu.memory_space<vmem>>, vector<1x8x32xf32>
    %299 = vector.shape_cast %298 : vector<1x8x32xf32> to vector<8x32xf32>
    %300 = vector.shape_cast %297 : vector<8x32xf32> to vector<1x8x32xf32>
    tpu.vector_store %arg16[%c0_165, %c0_166, %c0_167], %300 {strides = array<i32>} : memref<1x8x32xf32, #tpu.memory_space<vmem>>, vector<1x8x32xf32>,
    return
  }
  func.func @transform_0(%arg0: i32, %arg1: i32) -> (i32, i32, i32) {
    %c0_i32 = arith.constant 0 : i32
    %c0_i32_0 = arith.constant 0 : i32
    return %arg0, %arg1, %c0_i32 : i32, i32, i32
  }
  func.func @transform_1(%arg0: i32, %arg1: i32) -> (i32, i32, i32) {
    %c0_i32 = arith.constant 0 : i32
    %c0_i32_0 = arith.constant 0 : i32
    %c0_i32_1 = arith.constant 0 : i32
    return %arg0, %c0_i32, %c0_i32_0 : i32, i32, i32
  }
  func.func @transform_2(%arg0: i32, %arg1: i32) -> (i32, i32, i32) {
    %c0_i32 = arith.constant 0 : i32
    %c0_i32_0 = arith.constant 0 : i32
    %c0_i32_1 = arith.constant 0 : i32
    %c0_i32_2 = arith.constant 0 : i32
    return %c0_i32, %c0_i32_0, %c0_i32_1 : i32, i32, i32
  }
  func.func @transform_3(%arg0: i32, %arg1: i32) -> (i32, i32, i32) {
    %c0_i32 = arith.constant 0 : i32
    %c0_i32_0 = arith.constant 0 : i32
    %c0_i32_1 = arith.constant 0 : i32
    %c0_i32_2 = arith.constant 0 : i32
    return %c0_i32, %c0_i32_0, %c0_i32_1 : i32, i32, i32
  }
  func.func @transform_4(%arg0: i32, %arg1: i32) -> (i32, i32, i32) {
    %c0_i32 = arith.constant 0 : i32
    %c0_i32_0 = arith.constant 0 : i32
    %c0_i32_1 = arith.constant 0 : i32
    %c0_i32_2 = arith.constant 0 : i32
    return %c0_i32, %c0_i32_0, %c0_i32_1 : i32, i32, i32
  }
  func.func @transform_5(%arg0: i32, %arg1: i32) -> (i32, i32, i32) {
    %c0_i32 = arith.constant 0 : i32
    %c0_i32_0 = arith.constant 0 : i32
    %c0_i32_1 = arith.constant 0 : i32
    %c0_i32_2 = arith.constant 0 : i32
    return %c0_i32, %c0_i32_0, %c0_i32_1 : i32, i32, i32
  }
  func.func @transform_6(%arg0: i32, %arg1: i32) -> (i32, i32) {
    %c0_i32 = arith.constant 0 : i32
    %c0_i32_0 = arith.constant 0 : i32
    %c0_i32_1 = arith.constant 0 : i32
    return %c0_i32, %c0_i32_0 : i32, i32
  }
  func.func @transform_7(%arg0: i32, %arg1: i32) -> (i32, i32) {
    %c0_i32 = arith.constant 0 : i32
    %c0_i32_0 = arith.constant 0 : i32
    %c0_i32_1 = arith.constant 0 : i32
    return %c0_i32, %c0_i32_0 : i32, i32
  }
  func.func @transform_8(%arg0: i32, %arg1: i32) -> (i32, i32) {
    %c0_i32 = arith.constant 0 : i32
    %c0_i32_0 = arith.constant 0 : i32
    %c0_i32_1 = arith.constant 0 : i32
    return %c0_i32, %c0_i32_0 : i32, i32
  }
  func.func @transform_9(%arg0: i32, %arg1: i32) -> (i32, i32) {
    %c0_i32 = arith.constant 0 : i32
    %c0_i32_0 = arith.constant 0 : i32
    %c0_i32_1 = arith.constant 0 : i32
    return %c0_i32, %c0_i32_0 : i32, i32
  }
  func.func @transform_10(%arg0: i32, %arg1: i32) -> (i32, i32) {
    %c0_i32 = arith.constant 0 : i32
    %c0_i32_0 = arith.constant 0 : i32
    %c0_i32_1 = arith.constant 0 : i32
    return %c0_i32, %c0_i32_0 : i32, i32
  }
  func.func @transform_11(%arg0: i32, %arg1: i32) -> (i32, i32) {
    %c0_i32 = arith.constant 0 : i32
    %c0_i32_0 = arith.constant 0 : i32
    %c0_i32_1 = arith.constant 0 : i32
    return %c0_i32, %c0_i32_0 : i32, i32
  }
  func.func @transform_12(%arg0: i32, %arg1: i32) -> (i32, i32) {
    %c0_i32 = arith.constant 0 : i32
    %c0_i32_0 = arith.constant 0 : i32
    %c0_i32_1 = arith.constant 0 : i32
    return %c0_i32, %c0_i32_0 : i32, i32
  }
  func.func @transform_13(%arg0: i32, %arg1: i32) -> (i32, i32) {
    %c0_i32 = arith.constant 0 : i32
    %c0_i32_0 = arith.constant 0 : i32
    %c0_i32_1 = arith.constant 0 : i32
    return %c0_i32, %c0_i32_0 : i32, i32
  }
  func.func @transform_14(%arg0: i32, %arg1: i32) -> (i32, i32, i32) {
    %c0_i32 = arith.constant 0 : i32
    %c0_i32_0 = arith.constant 0 : i32
    return %arg0, %arg1, %c0_i32 : i32, i32, i32
  }
}

</mosaic_0001>

<llo_original>
// kernel: tpu_custom_call.1
$region0: #{tpu_custom_call.1}
  #allocation0 [shape = 'u32[]', space=smem, size = 0x4, offset = 0x4, fixed_abs, tag = 'smem constant byte address 0x4 - core index']
  #allocation1 [shape = 'u32[144,128]{1,0:T(1,128)}', space=vmem, size = 0x12000, scoped, tag = 'internal scratch']
  %s0 = inlined_call_operand.vmem [shape: f32[2,16,32], index: 0, kind: input, shape index: {}]
  %s1 = inlined_call_operand.vmem [shape: f32[2,16,32], index: 1, kind: input, shape index: {}]
  %s2 = inlined_call_operand.vmem [shape: f32[8,32,4], index: 2, kind: input, shape index: {}]
  %s3 = inlined_call_operand.vmem [shape: f32[8,32,4], index: 3, kind: input, shape index: {}]
  %s4 = inlined_call_operand.vmem [shape: f32[8,32,4], index: 4, kind: input, shape index: {}]
  %s5 = inlined_call_operand.vmem [shape: f32[8,4,32], index: 5, kind: input, shape index: {}]
  %s6 = inlined_call_operand.vmem [shape: f32[1,32], index: 6, kind: input, shape index: {}]
  %s7 = inlined_call_operand.vmem [shape: f32[1,32], index: 7, kind: input, shape index: {}]
  %s8 = inlined_call_operand.vmem [shape: f32[1,32], index: 8, kind: input, shape index: {}]
  %s9 = inlined_call_operand.vmem [shape: f32[1,32], index: 9, kind: input, shape index: {}]
  %s10 = inlined_call_operand.vmem [shape: f32[32,64], index: 10, kind: input, shape index: {}]
  %s11 = inlined_call_operand.vmem [shape: f32[1,64], index: 11, kind: input, shape index: {}]
  %s12 = inlined_call_operand.vmem [shape: f32[64,32], index: 12, kind: input, shape index: {}]
  %s13 = inlined_call_operand.vmem [shape: f32[1,32], index: 13, kind: input, shape index: {}]
  %s14 = inlined_call_operand.hbm [shape: f32[2,16,32], index: 14, kind: output, shape index: {}]
  %s15 = sld [smem:[#allocation0]]
  $region89: #{tpu_custom_call.1} parent=0
    _
  %s17 = ssub.s32 1, %s15
  %s18 = scalar_select 0, %s17, %s15
  $region1: #{tpu_custom_call.1} parent=0
    #allocation2 [shape = 'u8[8192]{0}', space=vmem, size = 0x2000, scoped, tag = 'output window, operand 0']
    #allocation3 [shape = 's32[2]{0}', space=sflag, size = 0x8, scoped, tag = 'scoped memory for tpu_custom_call.1']
    %19 = vsyncpa [#allocation3], 0
    %s20 = scalar_lea.sflag [#allocation3], 1
    %21 = vsyncpa %s20, 0
    loop: start=0, step=1, limit=6
    $region2: #{tpu_custom_call.1} parent=1 // loop_pre_header
      _
    $region3: #{tpu_custom_call.1} parent=1 // loop_header
      %s23 = sphi 0, %s27
      %p24 = scmp.ge.s32.totalorder %s23, 6
      %s30 = sphi 0, %s42
      %s31 = sphi 0, %s38
      %s32 = sphi 0, %s30
      %s33 = sphi 0, %s31
      %s34 = sphi 0, %s32
      %s35 = sphi 0, %s33
      %s47 = sphi 0, %s49
      %s50 = sphi 0, %s47
      %s51 = sphi 0, %s50
      %s67 = sphi 0, %s51
      %s73 = sphi 0, %s75
      %s76 = sphi 0, %s73
      %s77 = sphi 0, %s76
      %s93 = sphi 0, %s77
      %s97 = sphi 0, %s97
      %s99 = sphi 0, %s97
      %s100 = sphi 0, %s99
      %s114 = sphi 0, %s100
      %s118 = sphi 0, %s118
      %s120 = sphi 0, %s118
      %s121 = sphi 0, %s120
      %s135 = sphi 0, %s121
      %s139 = sphi 0, %s139
      %s141 = sphi 0, %s139
      %s142 = sphi 0, %s141
      %s156 = sphi 0, %s142
      %s160 = sphi 0, %s160
      %s162 = sphi 0, %s160
      %s163 = sphi 0, %s162
      %s177 = sphi 0, %s163
      %s181 = sphi 0, %s181
      %s183 = sphi 0, %s181
      %s184 = sphi 0, %s183
      %s198 = sphi 0, %s184
      %s202 = sphi 0, %s202
      %s204 = sphi 0, %s202
      %s205 = sphi 0, %s204
      %s219 = sphi 0, %s205
      %s223 = sphi 0, %s223
      %s225 = sphi 0, %s223
      %s226 = sphi 0, %s225
      %s240 = sphi 0, %s226
      %s244 = sphi 0, %s244
      %s246 = sphi 0, %s244
      %s247 = sphi 0, %s246
      %s261 = sphi 0, %s247
      %s265 = sphi 0, %s265
      %s267 = sphi 0, %s265
      %s268 = sphi 0, %s267
      %s282 = sphi 0, %s268
      %s286 = sphi 0, %s286
      %s288 = sphi 0, %s286
      %s289 = sphi 0, %s288
      %s303 = sphi 0, %s289
      %s307 = sphi 0, %s307
      %s309 = sphi 0, %s307
      %s310 = sphi 0, %s309
      %s324 = sphi 0, %s310
      %s328 = sphi 0, %s328
      %s330 = sphi 0, %s328
      %s331 = sphi 0, %s330
      %s345 = sphi 0, %s331
      %s353 = sphi 0, %s355
      %s356 = sphi 0, %s353
      %s357 = sphi 0, %s356
      %s373 = sphi 0, %s357
    $region4: #{tpu_custom_call.1} parent=1 // loop_header_branch
      %26 = sbr.rel (%p24) target = $region8
    $region5: #{tpu_custom_call.1} parent=1 // loop_body
      %s28 = ssub.s32 %s23, 1
      %s29 = ssub.s32 %s23, 2
      %s36 = sadd.s32 1, %s31
      %p37 = scmp.ge.s32.totalorder %s36, 2
      %s38 = scalar_select %p37, 0, %s36
      %s39 = sadd.s32 1, %s30
      %s40 = scalar_select %p37, %s39, %s30
      %p41 = scmp.ge.s32.totalorder %s40, 2
      %s42 = scalar_select %p41, 0, %s40
      %s43 = ssub.s32 %s30, %s42
      %s44 = ssub.s32 %s31, %s38
      %s45 = sor.u32 %s43, %s44
      %p46 = scmp.eq.s32.totalorder %s45, 0
      %s48 = sadd.s32 %s47, 1
      %s49 = scalar_select %p46, %s47, %s48
      %p52 = pneg %p46
      %p53 = scmp.eq.s32.totalorder %s23, 3
      %p54 = por %p52, %p53
      %p55 = scmp.ne.s32.totalorder %s47, %s50
      %p56 = scmp.eq.s32.totalorder %s23, 0
      %p57 = por %p55, %p56
      %p58 = scmp.ne.s32.totalorder %s47, %s50
      %p59 = scmp.eq.s32.totalorder %s28, 3
      %p60 = por %p58, %p59
      %p61 = scmp.ne.s32.totalorder %s50, %s51
      %p62 = scmp.eq.s32.totalorder %s28, 0
      %p63 = por %p61, %p62
      %p64 = scmp.ne.s32.totalorder %s50, %s51
      %p65 = scmp.eq.s32.totalorder %s29, 3
      %p66 = por %p64, %p65
      %p68 = scmp.ne.s32.totalorder %s51, %s67
      %p69 = scmp.eq.s32.totalorder %s29, 0
      %p70 = por %p68, %p69
      %s71 = ssub.s32 %s30, %s42
      %p72 = scmp.eq.s32.totalorder %s71, 0
      %s74 = sadd.s32 %s73, 1
      %s75 = scalar_select %p72, %s73, %s74
      %p78 = pneg %p72
      %p79 = scmp.eq.s32.totalorder %s23, 3
      %p80 = por %p78, %p79
      %p81 = scmp.ne.s32.totalorder %s73, %s76
      %p82 = scmp.eq.s32.totalorder %s23, 0
      %p83 = por %p81, %p82
      %p84 = scmp.ne.s32.totalorder %s73, %s76
      %p85 = scmp.eq.s32.totalorder %s28, 3
      %p86 = por %p84, %p85
      %p87 = scmp.ne.s32.totalorder %s76, %s77
      %p88 = scmp.eq.s32.totalorder %s28, 0
      %p89 = por %p87, %p88
      %p90 = scmp.ne.s32.totalorder %s76, %s77
      %p91 = scmp.eq.s32.totalorder %s29, 3
      %p92 = por %p90, %p91
      %p94 = scmp.ne.s32.totalorder %s77, %s93
      %p95 = scmp.eq.s32.totalorder %s29, 0
      %p96 = por %p94, %p95
      %s98 = sadd.s32 %s97, 1
      %p101 = scmp.eq.s32.totalorder %s23, 3
      %p102 = scmp.ne.s32.totalorder %s97, %s99
      %p103 = scmp.eq.s32.totalorder %s23, 0
      %p104 = por %p102, %p103
      %p105 = scmp.ne.s32.totalorder %s97, %s99
      %p106 = scmp.eq.s32.totalorder %s28, 3
      %p107 = por %p105, %p106
      %p108 = scmp.ne.s32.totalorder %s99, %s100
      %p109 = scmp.eq.s32.totalorder %s28, 0
      %p110 = por %p108, %p109
      %p111 = scmp.ne.s32.totalorder %s99, %s100
      %p112 = scmp.eq.s32.totalorder %s29, 3
      %p113 = por %p111, %p112
      %p115 = scmp.ne.s32.totalorder %s100, %s114
      %p116 = scmp.eq.s32.totalorder %s29, 0
      %p117 = por %p115, %p116
      %s119 = sadd.s32 %s118, 1
      %p122 = scmp.eq.s32.totalorder %s23, 3
      %p123 = scmp.ne.s32.totalorder %s118, %s120
      %p124 = scmp.eq.s32.totalorder %s23, 0
      %p125 = por %p123, %p124
      %p126 = scmp.ne.s32.totalorder %s118, %s120
      %p127 = scmp.eq.s32.totalorder %s28, 3
      %p128 = por %p126, %p127
      %p129 = scmp.ne.s32.totalorder %s120, %s121
      %p130 = scmp.eq.s32.totalorder %s28, 0
      %p131 = por %p129, %p130
      %p132 = scmp.ne.s32.totalorder %s120, %s121
      %p133 = scmp.eq.s32.totalorder %s29, 3
      %p134 = por %p132, %p133
      %p136 = scmp.ne.s32.totalorder %s121, %s135
      %p137 = scmp.eq.s32.totalorder %s29, 0
      %p138 = por %p136, %p137
      %s140 = sadd.s32 %s139, 1
      %p143 = scmp.eq.s32.totalorder %s23, 3
      %p144 = scmp.ne.s32.totalorder %s139, %s141
      %p145 = scmp.eq.s32.totalorder %s23, 0
      %p146 = por %p144, %p145
      %p147 = scmp.ne.s32.totalorder %s139, %s141
      %p148 = scmp.eq.s32.totalorder %s28, 3
      %p149 = por %p147, %p148
      %p150 = scmp.ne.s32.totalorder %s141, %s142
      %p151 = scmp.eq.s32.totalorder %s28, 0
      %p152 = por %p150, %p151
      %p153 = scmp.ne.s32.totalorder %s141, %s142
      %p154 = scmp.eq.s32.totalorder %s29, 3
      %p155 = por %p153, %p154
      %p157 = scmp.ne.s32.totalorder %s142, %s156
      %p158 = scmp.eq.s32.totalorder %s29, 0
      %p159 = por %p157, %p158
      %s161 = sadd.s32 %s160, 1
      %p164 = scmp.eq.s32.totalorder %s23, 3
      %p165 = scmp.ne.s32.totalorder %s160, %s162
      %p166 = scmp.eq.s32.totalorder %s23, 0
      %p167 = por %p165, %p166
      %p168 = scmp.ne.s32.totalorder %s160, %s162
      %p169 = scmp.eq.s32.totalorder %s28, 3
      %p170 = por %p168, %p169
      %p171 = scmp.ne.s32.totalorder %s162, %s163
      %p172 = scmp.eq.s32.totalorder %s28, 0
      %p173 = por %p171, %p172
      %p174 = scmp.ne.s32.totalorder %s162, %s163
      %p175 = scmp.eq.s32.totalorder %s29, 3
      %p176 = por %p174, %p175
      %p178 = scmp.ne.s32.totalorder %s163, %s177
      %p179 = scmp.eq.s32.totalorder %s29, 0
      %p180 = por %p178, %p179
      %s182 = sadd.s32 %s181, 1
      %p185 = scmp.eq.s32.totalorder %s23, 3
      %p186 = scmp.ne.s32.totalorder %s181, %s183
      %p187 = scmp.eq.s32.totalorder %s23, 0
      %p188 = por %p186, %p187
      %p189 = scmp.ne.s32.totalorder %s181, %s183
      %p190 = scmp.eq.s32.totalorder %s28, 3
      %p191 = por %p189, %p190
      %p192 = scmp.ne.s32.totalorder %s183, %s184
      %p193 = scmp.eq.s32.totalorder %s28, 0
      %p194 = por %p192, %p193
      %p195 = scmp.ne.s32.totalorder %s183, %s184
      %p196 = scmp.eq.s32.totalorder %s29, 3
      %p197 = por %p195, %p196
      %p199 = scmp.ne.s32.totalorder %s184, %s198
      %p200 = scmp.eq.s32.totalorder %s29, 0
      %p201 = por %p199, %p200
      %s203 = sadd.s32 %s202, 1
      %p206 = scmp.eq.s32.totalorder %s23, 3
      %p207 = scmp.ne.s32.totalorder %s202, %s204
      %p208 = scmp.eq.s32.totalorder %s23, 0
      %p209 = por %p207, %p208
      %p210 = scmp.ne.s32.totalorder %s202, %s204
      %p211 = scmp.eq.s32.totalorder %s28, 3
      %p212 = por %p210, %p211
      %p213 = scmp.ne.s32.totalorder %s204, %s205
      %p214 = scmp.eq.s32.totalorder %s28, 0
      %p215 = por %p213, %p214
      %p216 = scmp.ne.s32.totalorder %s204, %s205
      %p217 = scmp.eq.s32.totalorder %s29, 3
      %p218 = por %p216, %p217
      %p220 = scmp.ne.s32.totalorder %s205, %s219
      %p221 = scmp.eq.s32.totalorder %s29, 0
      %p222 = por %p220, %p221
      %s224 = sadd.s32 %s223, 1
      %p227 = scmp.eq.s32.totalorder %s23, 3
      %p228 = scmp.ne.s32.totalorder %s223, %s225
      %p229 = scmp.eq.s32.totalorder %s23, 0
      %p230 = por %p228, %p229
      %p231 = scmp.ne.s32.totalorder %s223, %s225
      %p232 = scmp.eq.s32.totalorder %s28, 3
      %p233 = por %p231, %p232
      %p234 = scmp.ne.s32.totalorder %s225, %s226
      %p235 = scmp.eq.s32.totalorder %s28, 0
      %p236 = por %p234, %p235
      %p237 = scmp.ne.s32.totalorder %s225, %s226
      %p238 = scmp.eq.s32.totalorder %s29, 3
      %p239 = por %p237, %p238
      %p241 = scmp.ne.s32.totalorder %s226, %s240
      %p242 = scmp.eq.s32.totalorder %s29, 0
      %p243 = por %p241, %p242
      %s245 = sadd.s32 %s244, 1
      %p248 = scmp.eq.s32.totalorder %s23, 3
      %p249 = scmp.ne.s32.totalorder %s244, %s246
      %p250 = scmp.eq.s32.totalorder %s23, 0
      %p251 = por %p249, %p250
      %p252 = scmp.ne.s32.totalorder %s244, %s246
      %p253 = scmp.eq.s32.totalorder %s28, 3
      %p254 = por %p252, %p253
      %p255 = scmp.ne.s32.totalorder %s246, %s247
      %p256 = scmp.eq.s32.totalorder %s28, 0
      %p257 = por %p255, %p256
      %p258 = scmp.ne.s32.totalorder %s246, %s247
      %p259 = scmp.eq.s32.totalorder %s29, 3
      %p260 = por %p258, %p259
      %p262 = scmp.ne.s32.totalorder %s247, %s261
      %p263 = scmp.eq.s32.totalorder %s29, 0
      %p264 = por %p262, %p263
      %s266 = sadd.s32 %s265, 1
      %p269 = scmp.eq.s32.totalorder %s23, 3
      %p270 = scmp.ne.s32.totalorder %s265, %s267
      %p271 = scmp.eq.s32.totalorder %s23, 0
      %p272 = por %p270, %p271
      %p273 = scmp.ne.s32.totalorder %s265, %s267
      %p274 = scmp.eq.s32.totalorder %s28, 3
      %p275 = por %p273, %p274
      %p276 = scmp.ne.s32.totalorder %s267, %s268
      %p277 = scmp.eq.s32.totalorder %s28, 0
      %p278 = por %p276, %p277
      %p279 = scmp.ne.s32.totalorder %s267, %s268
      %p280 = scmp.eq.s32.totalorder %s29, 3
      %p281 = por %p279, %p280
      %p283 = scmp.ne.s32.totalorder %s268, %s282
      %p284 = scmp.eq.s32.totalorder %s29, 0
      %p285 = por %p283, %p284
      %s287 = sadd.s32 %s286, 1
      %p290 = scmp.eq.s32.totalorder %s23, 3
      %p291 = scmp.ne.s32.totalorder %s286, %s288
      %p292 = scmp.eq.s32.totalorder %s23, 0
      %p293 = por %p291, %p292
      %p294 = scmp.ne.s32.totalorder %s286, %s288
      %p295 = scmp.eq.s32.totalorder %s28, 3
      %p296 = por %p294, %p295
      %p297 = scmp.ne.s32.totalorder %s288, %s289
      %p298 = scmp.eq.s32.totalorder %s28, 0
      %p299 = por %p297, %p298
      %p300 = scmp.ne.s32.totalorder %s288, %s289
      %p301 = scmp.eq.s32.totalorder %s29, 3
      %p302 = por %p300, %p301
      %p304 = scmp.ne.s32.totalorder %s289, %s303
      %p305 = scmp.eq.s32.totalorder %s29, 0
      %p306 = por %p304, %p305
      %s308 = sadd.s32 %s307, 1
      %p311 = scmp.eq.s32.totalorder %s23, 3
      %p312 = scmp.ne.s32.totalorder %s307, %s309
      %p313 = scmp.eq.s32.totalorder %s23, 0
      %p314 = por %p312, %p313
      %p315 = scmp.ne.s32.totalorder %s307, %s309
      %p316 = scmp.eq.s32.totalorder %s28, 3
      %p317 = por %p315, %p316
      %p318 = scmp.ne.s32.totalorder %s309, %s310
      %p319 = scmp.eq.s32.totalorder %s28, 0
      %p320 = por %p318, %p319
      %p321 = scmp.ne.s32.totalorder %s309, %s310
      %p322 = scmp.eq.s32.totalorder %s29, 3
      %p323 = por %p321, %p322
      %p325 = scmp.ne.s32.totalorder %s310, %s324
      %p326 = scmp.eq.s32.totalorder %s29, 0
      %p327 = por %p325, %p326
      %s329 = sadd.s32 %s328, 1
      %p332 = scmp.eq.s32.totalorder %s23, 3
      %p333 = scmp.ne.s32.totalorder %s328, %s330
      %p334 = scmp.eq.s32.totalorder %s23, 0
      %p335 = por %p333, %p334
      %p336 = scmp.ne.s32.totalorder %s328, %s330
      %p337 = scmp.eq.s32.totalorder %s28, 3
      %p338 = por %p336, %p337
      %p339 = scmp.ne.s32.totalorder %s330, %s331
      %p340 = scmp.eq.s32.totalorder %s28, 0
      %p341 = por %p339, %p340
      %p342 = scmp.ne.s32.totalorder %s330, %s331
      %p343 = scmp.eq.s32.totalorder %s29, 3
      %p344 = por %p342, %p343
      %p346 = scmp.ne.s32.totalorder %s331, %s345
      %p347 = scmp.eq.s32.totalorder %s29, 0
      %p348 = por %p346, %p347
      %s349 = ssub.s32 %s30, %s42
      %s350 = ssub.s32 %s31, %s38
      %s351 = sor.u32 %s349, %s350
      %p352 = scmp.eq.s32.totalorder %s351, 0
      %s354 = sadd.s32 %s353, 1
      %s355 = scalar_select %p352, %s353, %s354
      %p358 = pneg %p352
      %p359 = scmp.eq.s32.totalorder %s23, 3
      %p360 = por %p358, %p359
      %p361 = scmp.ne.s32.totalorder %s353, %s356
      %p362 = scmp.eq.s32.totalorder %s23, 0
      %p363 = por %p361, %p362
      %p364 = scmp.ne.s32.totalorder %s353, %s356
      %p365 = scmp.eq.s32.totalorder %s28, 3
      %p366 = por %p364, %p365
      %p367 = scmp.ne.s32.totalorder %s356, %s357
      %p368 = scmp.eq.s32.totalorder %s28, 0
      %p369 = por %p367, %p368
      %p370 = scmp.ne.s32.totalorder %s356, %s357
      %p371 = scmp.eq.s32.totalorder %s29, 3
      %p372 = por %p370, %p371
      %p374 = scmp.ne.s32.totalorder %s357, %s373
      %p375 = scmp.eq.s32.totalorder %s29, 0
      %p376 = por %p374, %p375
      %p377 = scmp.le.s32.totalorder 1, %s23
      %p378 = scmp.lt.s32.totalorder %s23, 5
      %p379 = pnand %p377, %p378
      %p380 = pneg %p379
      // Predicated region
      $region9: #{tpu_custom_call.1} parent=5 // pred_check
        _
      $region10: #{tpu_custom_call.1} parent=5 // pred_check_branch
        %382 = sbr.rel (%p379) target = $region12
      $region11: #{tpu_custom_call.1} parent=5 // pred_region
        %s383 = ssub.s32 %s23, 1
        // Predicated region
        $region13: #{tpu_custom_call.1} parent=11 // pred_check
          %p384 = pneg %p110
        $region14: #{tpu_custom_call.1} parent=11 // pred_check_branch
          %386 = sbr.rel (%p384) target = $region16
        $region15: #{tpu_custom_call.1} parent=11 // pred_region
          _
        $region16: #{tpu_custom_call.1} parent=11 // pred_fallthru
          _
        // Predicated region
        $region17: #{tpu_custom_call.1} parent=11 // pred_check
          %p387 = pneg %p131
        $region18: #{tpu_custom_call.1} parent=11 // pred_check_branch
          %389 = sbr.rel (%p387) target = $region20
        $region19: #{tpu_custom_call.1} parent=11 // pred_region
          _
        $region20: #{tpu_custom_call.1} parent=11 // pred_fallthru
          _
        // Predicated region
        $region21: #{tpu_custom_call.1} parent=11 // pred_check
          %p390 = pneg %p152
        $region22: #{tpu_custom_call.1} parent=11 // pred_check_branch
          %392 = sbr.rel (%p390) target = $region24
        $region23: #{tpu_custom_call.1} parent=11 // pred_region
          _
        $region24: #{tpu_custom_call.1} parent=11 // pred_fallthru
          _
        // Predicated region
        $region25: #{tpu_custom_call.1} parent=11 // pred_check
          %p393 = pneg %p173
        $region26: #{tpu_custom_call.1} parent=11 // pred_check_branch
          %395 = sbr.rel (%p393) target = $region28
        $region27: #{tpu_custom_call.1} parent=11 // pred_region
          _
        $region28: #{tpu_custom_call.1} parent=11 // pred_fallthru
          _
        // Predicated region
        $region29: #{tpu_custom_call.1} parent=11 // pred_check
          %p396 = pneg %p194
        $region30: #{tpu_custom_call.1} parent=11 // pred_check_branch
          %398 = sbr.rel (%p396) target = $region32
        $region31: #{tpu_custom_call.1} parent=11 // pred_region
          _
        $region32: #{tpu_custom_call.1} parent=11 // pred_fallthru
          _
        // Predicated region
        $region33: #{tpu_custom_call.1} parent=11 // pred_check
          %p399 = pneg %p215
        $region34: #{tpu_custom_call.1} parent=11 // pred_check_branch
          %401 = sbr.rel (%p399) target = $region36
        $region35: #{tpu_custom_call.1} parent=11 // pred_region
          _
        $region36: #{tpu_custom_call.1} parent=11 // pred_fallthru
          _
        // Predicated region
        $region37: #{tpu_custom_call.1} parent=11 // pred_check
          %p402 = pneg %p236
        $region38: #{tpu_custom_call.1} parent=11 // pred_check_branch
          %404 = sbr.rel (%p402) target = $region40
        $region39: #{tpu_custom_call.1} parent=11 // pred_region
          _
        $region40: #{tpu_custom_call.1} parent=11 // pred_fallthru
          _
        // Predicated region
        $region41: #{tpu_custom_call.1} parent=11 // pred_check
          %p405 = pneg %p257
        $region42: #{tpu_custom_call.1} parent=11 // pred_check_branch
          %407 = sbr.rel (%p405) target = $region44
        $region43: #{tpu_custom_call.1} parent=11 // pred_region
          _
        $region44: #{tpu_custom_call.1} parent=11 // pred_fallthru
          _
        // Predicated region
        $region45: #{tpu_custom_call.1} parent=11 // pred_check
          %p408 = pneg %p278
        $region46: #{tpu_custom_call.1} parent=11 // pred_check_branch
          %410 = sbr.rel (%p408) target = $region48
        $region47: #{tpu_custom_call.1} parent=11 // pred_region
          _
        $region48: #{tpu_custom_call.1} parent=11 // pred_fallthru
          _
        // Predicated region
        $region49: #{tpu_custom_call.1} parent=11 // pred_check
          %p411 = pneg %p299
        $region50: #{tpu_custom_call.1} parent=11 // pred_check_branch
          %413 = sbr.rel (%p411) target = $region52
        $region51: #{tpu_custom_call.1} parent=11 // pred_region
          _
        $region52: #{tpu_custom_call.1} parent=11 // pred_fallthru
          _
        // Predicated region
        $region53: #{tpu_custom_call.1} parent=11 // pred_check
          %p414 = pneg %p320
        $region54: #{tpu_custom_call.1} parent=11 // pred_check_branch
          %416 = sbr.rel (%p414) target = $region56
        $region55: #{tpu_custom_call.1} parent=11 // pred_region
          _
        $region56: #{tpu_custom_call.1} parent=11 // pred_fallthru
          _
        // Predicated region
        $region57: #{tpu_custom_call.1} parent=11 // pred_check
          %p417 = pneg %p341
        $region58: #{tpu_custom_call.1} parent=11 // pred_check_branch
          %419 = sbr.rel (%p417) target = $region60
        $region59: #{tpu_custom_call.1} parent=11 // pred_region
          _
        $region60: #{tpu_custom_call.1} parent=11 // pred_fallthru
          _
      $region12: #{tpu_custom_call.1} parent=5 // pred_fallthru
        _
      %p420 = scmp.lt.s32.totalorder %s23, 4
      // Predicated region
      $region61: #{tpu_custom_call.1} parent=5 // pred_check
        %p421 = pneg %p420
      $region62: #{tpu_custom_call.1} parent=5 // pred_check_branch
        %423 = sbr.rel (%p421) target = $region64
      $region63: #{tpu_custom_call.1} parent=5 // pred_region
        // Predicated region
        $region65: #{tpu_custom_call.1} parent=63 // pred_check
          %p424 = pneg %p57
        $region66: #{tpu_custom_call.1} parent=63 // pred_check_branch
          %426 = sbr.rel (%p424) target = $region68
        $region67: #{tpu_custom_call.1} parent=63 // pred_region
          %p427 = scmp.lt.s32.totalorder %s30, 1
          %s428 = scalar_select %p427, %s30, 1
          %p429 = scmp.lt.s32.totalorder %s31, 1
          %s430 = scalar_select %p429, %s31, 1
          %s431 = smul.addr %s428, 2
          %s432 = sadd.s32 %s430, %s431
          %s433 = smul.addr %s432, 8
          %s434 = scalar_lea.vmem %s0, %s433
        $region68: #{tpu_custom_call.1} parent=63 // pred_fallthru
          _
        // Predicated region
        $region69: #{tpu_custom_call.1} parent=63 // pred_check
          %p435 = pneg %p83
        $region70: #{tpu_custom_call.1} parent=63 // pred_check_branch
          %437 = sbr.rel (%p435) target = $region72
        $region71: #{tpu_custom_call.1} parent=63 // pred_region
          %p438 = scmp.lt.s32.totalorder %s30, 1
          %s439 = scalar_select %p438, %s30, 1
          %s440 = smul.addr %s439, 2
          %s441 = smul.addr %s440, 8
          %s442 = scalar_lea.vmem %s1, %s441
        $region72: #{tpu_custom_call.1} parent=63 // pred_fallthru
          _
      $region64: #{tpu_custom_call.1} parent=5 // pred_fallthru
        _
      %p443 = scmp.le.s32.totalorder 1, %s23
      %p444 = scmp.lt.s32.totalorder %s23, 5
      %p445 = pnand %p443, %p444
      %p446 = pneg %p445
      // Predicated region
      $region73: #{tpu_custom_call.1} parent=5 // pred_check
        _
      $region74: #{tpu_custom_call.1} parent=5 // pred_check_branch
        %448 = sbr.rel (%p445) target = $region76
      $region75: #{tpu_custom_call.1} parent=5 // pred_region
        %s449 = ssub.s32 %s23, 1
        %p450 = scmp.lt.s32.totalorder %s32, 1
        %s451 = scalar_select %p450, %s32, 1
        %p452 = scmp.lt.s32.totalorder %s33, 1
        %s453 = scalar_select %p452, %s33, 1
        %s454 = smul.addr %s451, 2
        %s455 = sadd.s32 %s453, %s454
        %s456 = smul.addr %s455, 8
        %s457 = scalar_lea.vmem %s0, %s456
        %p458 = pneg %p63
        %p459 = pneg %p60
        %p460 = scmp.lt.s32.totalorder %s32, 1
        %s461 = scalar_select %p460, %s32, 1
        %s462 = smul.addr %s461, 2
        %s463 = smul.addr %s462, 8
        %s464 = scalar_lea.vmem %s1, %s463
        %p465 = pneg %p89
        %p466 = pneg %p86
        %p467 = pneg %p110
        %p468 = pneg %p107
        %p469 = pneg %p131
        %p470 = pneg %p128
        %p471 = pneg %p152
        %p472 = pneg %p149
        %p473 = pneg %p173
        %p474 = pneg %p170
        %p475 = pneg %p194
        %p476 = pneg %p191
        %p477 = pneg %p215
        %p478 = pneg %p212
        %p479 = pneg %p236
        %p480 = pneg %p233
        %p481 = pneg %p257
        %p482 = pneg %p254
        %p483 = pneg %p278
        %p484 = pneg %p275
        %p485 = pneg %p299
        %p486 = pneg %p296
        %p487 = pneg %p320
        %p488 = pneg %p317
        %p489 = pneg %p341
        %p490 = pneg %p338
        %p491 = pneg %p369
        %p492 = pneg %p366
        %s493 = sand.u32 %s356, 1
        %s494 = scalar_lea.sflag [#allocation3], %s493
        %s495 = sand.u32 %s356, 1
        %s496 = smul.addr %s495, 8
        %s497 = scalar_lea.vmem [#allocation2], %s496
        %p498 = scmp.lt.s32.totalorder %s32, 1
        %s499 = scalar_select %p498, %s32, 1
        %p500 = scmp.lt.s32.totalorder %s33, 1
        %s501 = scalar_select %p500, %s33, 1
        %s502 = smul.addr %s499, 2
        %s503 = sadd.s32 %s501, %s502
        %s504 = smul.addr %s503, 8
        %s505 = scalar_lea.vmem %s0, %s504
        %p506 = scmp.lt.s32.totalorder %s32, 1
        %s507 = scalar_select %p506, %s32, 1
        %s508 = smul.addr %s507, 2
        %s509 = smul.addr %s508, 8
        %s510 = scalar_lea.vmem %s1, %s509
        %v511 = vld [vmem:[%s505] sm:$0xff]
        %v512 = vld [vmem:[%s510] sm:$0xff]
        %v513 = vld [vmem:[%s510 + $0x8] sm:$0xff]
        %v514 = vld [vmem:[%s2] sm:$0xff]
        %v515 = vld [vmem:[%s2 + $0x8] sm:$0xff]
        %v516 = vld [vmem:[%s2 + $0x10] sm:$0xff]
        %v517 = vld [vmem:[%s2 + $0x18] sm:$0xff]
        %vm518 = vcmask 261120
        %v520 = vsel %vm518, %v511, 0
        %522 = vmatprep.subr.mxu0 0.0
        %523 = vmatpush1.msra.mxu0 0.0
        %524 = vmatprep.subr.mxu0 0.0
        %525 = vmatpush1.msra.mxu0 0.0
        %526 = vmatprep.subr.mxu0 0.0
        %527 = vmatpush1.msra.mxu0 0.0
        %528 = vmatprep.subr.mxu0 0.0
        %529 = vmatpush1.msra.mxu0 0.0
        %530 = vmatprep.subr.mxu0 0.0
        %531 = vmatpush1.msra.mxu0 0.0
        %532 = vmatprep.subr.mxu0 0.0
        %533 = vmatpush1.msra.mxu0 0.0
        %534 = vmatprep.subr.mxu0 0.0
        %535 = vmatpush1.msra.mxu0 0.0
        %536 = vmatprep.subr.mxu0 0.0
        %537 = vmatpush1.msra.mxu0 0.0
        %538 = vmatprep.subr.mxu0 0.0
        %539 = vmatpush1.msra.mxu0 0.0
        %540 = vmatprep.subr.mxu0 0.0
        %541 = vmatpush1.msra.mxu0 0.0
        %542 = vmatprep.subr.mxu0 0.0
        %543 = vmatpush1.msra.mxu0 0.0
        %544 = vmatprep.subr.mxu0 0.0
        %545 = vmatpush1.msra.mxu0 0.0
        %546 = vmatprep.subr.mxu0 0.0
        %547 = vmatpush1.msra.mxu0 %v517
        %548 = vmatprep.subr.mxu0 0.0
        %549 = vmatpush1.msra.mxu0 %v516
        %550 = vmatprep.subr.mxu0 0.0
        %551 = vmatpush1.msra.mxu0 %v515
        %552 = vmatprep.subr.mxu0 0.0
        %553 = vmatpush1.msra.mxu0 %v514
        %554 = vmatprep.subr.mxu0 0.0
        %555 = vmatpush2.msra.mxu0 0.0
        %556 = vmatprep.subr.mxu0 0.0
        %557 = vmatpush2.msra.mxu0 0.0
        %558 = vmatprep.subr.mxu0 0.0
        %559 = vmatpush2.msra.mxu0 0.0
        %560 = vmatprep.subr.mxu0 0.0
        %561 = vmatpush2.msra.mxu0 0.0
        %562 = vmatprep.subr.mxu0 0.0
        %563 = vmatpush2.msra.mxu0 0.0
        %564 = vmatprep.subr.mxu0 0.0
        %565 = vmatpush2.msra.mxu0 0.0
        %566 = vmatprep.subr.mxu0 0.0
        %567 = vmatpush2.msra.mxu0 0.0
        %568 = vmatprep.subr.mxu0 0.0
        %569 = vmatpush2.msra.mxu0 0.0
        %570 = vmatprep.subr.mxu0 0.0
        %571 = vmatpush2.msra.mxu0 0.0
        %572 = vmatprep.subr.mxu0 0.0
        %573 = vmatpush2.msra.mxu0 0.0
        %574 = vmatprep.subr.mxu0 0.0
        %575 = vmatpush2.msra.mxu0 0.0
        %576 = vmatprep.subr.mxu0 0.0
        %577 = vmatpush2.msra.mxu0 0.0
        %578 = vmatprep.subr.mxu0 0.0
        %579 = vmatpush2.msra.mxu0 0.0
        %580 = vmatprep.subr.mxu0 0.0
        %581 = vmatpush2.msra.mxu0 0.0
        %582 = vmatprep.subr.mxu0 0.0
        %583 = vmatpush2.msra.mxu0 0.0
        %584 = vmatprep.subr.mxu0 0.0
        %585 = vmatpush2.msra.mxu0 0.0
        %586 = vmatprep.mubr.f32.mxu0 0.0
        %587 = vmatmul.mubr.f32.gmra.mxu0 %v520
        %v588 = vpop.f32.mrf.mxu0
        %v589 = vadd.f32 0.0, %v588
        %v590 = vpop.f32.mrf.mxu0
        %591 = vdwg.mxu0
        %v592 = vld [vmem:[%s3] sm:$0xff]
        %v593 = vld [vmem:[%s3 + $0x8] sm:$0xff]
        %v594 = vld [vmem:[%s3 + $0x10] sm:$0xff]
        %v595 = vld [vmem:[%s3 + $0x18] sm:$0xff]
        %v597 = vsel %vm518, %v512, 0
        %v600 = vsel %vm518, %v513, 0
        %602 = vmatprep.subr.mxu0 0.0
        %603 = vmatpush1.msra.mxu0 0.0
        %604 = vmatprep.subr.mxu0 0.0
        %605 = vmatpush1.msra.mxu0 0.0
        %606 = vmatprep.subr.mxu0 0.0
        %607 = vmatpush1.msra.mxu0 0.0
        %608 = vmatprep.subr.mxu0 0.0
        %609 = vmatpush1.msra.mxu0 0.0
        %610 = vmatprep.subr.mxu0 0.0
        %611 = vmatpush1.msra.mxu0 0.0
        %612 = vmatprep.subr.mxu0 0.0
        %613 = vmatpush1.msra.mxu0 0.0
        %614 = vmatprep.subr.mxu0 0.0
        %615 = vmatpush1.msra.mxu0 0.0
        %616 = vmatprep.subr.mxu0 0.0
        %617 = vmatpush1.msra.mxu0 0.0
        %618 = vmatprep.subr.mxu0 0.0
        %619 = vmatpush1.msra.mxu0 0.0
        %620 = vmatprep.subr.mxu0 0.0
        %621 = vmatpush1.msra.mxu0 0.0
        %622 = vmatprep.subr.mxu0 0.0
        %623 = vmatpush1.msra.mxu0 0.0
        %624 = vmatprep.subr.mxu0 0.0
        %625 = vmatpush1.msra.mxu0 0.0
        %626 = vmatprep.subr.mxu0 0.0
        %627 = vmatpush1.msra.mxu0 %v595
        %628 = vmatprep.subr.mxu0 0.0
        %629 = vmatpush1.msra.mxu0 %v594
        %630 = vmatprep.subr.mxu0 0.0
        %631 = vmatpush1.msra.mxu0 %v593
        %632 = vmatprep.subr.mxu0 0.0
        %633 = vmatpush1.msra.mxu0 %v592
        %634 = vmatprep.subr.mxu0 0.0
        %635 = vmatpush2.msra.mxu0 0.0
        %636 = vmatprep.subr.mxu0 0.0
        %637 = vmatpush2.msra.mxu0 0.0
        %638 = vmatprep.subr.mxu0 0.0
        %639 = vmatpush2.msra.mxu0 0.0
        %640 = vmatprep.subr.mxu0 0.0
        %641 = vmatpush2.msra.mxu0 0.0
        %642 = vmatprep.subr.mxu0 0.0
        %643 = vmatpush2.msra.mxu0 0.0
        %644 = vmatprep.subr.mxu0 0.0
        %645 = vmatpush2.msra.mxu0 0.0
        %646 = vmatprep.subr.mxu0 0.0
        %647 = vmatpush2.msra.mxu0 0.0
        %648 = vmatprep.subr.mxu0 0.0
        %649 = vmatpush2.msra.mxu0 0.0
        %650 = vmatprep.subr.mxu0 0.0
        %651 = vmatpush2.msra.mxu0 0.0
        %652 = vmatprep.subr.mxu0 0.0
        %653 = vmatpush2.msra.mxu0 0.0
        %654 = vmatprep.subr.mxu0 0.0
        %655 = vmatpush2.msra.mxu0 0.0
        %656 = vmatprep.subr.mxu0 0.0
        %657 = vmatpush2.msra.mxu0 0.0
        %658 = vmatprep.subr.mxu0 0.0
        %659 = vmatpush2.msra.mxu0 0.0
        %660 = vmatprep.subr.mxu0 0.0
        %661 = vmatpush2.msra.mxu0 0.0
        %662 = vmatprep.subr.mxu0 0.0
        %663 = vmatpush2.msra.mxu0 0.0
        %664 = vmatprep.subr.mxu0 0.0
        %665 = vmatpush2.msra.mxu0 0.0
        %666 = vmatprep.mubr.f32.mxu0 0.0
        %667 = vmatmul.mubr.f32.gmra.mxu0 %v597
        %v668 = vpop.f32.mrf.mxu0
        %v669 = vadd.f32 0.0, %v668
        %v670 = vpop.f32.mrf.mxu0
        %671 = vmatprep.mubr.f32.mxu0 0.0
        %672 = vmatmul.mubr.f32.gmra.mxu0 %v600
        %v673 = vpop.f32.mrf.mxu0
        %v674 = vadd.f32 0.0, %v673
        %v675 = vpop.f32.mrf.mxu0
        %676 = vdwg.mxu0
        %v677 = vld [vmem:[%s4] sm:$0xff]
        %v678 = vld [vmem:[%s4 + $0x8] sm:$0xff]
        %v679 = vld [vmem:[%s4 + $0x10] sm:$0xff]
        %v680 = vld [vmem:[%s4 + $0x18] sm:$0xff]
        %681 = vmatprep.subr.mxu0 0.0
        %682 = vmatpush1.msra.mxu0 0.0
        %683 = vmatprep.subr.mxu0 0.0
        %684 = vmatpush1.msra.mxu0 0.0
        %685 = vmatprep.subr.mxu0 0.0
        %686 = vmatpush1.msra.mxu0 0.0
        %687 = vmatprep.subr.mxu0 0.0
        %688 = vmatpush1.msra.mxu0 0.0
        %689 = vmatprep.subr.mxu0 0.0
        %690 = vmatpush1.msra.mxu0 0.0
        %691 = vmatprep.subr.mxu0 0.0
        %692 = vmatpush1.msra.mxu0 0.0
        %693 = vmatprep.subr.mxu0 0.0
        %694 = vmatpush1.msra.mxu0 0.0
        %695 = vmatprep.subr.mxu0 0.0
        %696 = vmatpush1.msra.mxu0 0.0
        %697 = vmatprep.subr.mxu0 0.0
        %698 = vmatpush1.msra.mxu0 0.0
        %699 = vmatprep.subr.mxu0 0.0
        %700 = vmatpush1.msra.mxu0 0.0
        %701 = vmatprep.subr.mxu0 0.0
        %702 = vmatpush1.msra.mxu0 0.0
        %703 = vmatprep.subr.mxu0 0.0
        %704 = vmatpush1.msra.mxu0 0.0
        %705 = vmatprep.subr.mxu0 0.0
        %706 = vmatpush1.msra.mxu0 %v680
        %707 = vmatprep.subr.mxu0 0.0
        %708 = vmatpush1.msra.mxu0 %v679
        %709 = vmatprep.subr.mxu0 0.0
        %710 = vmatpush1.msra.mxu0 %v678
        %711 = vmatprep.subr.mxu0 0.0
        %712 = vmatpush1.msra.mxu0 %v677
        %713 = vmatprep.subr.mxu0 0.0
        %714 = vmatpush2.msra.mxu0 0.0
        %715 = vmatprep.subr.mxu0 0.0
        %716 = vmatpush2.msra.mxu0 0.0
        %717 = vmatprep.subr.mxu0 0.0
        %718 = vmatpush2.msra.mxu0 0.0
        %719 = vmatprep.subr.mxu0 0.0
        %720 = vmatpush2.msra.mxu0 0.0
        %721 = vmatprep.subr.mxu0 0.0
        %722 = vmatpush2.msra.mxu0 0.0
        %723 = vmatprep.subr.mxu0 0.0
        %724 = vmatpush2.msra.mxu0 0.0
        %725 = vmatprep.subr.mxu0 0.0
        %726 = vmatpush2.msra.mxu0 0.0
        %727 = vmatprep.subr.mxu0 0.0
        %728 = vmatpush2.msra.mxu0 0.0
        %729 = vmatprep.subr.mxu0 0.0
        %730 = vmatpush2.msra.mxu0 0.0
        %731 = vmatprep.subr.mxu0 0.0
        %732 = vmatpush2.msra.mxu0 0.0
        %733 = vmatprep.subr.mxu0 0.0
        %734 = vmatpush2.msra.mxu0 0.0
        %735 = vmatprep.subr.mxu0 0.0
        %736 = vmatpush2.msra.mxu0 0.0
        %737 = vmatprep.subr.mxu0 0.0
        %738 = vmatpush2.msra.mxu0 0.0
        %739 = vmatprep.subr.mxu0 0.0
        %740 = vmatpush2.msra.mxu0 0.0
        %741 = vmatprep.subr.mxu0 0.0
        %742 = vmatpush2.msra.mxu0 0.0
        %743 = vmatprep.subr.mxu0 0.0
        %744 = vmatpush2.msra.mxu0 0.0
        %745 = vmatprep.mubr.f32.mxu0 0.0
        %746 = vmatmul.mubr.f32.gmra.mxu0 %v597
        %v747 = vpop.f32.mrf.mxu0
        %v748 = vadd.f32 0.0, %v747
        %v749 = vpop.f32.mrf.mxu0
        %750 = vmatprep.mubr.f32.mxu0 0.0
        %751 = vmatmul.mubr.f32.gmra.mxu0 %v600
        %v752 = vpop.f32.mrf.mxu0
        %v753 = vadd.f32 0.0, %v752
        %v754 = vpop.f32.mrf.mxu0
        %755 = vdwg.mxu0
        %vm756 = vcmask 31744
        %v758 = vsel %vm756, %v589, 0
        %v761 = vsel %vm756, %v669, 0
        %v764 = vsel %vm756, %v674, 0
        %766 = vmatprep.subr.mxu0 0.0
        %767 = vmatpush1.xpose.msra.mxu0 0.0
        %768 = vmatprep.subr.mxu0 0.0
        %769 = vmatpush1.xpose.msra.mxu0 0.0
        %770 = vmatprep.subr.mxu0 0.0
        %771 = vmatpush1.xpose.msra.mxu0 0.0
        %772 = vmatprep.subr.mxu0 0.0
        %773 = vmatpush1.xpose.msra.mxu0 0.0
        %774 = vmatprep.subr.mxu0 0.0
        %775 = vmatpush1.xpose.msra.mxu0 0.0
        %776 = vmatprep.subr.mxu0 0.0
        %777 = vmatpush1.xpose.msra.mxu0 0.0
        %778 = vmatprep.subr.mxu0 0.0
        %779 = vmatpush1.xpose.msra.mxu0 0.0
        %780 = vmatprep.subr.mxu0 0.0
        %781 = vmatpush1.xpose.msra.mxu0 0.0
        %782 = vmatprep.subr.mxu0 0.0
        %783 = vmatpush1.xpose.msra.mxu0 0.0
        %784 = vmatprep.subr.mxu0 0.0
        %785 = vmatpush1.xpose.msra.mxu0 0.0
        %786 = vmatprep.subr.mxu0 0.0
        %787 = vmatpush1.xpose.msra.mxu0 0.0
        %788 = vmatprep.subr.mxu0 0.0
        %789 = vmatpush1.xpose.msra.mxu0 0.0
        %790 = vmatprep.subr.mxu0 0.0
        %791 = vmatpush1.xpose.msra.mxu0 0.0
        %792 = vmatprep.subr.mxu0 0.0
        %793 = vmatpush1.xpose.msra.mxu0 0.0
        %794 = vmatprep.subr.mxu0 0.0
        %795 = vmatpush1.xpose.msra.mxu0 %v764
        %796 = vmatprep.subr.mxu0 0.0
        %797 = vmatpush1.xpose.msra.mxu0 %v761
        %798 = vmatprep.subr.mxu0 0.0
        %799 = vmatpush2.xpose.msra.mxu0 0.0
        %800 = vmatprep.subr.mxu0 0.0
        %801 = vmatpush2.xpose.msra.mxu0 0.0
        %802 = vmatprep.subr.mxu0 0.0
        %803 = vmatpush2.xpose.msra.mxu0 0.0
        %804 = vmatprep.subr.mxu0 0.0
        %805 = vmatpush2.xpose.msra.mxu0 0.0
        %806 = vmatprep.subr.mxu0 0.0
        %807 = vmatpush2.xpose.msra.mxu0 0.0
        %808 = vmatprep.subr.mxu0 0.0
        %809 = vmatpush2.xpose.msra.mxu0 0.0
        %810 = vmatprep.subr.mxu0 0.0
        %811 = vmatpush2.xpose.msra.mxu0 0.0
        %812 = vmatprep.subr.mxu0 0.0
        %813 = vmatpush2.xpose.msra.mxu0 0.0
        %814 = vmatprep.subr.mxu0 0.0
        %815 = vmatpush2.xpose.msra.mxu0 0.0
        %816 = vmatprep.subr.mxu0 0.0
        %817 = vmatpush2.xpose.msra.mxu0 0.0
        %818 = vmatprep.subr.mxu0 0.0
        %819 = vmatpush2.xpose.msra.mxu0 0.0
        %820 = vmatprep.subr.mxu0 0.0
        %821 = vmatpush2.xpose.msra.mxu0 0.0
        %822 = vmatprep.subr.mxu0 0.0
        %823 = vmatpush2.xpose.msra.mxu0 0.0
        %824 = vmatprep.subr.mxu0 0.0
        %825 = vmatpush2.xpose.msra.mxu0 0.0
        %826 = vmatprep.subr.mxu0 0.0
        %827 = vmatpush2.xpose.msra.mxu0 0.0
        %828 = vmatprep.subr.mxu0 0.0
        %829 = vmatpush2.xpose.msra.mxu0 0.0
        %830 = vmatprep.mubr.f32.mxu0 0.0
        %831 = vmatmul.mubr.f32.gmra.mxu0 %v758
        %v832 = vpop.f32.mrf.mxu0
        %v833 = vadd.f32 0.0, %v832
        %v834 = vpop.f32.mrf.mxu0
        %835 = vdwg.mxu0
        %vm836 = vcmask 130048
        %v837 = vsel %vm836, %v833, -inf
        %838 = vmax.xlane.f32.xlu0 %v837
        %v839 = vpop.xlane.xlu0 %838
        %v840 = vsub.f32 %v833, %v839
        %v841 = vmul.f32 %v840, 1.442695
        %v842 = vpow.pop %v841
        %v843 = vsel %vm836, %v842, 0.0
        %844 = vadd.xlane.f32.xlu0 %v843
        %v845 = vpop.xlane.xlu0 %844
        %v846 = vrcp.pop %v845
        %v847 = vmul.f32 %v842, %v846
        %v849 = vsel %vm836, %v847, 0
        %851 = vmatprep.subr.mxu0 0.0
        %852 = vmatpush1.msra.mxu0 0.0
        %853 = vmatprep.subr.mxu0 0.0
        %854 = vmatpush1.msra.mxu0 0.0
        %855 = vmatprep.subr.mxu0 0.0
        %856 = vmatpush1.msra.mxu0 0.0
        %857 = vmatprep.subr.mxu0 0.0
        %858 = vmatpush1.msra.mxu0 0.0
        %859 = vmatprep.subr.mxu0 0.0
        %860 = vmatpush1.msra.mxu0 0.0
        %861 = vmatprep.subr.mxu0 0.0
        %862 = vmatpush1.msra.mxu0 0.0
        %863 = vmatprep.subr.mxu0 0.0
        %864 = vmatpush1.msra.mxu0 0.0
        %865 = vmatprep.subr.mxu0 0.0
        %866 = vmatpush1.msra.mxu0 0.0
        %867 = vmatprep.subr.mxu0 0.0
        %868 = vmatpush1.msra.mxu0 0.0
        %869 = vmatprep.subr.mxu0 0.0
        %870 = vmatpush1.msra.mxu0 0.0
        %871 = vmatprep.subr.mxu0 0.0
        %872 = vmatpush1.msra.mxu0 0.0
        %873 = vmatprep.subr.mxu0 0.0
        %874 = vmatpush1.msra.mxu0 0.0
        %875 = vmatprep.subr.mxu0 0.0
        %876 = vmatpush1.msra.mxu0 0.0
        %877 = vmatprep.subr.mxu0 0.0
        %878 = vmatpush1.msra.mxu0 0.0
        %879 = vmatprep.subr.mxu0 0.0
        %880 = vmatpush1.msra.mxu0 %v753
        %881 = vmatprep.subr.mxu0 0.0
        %882 = vmatpush1.msra.mxu0 %v748
        %883 = vmatprep.subr.mxu0 0.0
        %884 = vmatpush2.msra.mxu0 0.0
        %885 = vmatprep.subr.mxu0 0.0
        %886 = vmatpush2.msra.mxu0 0.0
        %887 = vmatprep.subr.mxu0 0.0
        %888 = vmatpush2.msra.mxu0 0.0
        %889 = vmatprep.subr.mxu0 0.0
        %890 = vmatpush2.msra.mxu0 0.0
        %891 = vmatprep.subr.mxu0 0.0
        %892 = vmatpush2.msra.mxu0 0.0
        %893 = vmatprep.subr.mxu0 0.0
        %894 = vmatpush2.msra.mxu0 0.0
        %895 = vmatprep.subr.mxu0 0.0
        %896 = vmatpush2.msra.mxu0 0.0
        %897 = vmatprep.subr.mxu0 0.0
        %898 = vmatpush2.msra.mxu0 0.0
        %899 = vmatprep.subr.mxu0 0.0
        %900 = vmatpush2.msra.mxu0 0.0
        %901 = vmatprep.subr.mxu0 0.0
        %902 = vmatpush2.msra.mxu0 0.0
        %903 = vmatprep.subr.mxu0 0.0
        %904 = vmatpush2.msra.mxu0 0.0
        %905 = vmatprep.subr.mxu0 0.0
        %906 = vmatpush2.msra.mxu0 0.0
        %907 = vmatprep.subr.mxu0 0.0
        %908 = vmatpush2.msra.mxu0 0.0
        %909 = vmatprep.subr.mxu0 0.0
        %910 = vmatpush2.msra.mxu0 0.0
        %911 = vmatprep.subr.mxu0 0.0
        %912 = vmatpush2.msra.mxu0 0.0
        %913 = vmatprep.subr.mxu0 0.0
        %914 = vmatpush2.msra.mxu0 0.0
        %915 = vmatprep.mubr.f32.mxu0 0.0
        %916 = vmatmul.mubr.f32.gmra.mxu0 %v849
        %v917 = vpop.f32.mrf.mxu0
        %v918 = vadd.f32 0.0, %v917
        %v919 = vpop.f32.mrf.mxu0
        %920 = vdwg.mxu0
        %v921 = vld [vmem:[%s5] sm:$0xf]
        %s922 = scalar_lea.vmem %s2, 32
        %v923 = vld [vmem:[%s922] sm:$0xff]
        %v924 = vld [vmem:[%s922 + $0x8] sm:$0xff]
        %v925 = vld [vmem:[%s922 + $0x10] sm:$0xff]
        %v926 = vld [vmem:[%s922 + $0x18] sm:$0xff]
        %927 = vmatprep.subr.mxu0 0.0
        %928 = vmatpush1.msra.mxu0 0.0
        %929 = vmatprep.subr.mxu0 0.0
        %930 = vmatpush1.msra.mxu0 0.0
        %931 = vmatprep.subr.mxu0 0.0
        %932 = vmatpush1.msra.mxu0 0.0
        %933 = vmatprep.subr.mxu0 0.0
        %934 = vmatpush1.msra.mxu0 0.0
        %935 = vmatprep.subr.mxu0 0.0
        %936 = vmatpush1.msra.mxu0 0.0
        %937 = vmatprep.subr.mxu0 0.0
        %938 = vmatpush1.msra.mxu0 0.0
        %939 = vmatprep.subr.mxu0 0.0
        %940 = vmatpush1.msra.mxu0 0.0
        %941 = vmatprep.subr.mxu0 0.0
        %942 = vmatpush1.msra.mxu0 0.0
        %943 = vmatprep.subr.mxu0 0.0
        %944 = vmatpush1.msra.mxu0 0.0
        %945 = vmatprep.subr.mxu0 0.0
        %946 = vmatpush1.msra.mxu0 0.0
        %947 = vmatprep.subr.mxu0 0.0
        %948 = vmatpush1.msra.mxu0 0.0
        %949 = vmatprep.subr.mxu0 0.0
        %950 = vmatpush1.msra.mxu0 0.0
        %951 = vmatprep.subr.mxu0 0.0
        %952 = vmatpush1.msra.mxu0 %v926
        %953 = vmatprep.subr.mxu0 0.0
        %954 = vmatpush1.msra.mxu0 %v925
        %955 = vmatprep.subr.mxu0 0.0
        %956 = vmatpush1.msra.mxu0 %v924
        %957 = vmatprep.subr.mxu0 0.0
        %958 = vmatpush1.msra.mxu0 %v923
        %959 = vmatprep.subr.mxu0 0.0
        %960 = vmatpush2.msra.mxu0 0.0
        %961 = vmatprep.subr.mxu0 0.0
        %962 = vmatpush2.msra.mxu0 0.0
        %963 = vmatprep.subr.mxu0 0.0
        %964 = vmatpush2.msra.mxu0 0.0
        %965 = vmatprep.subr.mxu0 0.0
        %966 = vmatpush2.msra.mxu0 0.0
        %967 = vmatprep.subr.mxu0 0.0
        %968 = vmatpush2.msra.mxu0 0.0
        %969 = vmatprep.subr.mxu0 0.0
        %970 = vmatpush2.msra.mxu0 0.0
        %971 = vmatprep.subr.mxu0 0.0
        %972 = vmatpush2.msra.mxu0 0.0
        %973 = vmatprep.subr.mxu0 0.0
        %974 = vmatpush2.msra.mxu0 0.0
        %975 = vmatprep.subr.mxu0 0.0
        %976 = vmatpush2.msra.mxu0 0.0
        %977 = vmatprep.subr.mxu0 0.0
        %978 = vmatpush2.msra.mxu0 0.0
        %979 = vmatprep.subr.mxu0 0.0
        %980 = vmatpush2.msra.mxu0 0.0
        %981 = vmatprep.subr.mxu0 0.0
        %982 = vmatpush2.msra.mxu0 0.0
        %983 = vmatprep.subr.mxu0 0.0
        %984 = vmatpush2.msra.mxu0 0.0
        %985 = vmatprep.subr.mxu0 0.0
        %986 = vmatpush2.msra.mxu0 0.0
        %987 = vmatprep.subr.mxu0 0.0
        %988 = vmatpush2.msra.mxu0 0.0
        %989 = vmatprep.subr.mxu0 0.0
        %990 = vmatpush2.msra.mxu0 0.0
        %991 = vmatprep.mubr.f32.mxu0 0.0
        %992 = vmatmul.mubr.f32.gmra.mxu0 %v520
        %v993 = vpop.f32.mrf.mxu0
        %v994 = vadd.f32 0.0, %v993
        %v995 = vpop.f32.mrf.mxu0
        %996 = vdwg.mxu0
        %s997 = scalar_lea.vmem %s3, 32
        %v998 = vld [vmem:[%s997] sm:$0xff]
        %v999 = vld [vmem:[%s997 + $0x8] sm:$0xff]
        %v1000 = vld [vmem:[%s997 + $0x10] sm:$0xff]
        %v1001 = vld [vmem:[%s997 + $0x18] sm:$0xff]
        %1002 = vmatprep.subr.mxu0 0.0
        %1003 = vmatpush1.msra.mxu0 0.0
        %1004 = vmatprep.subr.mxu0 0.0
        %1005 = vmatpush1.msra.mxu0 0.0
        %1006 = vmatprep.subr.mxu0 0.0
        %1007 = vmatpush1.msra.mxu0 0.0
        %1008 = vmatprep.subr.mxu0 0.0
        %1009 = vmatpush1.msra.mxu0 0.0
        %1010 = vmatprep.subr.mxu0 0.0
        %1011 = vmatpush1.msra.mxu0 0.0
        %1012 = vmatprep.subr.mxu0 0.0
        %1013 = vmatpush1.msra.mxu0 0.0
        %1014 = vmatprep.subr.mxu0 0.0
        %1015 = vmatpush1.msra.mxu0 0.0
        %1016 = vmatprep.subr.mxu0 0.0
        %1017 = vmatpush1.msra.mxu0 0.0
        %1018 = vmatprep.subr.mxu0 0.0
        %1019 = vmatpush1.msra.mxu0 0.0
        %1020 = vmatprep.subr.mxu0 0.0
        %1021 = vmatpush1.msra.mxu0 0.0
        %1022 = vmatprep.subr.mxu0 0.0
        %1023 = vmatpush1.msra.mxu0 0.0
        %1024 = vmatprep.subr.mxu0 0.0
        %1025 = vmatpush1.msra.mxu0 0.0
        %1026 = vmatprep.subr.mxu0 0.0
        %1027 = vmatpush1.msra.mxu0 %v1001
        %1028 = vmatprep.subr.mxu0 0.0
        %1029 = vmatpush1.msra.mxu0 %v1000
        %1030 = vmatprep.subr.mxu0 0.0
        %1031 = vmatpush1.msra.mxu0 %v999
        %1032 = vmatprep.subr.mxu0 0.0
        %1033 = vmatpush1.msra.mxu0 %v998
        %1034 = vmatprep.subr.mxu0 0.0
        %1035 = vmatpush2.msra.mxu0 0.0
        %1036 = vmatprep.subr.mxu0 0.0
        %1037 = vmatpush2.msra.mxu0 0.0
        %1038 = vmatprep.subr.mxu0 0.0
        %1039 = vmatpush2.msra.mxu0 0.0
        %1040 = vmatprep.subr.mxu0 0.0
        %1041 = vmatpush2.msra.mxu0 0.0
        %1042 = vmatprep.subr.mxu0 0.0
        %1043 = vmatpush2.msra.mxu0 0.0
        %1044 = vmatprep.subr.mxu0 0.0
        %1045 = vmatpush2.msra.mxu0 0.0
        %1046 = vmatprep.subr.mxu0 0.0
        %1047 = vmatpush2.msra.mxu0 0.0
        %1048 = vmatprep.subr.mxu0 0.0
        %1049 = vmatpush2.msra.mxu0 0.0
        %1050 = vmatprep.subr.mxu0 0.0
        %1051 = vmatpush2.msra.mxu0 0.0
        %1052 = vmatprep.subr.mxu0 0.0
        %1053 = vmatpush2.msra.mxu0 0.0
        %1054 = vmatprep.subr.mxu0 0.0
        %1055 = vmatpush2.msra.mxu0 0.0
        %1056 = vmatprep.subr.mxu0 0.0
        %1057 = vmatpush2.msra.mxu0 0.0
        %1058 = vmatprep.subr.mxu0 0.0
        %1059 = vmatpush2.msra.mxu0 0.0
        %1060 = vmatprep.subr.mxu0 0.0
        %1061 = vmatpush2.msra.mxu0 0.0
        %1062 = vmatprep.subr.mxu0 0.0
        %1063 = vmatpush2.msra.mxu0 0.0
        %1064 = vmatprep.subr.mxu0 0.0
        %1065 = vmatpush2.msra.mxu0 0.0
        %1066 = vmatprep.mubr.f32.mxu0 0.0
        %1067 = vmatmul.mubr.f32.gmra.mxu0 %v597
        %v1068 = vpop.f32.mrf.mxu0
        %v1069 = vadd.f32 0.0, %v1068
        %v1070 = vpop.f32.mrf.mxu0
        %1071 = vmatprep.mubr.f32.mxu0 0.0
        %1072 = vmatmul.mubr.f32.gmra.mxu0 %v600
        %v1073 = vpop.f32.mrf.mxu0
        %v1074 = vadd.f32 0.0, %v1073
        %v1075 = vpop.f32.mrf.mxu0
        %1076 = vdwg.mxu0
        %s1077 = scalar_lea.vmem %s4, 32
        %v1078 = vld [vmem:[%s1077] sm:$0xff]
        %v1079 = vld [vmem:[%s1077 + $0x8] sm:$0xff]
        %v1080 = vld [vmem:[%s1077 + $0x10] sm:$0xff]
        %v1081 = vld [vmem:[%s1077 + $0x18] sm:$0xff]
        %1082 = vmatprep.subr.mxu0 0.0
        %1083 = vmatpush1.msra.mxu0 0.0
        %1084 = vmatprep.subr.mxu0 0.0
        %1085 = vmatpush1.msra.mxu0 0.0
        %1086 = vmatprep.subr.mxu0 0.0
        %1087 = vmatpush1.msra.mxu0 0.0
        %1088 = vmatprep.subr.mxu0 0.0
        %1089 = vmatpush1.msra.mxu0 0.0
        %1090 = vmatprep.subr.mxu0 0.0
        %1091 = vmatpush1.msra.mxu0 0.0
        %1092 = vmatprep.subr.mxu0 0.0
        %1093 = vmatpush1.msra.mxu0 0.0
        %1094 = vmatprep.subr.mxu0 0.0
        %1095 = vmatpush1.msra.mxu0 0.0
        %1096 = vmatprep.subr.mxu0 0.0
        %1097 = vmatpush1.msra.mxu0 0.0
        %1098 = vmatprep.subr.mxu0 0.0
        %1099 = vmatpush1.msra.mxu0 0.0
        %1100 = vmatprep.subr.mxu0 0.0
        %1101 = vmatpush1.msra.mxu0 0.0
        %1102 = vmatprep.subr.mxu0 0.0
        %1103 = vmatpush1.msra.mxu0 0.0
        %1104 = vmatprep.subr.mxu0 0.0
        %1105 = vmatpush1.msra.mxu0 0.0
        %1106 = vmatprep.subr.mxu0 0.0
        %1107 = vmatpush1.msra.mxu0 %v1081
        %1108 = vmatprep.subr.mxu0 0.0
        %1109 = vmatpush1.msra.mxu0 %v1080
        %1110 = vmatprep.subr.mxu0 0.0
        %1111 = vmatpush1.msra.mxu0 %v1079
        %1112 = vmatprep.subr.mxu0 0.0
        %1113 = vmatpush1.msra.mxu0 %v1078
        %1114 = vmatprep.subr.mxu0 0.0
        %1115 = vmatpush2.msra.mxu0 0.0
        %1116 = vmatprep.subr.mxu0 0.0
        %1117 = vmatpush2.msra.mxu0 0.0
        %1118 = vmatprep.subr.mxu0 0.0
        %1119 = vmatpush2.msra.mxu0 0.0
        %1120 = vmatprep.subr.mxu0 0.0
        %1121 = vmatpush2.msra.mxu0 0.0
        %1122 = vmatprep.subr.mxu0 0.0
        %1123 = vmatpush2.msra.mxu0 0.0
        %1124 = vmatprep.subr.mxu0 0.0
        %1125 = vmatpush2.msra.mxu0 0.0
        %1126 = vmatprep.subr.mxu0 0.0
        %1127 = vmatpush2.msra.mxu0 0.0
        %1128 = vmatprep.subr.mxu0 0.0
        %1129 = vmatpush2.msra.mxu0 0.0
        %1130 = vmatprep.subr.mxu0 0.0
        %1131 = vmatpush2.msra.mxu0 0.0
        %1132 = vmatprep.subr.mxu0 0.0
        %1133 = vmatpush2.msra.mxu0 0.0
        %1134 = vmatprep.subr.mxu0 0.0
        %1135 = vmatpush2.msra.mxu0 0.0
        %1136 = vmatprep.subr.mxu0 0.0
        %1137 = vmatpush2.msra.mxu0 0.0
        %1138 = vmatprep.subr.mxu0 0.0
        %1139 = vmatpush2.msra.mxu0 0.0
        %1140 = vmatprep.subr.mxu0 0.0
        %1141 = vmatpush2.msra.mxu0 0.0
        %1142 = vmatprep.subr.mxu0 0.0
        %1143 = vmatpush2.msra.mxu0 0.0
        %1144 = vmatprep.subr.mxu0 0.0
        %1145 = vmatpush2.msra.mxu0 0.0
        %1146 = vmatprep.mubr.f32.mxu0 0.0
        %1147 = vmatmul.mubr.f32.gmra.mxu0 %v597
        %v1148 = vpop.f32.mrf.mxu0
        %v1149 = vadd.f32 0.0, %v1148
        %v1150 = vpop.f32.mrf.mxu0
        %1151 = vmatprep.mubr.f32.mxu0 0.0
        %1152 = vmatmul.mubr.f32.gmra.mxu0 %v600
        %v1153 = vpop.f32.mrf.mxu0
        %v1154 = vadd.f32 0.0, %v1153
        %v1155 = vpop.f32.mrf.mxu0
        %1156 = vdwg.mxu0
        %v1158 = vsel %vm756, %v994, 0
        %v1161 = vsel %vm756, %v1069, 0
        %v1164 = vsel %vm756, %v1074, 0
        %1166 = vmatprep.subr.mxu0 0.0
        %1167 = vmatpush1.xpose.msra.mxu0 0.0
        %1168 = vmatprep.subr.mxu0 0.0
        %1169 = vmatpush1.xpose.msra.mxu0 0.0
        %1170 = vmatprep.subr.mxu0 0.0
        %1171 = vmatpush1.xpose.msra.mxu0 0.0
        %1172 = vmatprep.subr.mxu0 0.0
        %1173 = vmatpush1.xpose.msra.mxu0 0.0
        %1174 = vmatprep.subr.mxu0 0.0
        %1175 = vmatpush1.xpose.msra.mxu0 0.0
        %1176 = vmatprep.subr.mxu0 0.0
        %1177 = vmatpush1.xpose.msra.mxu0 0.0
        %1178 = vmatprep.subr.mxu0 0.0
        %1179 = vmatpush1.xpose.msra.mxu0 0.0
        %1180 = vmatprep.subr.mxu0 0.0
        %1181 = vmatpush1.xpose.msra.mxu0 0.0
        %1182 = vmatprep.subr.mxu0 0.0
        %1183 = vmatpush1.xpose.msra.mxu0 0.0
        %1184 = vmatprep.subr.mxu0 0.0
        %1185 = vmatpush1.xpose.msra.mxu0 0.0
        %1186 = vmatprep.subr.mxu0 0.0
        %1187 = vmatpush1.xpose.msra.mxu0 0.0
        %1188 = vmatprep.subr.mxu0 0.0
        %1189 = vmatpush1.xpose.msra.mxu0 0.0
        %1190 = vmatprep.subr.mxu0 0.0
        %1191 = vmatpush1.xpose.msra.mxu0 0.0
        %1192 = vmatprep.subr.mxu0 0.0
        %1193 = vmatpush1.xpose.msra.mxu0 0.0
        %1194 = vmatprep.subr.mxu0 0.0
        %1195 = vmatpush1.xpose.msra.mxu0 %v1164
        %1196 = vmatprep.subr.mxu0 0.0
        %1197 = vmatpush1.xpose.msra.mxu0 %v1161
        %1198 = vmatprep.subr.mxu0 0.0
        %1199 = vmatpush2.xpose.msra.mxu0 0.0
        %1200 = vmatprep.subr.mxu0 0.0
        %1201 = vmatpush2.xpose.msra.mxu0 0.0
        %1202 = vmatprep.subr.mxu0 0.0
        %1203 = vmatpush2.xpose.msra.mxu0 0.0
        %1204 = vmatprep.subr.mxu0 0.0
        %1205 = vmatpush2.xpose.msra.mxu0 0.0
        %1206 = vmatprep.subr.mxu0 0.0
        %1207 = vmatpush2.xpose.msra.mxu0 0.0
        %1208 = vmatprep.subr.mxu0 0.0
        %1209 = vmatpush2.xpose.msra.mxu0 0.0
        %1210 = vmatprep.subr.mxu0 0.0
        %1211 = vmatpush2.xpose.msra.mxu0 0.0
        %1212 = vmatprep.subr.mxu0 0.0
        %1213 = vmatpush2.xpose.msra.mxu0 0.0
        %1214 = vmatprep.subr.mxu0 0.0
        %1215 = vmatpush2.xpose.msra.mxu0 0.0
        %1216 = vmatprep.subr.mxu0 0.0
        %1217 = vmatpush2.xpose.msra.mxu0 0.0
        %1218 = vmatprep.subr.mxu0 0.0
        %1219 = vmatpush2.xpose.msra.mxu0 0.0
        %1220 = vmatprep.subr.mxu0 0.0
        %1221 = vmatpush2.xpose.msra.mxu0 0.0
        %1222 = vmatprep.subr.mxu0 0.0
        %1223 = vmatpush2.xpose.msra.mxu0 0.0
        %1224 = vmatprep.subr.mxu0 0.0
        %1225 = vmatpush2.xpose.msra.mxu0 0.0
        %1226 = vmatprep.subr.mxu0 0.0
        %1227 = vmatpush2.xpose.msra.mxu0 0.0
        %1228 = vmatprep.subr.mxu0 0.0
        %1229 = vmatpush2.xpose.msra.mxu0 0.0
        %1230 = vmatprep.mubr.f32.mxu0 0.0
        %1231 = vmatmul.mubr.f32.gmra.mxu0 %v1158
        %v1232 = vpop.f32.mrf.mxu0
        %v1233 = vadd.f32 0.0, %v1232
        %v1234 = vpop.f32.mrf.mxu0
        %1235 = vdwg.mxu0
        %v1236 = vsel %vm836, %v1233, -inf
        %1237 = vmax.xlane.f32.xlu0 %v1236
        %v1238 = vpop.xlane.xlu0 %1237
        %v1239 = vsub.f32 %v1233, %v1238
        %v1240 = vmul.f32 %v1239, 1.442695
        %v1241 = vpow.pop %v1240
        %v1242 = vsel %vm836, %v1241, 0.0
        %1243 = vadd.xlane.f32.xlu0 %v1242
        %v1244 = vpop.xlane.xlu0 %1243
        %v1245 = vrcp.pop %v1244
        %v1246 = vmul.f32 %v1241, %v1245
        %v1248 = vsel %vm836, %v1246, 0
        %1250 = vmatprep.subr.mxu0 0.0
        %1251 = vmatpush1.msra.mxu0 0.0
        %1252 = vmatprep.subr.mxu0 0.0
        %1253 = vmatpush1.msra.mxu0 0.0
        %1254 = vmatprep.subr.mxu0 0.0
        %1255 = vmatpush1.msra.mxu0 0.0
        %1256 = vmatprep.subr.mxu0 0.0
        %1257 = vmatpush1.msra.mxu0 0.0
        %1258 = vmatprep.subr.mxu0 0.0
        %1259 = vmatpush1.msra.mxu0 0.0
        %1260 = vmatprep.subr.mxu0 0.0
        %1261 = vmatpush1.msra.mxu0 0.0
        %1262 = vmatprep.subr.mxu0 0.0
        %1263 = vmatpush1.msra.mxu0 0.0
        %1264 = vmatprep.subr.mxu0 0.0
        %1265 = vmatpush1.msra.mxu0 0.0
        %1266 = vmatprep.subr.mxu0 0.0
        %1267 = vmatpush1.msra.mxu0 0.0
        %1268 = vmatprep.subr.mxu0 0.0
        %1269 = vmatpush1.msra.mxu0 0.0
        %1270 = vmatprep.subr.mxu0 0.0
        %1271 = vmatpush1.msra.mxu0 0.0
        %1272 = vmatprep.subr.mxu0 0.0
        %1273 = vmatpush1.msra.mxu0 0.0
        %1274 = vmatprep.subr.mxu0 0.0
        %1275 = vmatpush1.msra.mxu0 0.0
        %1276 = vmatprep.subr.mxu0 0.0
        %1277 = vmatpush1.msra.mxu0 0.0
        %1278 = vmatprep.subr.mxu0 0.0
        %1279 = vmatpush1.msra.mxu0 %v1154
        %1280 = vmatprep.subr.mxu0 0.0
        %1281 = vmatpush1.msra.mxu0 %v1149
        %1282 = vmatprep.subr.mxu0 0.0
        %1283 = vmatpush2.msra.mxu0 0.0
        %1284 = vmatprep.subr.mxu0 0.0
        %1285 = vmatpush2.msra.mxu0 0.0
        %1286 = vmatprep.subr.mxu0 0.0
        %1287 = vmatpush2.msra.mxu0 0.0
        %1288 = vmatprep.subr.mxu0 0.0
        %1289 = vmatpush2.msra.mxu0 0.0
        %1290 = vmatprep.subr.mxu0 0.0
        %1291 = vmatpush2.msra.mxu0 0.0
        %1292 = vmatprep.subr.mxu0 0.0
        %1293 = vmatpush2.msra.mxu0 0.0
        %1294 = vmatprep.subr.mxu0 0.0
        %1295 = vmatpush2.msra.mxu0 0.0
        %1296 = vmatprep.subr.mxu0 0.0
        %1297 = vmatpush2.msra.mxu0 0.0
        %1298 = vmatprep.subr.mxu0 0.0
        %1299 = vmatpush2.msra.mxu0 0.0
        %1300 = vmatprep.subr.mxu0 0.0
        %1301 = vmatpush2.msra.mxu0 0.0
        %1302 = vmatprep.subr.mxu0 0.0
        %1303 = vmatpush2.msra.mxu0 0.0
        %1304 = vmatprep.subr.mxu0 0.0
        %1305 = vmatpush2.msra.mxu0 0.0
        %1306 = vmatprep.subr.mxu0 0.0
        %1307 = vmatpush2.msra.mxu0 0.0
        %1308 = vmatprep.subr.mxu0 0.0
        %1309 = vmatpush2.msra.mxu0 0.0
        %1310 = vmatprep.subr.mxu0 0.0
        %1311 = vmatpush2.msra.mxu0 0.0
        %1312 = vmatprep.subr.mxu0 0.0
        %1313 = vmatpush2.msra.mxu0 0.0
        %1314 = vmatprep.mubr.f32.mxu0 0.0
        %1315 = vmatmul.mubr.f32.gmra.mxu0 %v1248
        %v1316 = vpop.f32.mrf.mxu0
        %v1317 = vadd.f32 0.0, %v1316
        %v1318 = vpop.f32.mrf.mxu0
        %1319 = vdwg.mxu0
        %s1320 = scalar_lea.vmem %s5, 4
        %v1321 = vld [vmem:[%s1320] sm:$0xf]
        %v1323 = vsel %vm756, %v1317, 0
        %vm1325 = vcmask 1043456
        %v1327 = vsel %vm1325, %v1321, 0
        %1329 = vmatprep.subr.mxu0 0.0
        %1330 = vmatpush1.msra.mxu0 0.0
        %1331 = vmatprep.subr.mxu0 0.0
        %1332 = vmatpush1.msra.mxu0 0.0
        %1333 = vmatprep.subr.mxu0 0.0
        %1334 = vmatpush1.msra.mxu0 0.0
        %1335 = vmatprep.subr.mxu0 0.0
        %1336 = vmatpush1.msra.mxu0 0.0
        %1337 = vmatprep.subr.mxu0 0.0
        %1338 = vmatpush1.msra.mxu0 0.0
        %1339 = vmatprep.subr.mxu0 0.0
        %1340 = vmatpush1.msra.mxu0 0.0
        %1341 = vmatprep.subr.mxu0 0.0
        %1342 = vmatpush1.msra.mxu0 0.0
        %1343 = vmatprep.subr.mxu0 0.0
        %1344 = vmatpush1.msra.mxu0 0.0
        %1345 = vmatprep.subr.mxu0 0.0
        %1346 = vmatpush1.msra.mxu0 0.0
        %1347 = vmatprep.subr.mxu0 0.0
        %1348 = vmatpush1.msra.mxu0 0.0
        %1349 = vmatprep.subr.mxu0 0.0
        %1350 = vmatpush1.msra.mxu0 0.0
        %1351 = vmatprep.subr.mxu0 0.0
        %1352 = vmatpush1.msra.mxu0 0.0
        %1353 = vmatprep.subr.mxu0 0.0
        %1354 = vmatpush1.msra.mxu0 0.0
        %1355 = vmatprep.subr.mxu0 0.0
        %1356 = vmatpush1.msra.mxu0 0.0
        %1357 = vmatprep.subr.mxu0 0.0
        %1358 = vmatpush1.msra.mxu0 0.0
        %1359 = vmatprep.subr.mxu0 0.0
        %1360 = vmatpush1.msra.mxu0 %v1327
        %1361 = vmatprep.subr.mxu0 0.0
        %1362 = vmatpush2.msra.mxu0 0.0
        %1363 = vmatprep.subr.mxu0 0.0
        %1364 = vmatpush2.msra.mxu0 0.0
        %1365 = vmatprep.subr.mxu0 0.0
        %1366 = vmatpush2.msra.mxu0 0.0
        %1367 = vmatprep.subr.mxu0 0.0
        %1368 = vmatpush2.msra.mxu0 0.0
        %1369 = vmatprep.subr.mxu0 0.0
        %1370 = vmatpush2.msra.mxu0 0.0
        %1371 = vmatprep.subr.mxu0 0.0
        %1372 = vmatpush2.msra.mxu0 0.0
        %1373 = vmatprep.subr.mxu0 0.0
        %1374 = vmatpush2.msra.mxu0 0.0
        %1375 = vmatprep.subr.mxu0 0.0
        %1376 = vmatpush2.msra.mxu0 0.0
        %1377 = vmatprep.subr.mxu0 0.0
        %1378 = vmatpush2.msra.mxu0 0.0
        %1379 = vmatprep.subr.mxu0 0.0
        %1380 = vmatpush2.msra.mxu0 0.0
        %1381 = vmatprep.subr.mxu0 0.0
        %1382 = vmatpush2.msra.mxu0 0.0
        %1383 = vmatprep.subr.mxu0 0.0
        %1384 = vmatpush2.msra.mxu0 0.0
        %1385 = vmatprep.subr.mxu0 0.0
        %1386 = vmatpush2.msra.mxu0 0.0
        %1387 = vmatprep.subr.mxu0 0.0
        %1388 = vmatpush2.msra.mxu0 0.0
        %1389 = vmatprep.subr.mxu0 0.0
        %1390 = vmatpush2.msra.mxu0 0.0
        %1391 = vmatprep.subr.mxu0 0.0
        %1392 = vmatpush2.msra.mxu0 0.0
        %1393 = vmatprep.mubr.f32.mxu0 0.0
        %1394 = vmatmul.mubr.f32.gmra.mxu0 %v1323
        %v1395 = vpop.f32.mrf.mxu0
        %v1396 = vadd.f32 0.0, %v1395
        %v1397 = vpop.f32.mrf.mxu0
        %1398 = vdwg.mxu0
        %v1400 = vsel %vm756, %v918, 0
        %v1403 = vsel %vm1325, %v921, 0
        %1405 = vmatprep.subr.mxu0 0.0
        %1406 = vmatpush1.msra.mxu0 0.0
        %1407 = vmatprep.subr.mxu0 0.0
        %1408 = vmatpush1.msra.mxu0 0.0
        %1409 = vmatprep.subr.mxu0 0.0
        %1410 = vmatpush1.msra.mxu0 0.0
        %1411 = vmatprep.subr.mxu0 0.0
        %1412 = vmatpush1.msra.mxu0 0.0
        %1413 = vmatprep.subr.mxu0 0.0
        %1414 = vmatpush1.msra.mxu0 0.0
        %1415 = vmatprep.subr.mxu0 0.0
        %1416 = vmatpush1.msra.mxu0 0.0
        %1417 = vmatprep.subr.mxu0 0.0
        %1418 = vmatpush1.msra.mxu0 0.0
        %1419 = vmatprep.subr.mxu0 0.0
        %1420 = vmatpush1.msra.mxu0 0.0
        %1421 = vmatprep.subr.mxu0 0.0
        %1422 = vmatpush1.msra.mxu0 0.0
        %1423 = vmatprep.subr.mxu0 0.0
        %1424 = vmatpush1.msra.mxu0 0.0
        %1425 = vmatprep.subr.mxu0 0.0
        %1426 = vmatpush1.msra.mxu0 0.0
        %1427 = vmatprep.subr.mxu0 0.0
        %1428 = vmatpush1.msra.mxu0 0.0
        %1429 = vmatprep.subr.mxu0 0.0
        %1430 = vmatpush1.msra.mxu0 0.0
        %1431 = vmatprep.subr.mxu0 0.0
        %1432 = vmatpush1.msra.mxu0 0.0
        %1433 = vmatprep.subr.mxu0 0.0
        %1434 = vmatpush1.msra.mxu0 0.0
        %1435 = vmatprep.subr.mxu0 0.0
        %1436 = vmatpush1.msra.mxu0 %v1403
        %1437 = vmatprep.subr.mxu0 0.0
        %1438 = vmatpush2.msra.mxu0 0.0
        %1439 = vmatprep.subr.mxu0 0.0
        %1440 = vmatpush2.msra.mxu0 0.0
        %1441 = vmatprep.subr.mxu0 0.0
        %1442 = vmatpush2.msra.mxu0 0.0
        %1443 = vmatprep.subr.mxu0 0.0
        %1444 = vmatpush2.msra.mxu0 0.0
        %1445 = vmatprep.subr.mxu0 0.0
        %1446 = vmatpush2.msra.mxu0 0.0
        %1447 = vmatprep.subr.mxu0 0.0
        %1448 = vmatpush2.msra.mxu0 0.0
        %1449 = vmatprep.subr.mxu0 0.0
        %1450 = vmatpush2.msra.mxu0 0.0
        %1451 = vmatprep.subr.mxu0 0.0
        %1452 = vmatpush2.msra.mxu0 0.0
        %1453 = vmatprep.subr.mxu0 0.0
        %1454 = vmatpush2.msra.mxu0 0.0
        %1455 = vmatprep.subr.mxu0 0.0
        %1456 = vmatpush2.msra.mxu0 0.0
        %1457 = vmatprep.subr.mxu0 0.0
        %1458 = vmatpush2.msra.mxu0 0.0
        %1459 = vmatprep.subr.mxu0 0.0
        %1460 = vmatpush2.msra.mxu0 0.0
        %1461 = vmatprep.subr.mxu0 0.0
        %1462 = vmatpush2.msra.mxu0 0.0
        %1463 = vmatprep.subr.mxu0 0.0
        %1464 = vmatpush2.msra.mxu0 0.0
        %1465 = vmatprep.subr.mxu0 0.0
        %1466 = vmatpush2.msra.mxu0 0.0
        %1467 = vmatprep.subr.mxu0 0.0
        %1468 = vmatpush2.msra.mxu0 0.0
        %1469 = vmatprep.mubr.f32.mxu0 0.0
        %1470 = vmatmul.mubr.f32.gmra.mxu0 %v1400
        %v1471 = vpop.f32.mrf.mxu0
        %v1472 = vadd.f32 %v1396, %v1471
        %v1473 = vpop.f32.mrf.mxu0
        %1474 = vdwg.mxu0
        %s1475 = scalar_lea.vmem %s2, 64
        %v1476 = vld [vmem:[%s1475] sm:$0xff]
        %v1477 = vld [vmem:[%s1475 + $0x8] sm:$0xff]
        %v1478 = vld [vmem:[%s1475 + $0x10] sm:$0xff]
        %v1479 = vld [vmem:[%s1475 + $0x18] sm:$0xff]
        %1480 = vmatprep.subr.mxu0 0.0
        %1481 = vmatpush1.msra.mxu0 0.0
        %1482 = vmatprep.subr.mxu0 0.0
        %1483 = vmatpush1.msra.mxu0 0.0
        %1484 = vmatprep.subr.mxu0 0.0
        %1485 = vmatpush1.msra.mxu0 0.0
        %1486 = vmatprep.subr.mxu0 0.0
        %1487 = vmatpush1.msra.mxu0 0.0
        %1488 = vmatprep.subr.mxu0 0.0
        %1489 = vmatpush1.msra.mxu0 0.0
        %1490 = vmatprep.subr.mxu0 0.0
        %1491 = vmatpush1.msra.mxu0 0.0
        %1492 = vmatprep.subr.mxu0 0.0
        %1493 = vmatpush1.msra.mxu0 0.0
        %1494 = vmatprep.subr.mxu0 0.0
        %1495 = vmatpush1.msra.mxu0 0.0
        %1496 = vmatprep.subr.mxu0 0.0
        %1497 = vmatpush1.msra.mxu0 0.0
        %1498 = vmatprep.subr.mxu0 0.0
        %1499 = vmatpush1.msra.mxu0 0.0
        %1500 = vmatprep.subr.mxu0 0.0
        %1501 = vmatpush1.msra.mxu0 0.0
        %1502 = vmatprep.subr.mxu0 0.0
        %1503 = vmatpush1.msra.mxu0 0.0
        %1504 = vmatprep.subr.mxu0 0.0
        %1505 = vmatpush1.msra.mxu0 %v1479
        %1506 = vmatprep.subr.mxu0 0.0
        %1507 = vmatpush1.msra.mxu0 %v1478
        %1508 = vmatprep.subr.mxu0 0.0
        %1509 = vmatpush1.msra.mxu0 %v1477
        %1510 = vmatprep.subr.mxu0 0.0
        %1511 = vmatpush1.msra.mxu0 %v1476
        %1512 = vmatprep.subr.mxu0 0.0
        %1513 = vmatpush2.msra.mxu0 0.0
        %1514 = vmatprep.subr.mxu0 0.0
        %1515 = vmatpush2.msra.mxu0 0.0
        %1516 = vmatprep.subr.mxu0 0.0
        %1517 = vmatpush2.msra.mxu0 0.0
        %1518 = vmatprep.subr.mxu0 0.0
        %1519 = vmatpush2.msra.mxu0 0.0
        %1520 = vmatprep.subr.mxu0 0.0
        %1521 = vmatpush2.msra.mxu0 0.0
        %1522 = vmatprep.subr.mxu0 0.0
        %1523 = vmatpush2.msra.mxu0 0.0
        %1524 = vmatprep.subr.mxu0 0.0
        %1525 = vmatpush2.msra.mxu0 0.0
        %1526 = vmatprep.subr.mxu0 0.0
        %1527 = vmatpush2.msra.mxu0 0.0
        %1528 = vmatprep.subr.mxu0 0.0
        %1529 = vmatpush2.msra.mxu0 0.0
        %1530 = vmatprep.subr.mxu0 0.0
        %1531 = vmatpush2.msra.mxu0 0.0
        %1532 = vmatprep.subr.mxu0 0.0
        %1533 = vmatpush2.msra.mxu0 0.0
        %1534 = vmatprep.subr.mxu0 0.0
        %1535 = vmatpush2.msra.mxu0 0.0
        %1536 = vmatprep.subr.mxu0 0.0
        %1537 = vmatpush2.msra.mxu0 0.0
        %1538 = vmatprep.subr.mxu0 0.0
        %1539 = vmatpush2.msra.mxu0 0.0
        %1540 = vmatprep.subr.mxu0 0.0
        %1541 = vmatpush2.msra.mxu0 0.0
        %1542 = vmatprep.subr.mxu0 0.0
        %1543 = vmatpush2.msra.mxu0 0.0
        %1544 = vmatprep.mubr.f32.mxu0 0.0
        %1545 = vmatmul.mubr.f32.gmra.mxu0 %v520
        %v1546 = vpop.f32.mrf.mxu0
        %v1547 = vadd.f32 0.0, %v1546
        %v1548 = vpop.f32.mrf.mxu0
        %1549 = vdwg.mxu0
        %s1550 = scalar_lea.vmem %s3, 64
        %v1551 = vld [vmem:[%s1550] sm:$0xff]
        %v1552 = vld [vmem:[%s1550 + $0x8] sm:$0xff]
        %v1553 = vld [vmem:[%s1550 + $0x10] sm:$0xff]
        %v1554 = vld [vmem:[%s1550 + $0x18] sm:$0xff]
        %1555 = vmatprep.subr.mxu0 0.0
        %1556 = vmatpush1.msra.mxu0 0.0
        %1557 = vmatprep.subr.mxu0 0.0
        %1558 = vmatpush1.msra.mxu0 0.0
        %1559 = vmatprep.subr.mxu0 0.0
        %1560 = vmatpush1.msra.mxu0 0.0
        %1561 = vmatprep.subr.mxu0 0.0
        %1562 = vmatpush1.msra.mxu0 0.0
        %1563 = vmatprep.subr.mxu0 0.0
        %1564 = vmatpush1.msra.mxu0 0.0
        %1565 = vmatprep.subr.mxu0 0.0
        %1566 = vmatpush1.msra.mxu0 0.0
        %1567 = vmatprep.subr.mxu0 0.0
        %1568 = vmatpush1.msra.mxu0 0.0
        %1569 = vmatprep.subr.mxu0 0.0
        %1570 = vmatpush1.msra.mxu0 0.0
        %1571 = vmatprep.subr.mxu0 0.0
        %1572 = vmatpush1.msra.mxu0 0.0
        %1573 = vmatprep.subr.mxu0 0.0
        %1574 = vmatpush1.msra.mxu0 0.0
        %1575 = vmatprep.subr.mxu0 0.0
        %1576 = vmatpush1.msra.mxu0 0.0
        %1577 = vmatprep.subr.mxu0 0.0
        %1578 = vmatpush1.msra.mxu0 0.0
        %1579 = vmatprep.subr.mxu0 0.0
        %1580 = vmatpush1.msra.mxu0 %v1554
        %1581 = vmatprep.subr.mxu0 0.0
        %1582 = vmatpush1.msra.mxu0 %v1553
        %1583 = vmatprep.subr.mxu0 0.0
        %1584 = vmatpush1.msra.mxu0 %v1552
        %1585 = vmatprep.subr.mxu0 0.0
        %1586 = vmatpush1.msra.mxu0 %v1551
        %1587 = vmatprep.subr.mxu0 0.0
        %1588 = vmatpush2.msra.mxu0 0.0
        %1589 = vmatprep.subr.mxu0 0.0
        %1590 = vmatpush2.msra.mxu0 0.0
        %1591 = vmatprep.subr.mxu0 0.0
        %1592 = vmatpush2.msra.mxu0 0.0
        %1593 = vmatprep.subr.mxu0 0.0
        %1594 = vmatpush2.msra.mxu0 0.0
        %1595 = vmatprep.subr.mxu0 0.0
        %1596 = vmatpush2.msra.mxu0 0.0
        %1597 = vmatprep.subr.mxu0 0.0
        %1598 = vmatpush2.msra.mxu0 0.0
        %1599 = vmatprep.subr.mxu0 0.0
        %1600 = vmatpush2.msra.mxu0 0.0
        %1601 = vmatprep.subr.mxu0 0.0
        %1602 = vmatpush2.msra.mxu0 0.0
        %1603 = vmatprep.subr.mxu0 0.0
        %1604 = vmatpush2.msra.mxu0 0.0
        %1605 = vmatprep.subr.mxu0 0.0
        %1606 = vmatpush2.msra.mxu0 0.0
        %1607 = vmatprep.subr.mxu0 0.0
        %1608 = vmatpush2.msra.mxu0 0.0
        %1609 = vmatprep.subr.mxu0 0.0
        %1610 = vmatpush2.msra.mxu0 0.0
        %1611 = vmatprep.subr.mxu0 0.0
        %1612 = vmatpush2.msra.mxu0 0.0
        %1613 = vmatprep.subr.mxu0 0.0
        %1614 = vmatpush2.msra.mxu0 0.0
        %1615 = vmatprep.subr.mxu0 0.0
        %1616 = vmatpush2.msra.mxu0 0.0
        %1617 = vmatprep.subr.mxu0 0.0
        %1618 = vmatpush2.msra.mxu0 0.0
        %1619 = vmatprep.mubr.f32.mxu0 0.0
        %1620 = vmatmul.mubr.f32.gmra.mxu0 %v597
        %v1621 = vpop.f32.mrf.mxu0
        %v1622 = vadd.f32 0.0, %v1621
        %v1623 = vpop.f32.mrf.mxu0
        %1624 = vmatprep.mubr.f32.mxu0 0.0
        %1625 = vmatmul.mubr.f32.gmra.mxu0 %v600
        %v1626 = vpop.f32.mrf.mxu0
        %v1627 = vadd.f32 0.0, %v1626
        %v1628 = vpop.f32.mrf.mxu0
        %1629 = vdwg.mxu0
        %s1630 = scalar_lea.vmem %s4, 64
        %v1631 = vld [vmem:[%s1630] sm:$0xff]
        %v1632 = vld [vmem:[%s1630 + $0x8] sm:$0xff]
        %v1633 = vld [vmem:[%s1630 + $0x10] sm:$0xff]
        %v1634 = vld [vmem:[%s1630 + $0x18] sm:$0xff]
        %1635 = vmatprep.subr.mxu0 0.0
        %1636 = vmatpush1.msra.mxu0 0.0
        %1637 = vmatprep.subr.mxu0 0.0
        %1638 = vmatpush1.msra.mxu0 0.0
        %1639 = vmatprep.subr.mxu0 0.0
        %1640 = vmatpush1.msra.mxu0 0.0
        %1641 = vmatprep.subr.mxu0 0.0
        %1642 = vmatpush1.msra.mxu0 0.0
        %1643 = vmatprep.subr.mxu0 0.0
        %1644 = vmatpush1.msra.mxu0 0.0
        %1645 = vmatprep.subr.mxu0 0.0
        %1646 = vmatpush1.msra.mxu0 0.0
        %1647 = vmatprep.subr.mxu0 0.0
        %1648 = vmatpush1.msra.mxu0 0.0
        %1649 = vmatprep.subr.mxu0 0.0
        %1650 = vmatpush1.msra.mxu0 0.0
        %1651 = vmatprep.subr.mxu0 0.0
        %1652 = vmatpush1.msra.mxu0 0.0
        %1653 = vmatprep.subr.mxu0 0.0
        %1654 = vmatpush1.msra.mxu0 0.0
        %1655 = vmatprep.subr.mxu0 0.0
        %1656 = vmatpush1.msra.mxu0 0.0
        %1657 = vmatprep.subr.mxu0 0.0
        %1658 = vmatpush1.msra.mxu0 0.0
        %1659 = vmatprep.subr.mxu0 0.0
        %1660 = vmatpush1.msra.mxu0 %v1634
        %1661 = vmatprep.subr.mxu0 0.0
        %1662 = vmatpush1.msra.mxu0 %v1633
        %1663 = vmatprep.subr.mxu0 0.0
        %1664 = vmatpush1.msra.mxu0 %v1632
        %1665 = vmatprep.subr.mxu0 0.0
        %1666 = vmatpush1.msra.mxu0 %v1631
        %1667 = vmatprep.subr.mxu0 0.0
        %1668 = vmatpush2.msra.mxu0 0.0
        %1669 = vmatprep.subr.mxu0 0.0
        %1670 = vmatpush2.msra.mxu0 0.0
        %1671 = vmatprep.subr.mxu0 0.0
        %1672 = vmatpush2.msra.mxu0 0.0
        %1673 = vmatprep.subr.mxu0 0.0
        %1674 = vmatpush2.msra.mxu0 0.0
        %1675 = vmatprep.subr.mxu0 0.0
        %1676 = vmatpush2.msra.mxu0 0.0
        %1677 = vmatprep.subr.mxu0 0.0
        %1678 = vmatpush2.msra.mxu0 0.0
        %1679 = vmatprep.subr.mxu0 0.0
        %1680 = vmatpush2.msra.mxu0 0.0
        %1681 = vmatprep.subr.mxu0 0.0
        %1682 = vmatpush2.msra.mxu0 0.0
        %1683 = vmatprep.subr.mxu0 0.0
        %1684 = vmatpush2.msra.mxu0 0.0
        %1685 = vmatprep.subr.mxu0 0.0
        %1686 = vmatpush2.msra.mxu0 0.0
        %1687 = vmatprep.subr.mxu0 0.0
        %1688 = vmatpush2.msra.mxu0 0.0
        %1689 = vmatprep.subr.mxu0 0.0
        %1690 = vmatpush2.msra.mxu0 0.0
        %1691 = vmatprep.subr.mxu0 0.0
        %1692 = vmatpush2.msra.mxu0 0.0
        %1693 = vmatprep.subr.mxu0 0.0
        %1694 = vmatpush2.msra.mxu0 0.0
        %1695 = vmatprep.subr.mxu0 0.0
        %1696 = vmatpush2.msra.mxu0 0.0
        %1697 = vmatprep.subr.mxu0 0.0
        %1698 = vmatpush2.msra.mxu0 0.0
        %1699 = vmatprep.mubr.f32.mxu0 0.0
        %1700 = vmatmul.mubr.f32.gmra.mxu0 %v597
        %v1701 = vpop.f32.mrf.mxu0
        %v1702 = vadd.f32 0.0, %v1701
        %v1703 = vpop.f32.mrf.mxu0
        %1704 = vmatprep.mubr.f32.mxu0 0.0
        %1705 = vmatmul.mubr.f32.gmra.mxu0 %v600
        %v1706 = vpop.f32.mrf.mxu0
        %v1707 = vadd.f32 0.0, %v1706
        %v1708 = vpop.f32.mrf.mxu0
        %1709 = vdwg.mxu0
        %v1711 = vsel %vm756, %v1547, 0
        %v1714 = vsel %vm756, %v1622, 0
        %v1717 = vsel %vm756, %v1627, 0
        %1719 = vmatprep.subr.mxu0 0.0
        %1720 = vmatpush1.xpose.msra.mxu0 0.0
        %1721 = vmatprep.subr.mxu0 0.0
        %1722 = vmatpush1.xpose.msra.mxu0 0.0
        %1723 = vmatprep.subr.mxu0 0.0
        %1724 = vmatpush1.xpose.msra.mxu0 0.0
        %1725 = vmatprep.subr.mxu0 0.0
        %1726 = vmatpush1.xpose.msra.mxu0 0.0
        %1727 = vmatprep.subr.mxu0 0.0
        %1728 = vmatpush1.xpose.msra.mxu0 0.0
        %1729 = vmatprep.subr.mxu0 0.0
        %1730 = vmatpush1.xpose.msra.mxu0 0.0
        %1731 = vmatprep.subr.mxu0 0.0
        %1732 = vmatpush1.xpose.msra.mxu0 0.0
        %1733 = vmatprep.subr.mxu0 0.0
        %1734 = vmatpush1.xpose.msra.mxu0 0.0
        %1735 = vmatprep.subr.mxu0 0.0
        %1736 = vmatpush1.xpose.msra.mxu0 0.0
        %1737 = vmatprep.subr.mxu0 0.0
        %1738 = vmatpush1.xpose.msra.mxu0 0.0
        %1739 = vmatprep.subr.mxu0 0.0
        %1740 = vmatpush1.xpose.msra.mxu0 0.0
        %1741 = vmatprep.subr.mxu0 0.0
        %1742 = vmatpush1.xpose.msra.mxu0 0.0
        %1743 = vmatprep.subr.mxu0 0.0
        %1744 = vmatpush1.xpose.msra.mxu0 0.0
        %1745 = vmatprep.subr.mxu0 0.0
        %1746 = vmatpush1.xpose.msra.mxu0 0.0
        %1747 = vmatprep.subr.mxu0 0.0
        %1748 = vmatpush1.xpose.msra.mxu0 %v1717
        %1749 = vmatprep.subr.mxu0 0.0
        %1750 = vmatpush1.xpose.msra.mxu0 %v1714
        %1751 = vmatprep.subr.mxu0 0.0
        %1752 = vmatpush2.xpose.msra.mxu0 0.0
        %1753 = vmatprep.subr.mxu0 0.0
        %1754 = vmatpush2.xpose.msra.mxu0 0.0
        %1755 = vmatprep.subr.mxu0 0.0
        %1756 = vmatpush2.xpose.msra.mxu0 0.0
        %1757 = vmatprep.subr.mxu0 0.0
        %1758 = vmatpush2.xpose.msra.mxu0 0.0
        %1759 = vmatprep.subr.mxu0 0.0
        %1760 = vmatpush2.xpose.msra.mxu0 0.0
        %1761 = vmatprep.subr.mxu0 0.0
        %1762 = vmatpush2.xpose.msra.mxu0 0.0
        %1763 = vmatprep.subr.mxu0 0.0
        %1764 = vmatpush2.xpose.msra.mxu0 0.0
        %1765 = vmatprep.subr.mxu0 0.0
        %1766 = vmatpush2.xpose.msra.mxu0 0.0
        %1767 = vmatprep.subr.mxu0 0.0
        %1768 = vmatpush2.xpose.msra.mxu0 0.0
        %1769 = vmatprep.subr.mxu0 0.0
        %1770 = vmatpush2.xpose.msra.mxu0 0.0
        %1771 = vmatprep.subr.mxu0 0.0
        %1772 = vmatpush2.xpose.msra.mxu0 0.0
        %1773 = vmatprep.subr.mxu0 0.0
        %1774 = vmatpush2.xpose.msra.mxu0 0.0
        %1775 = vmatprep.subr.mxu0 0.0
        %1776 = vmatpush2.xpose.msra.mxu0 0.0
        %1777 = vmatprep.subr.mxu0 0.0
        %1778 = vmatpush2.xpose.msra.mxu0 0.0
        %1779 = vmatprep.subr.mxu0 0.0
        %1780 = vmatpush2.xpose.msra.mxu0 0.0
        %1781 = vmatprep.subr.mxu0 0.0
        %1782 = vmatpush2.xpose.msra.mxu0 0.0
        %1783 = vmatprep.mubr.f32.mxu0 0.0
        %1784 = vmatmul.mubr.f32.gmra.mxu0 %v1711
        %v1785 = vpop.f32.mrf.mxu0
        %v1786 = vadd.f32 0.0, %v1785
        %v1787 = vpop.f32.mrf.mxu0
        %1788 = vdwg.mxu0
        %v1789 = vsel %vm836, %v1786, -inf
        %1790 = vmax.xlane.f32.xlu0 %v1789
        %v1791 = vpop.xlane.xlu0 %1790
        %v1792 = vsub.f32 %v1786, %v1791
        %v1793 = vmul.f32 %v1792, 1.442695
        %v1794 = vpow.pop %v1793
        %v1795 = vsel %vm836, %v1794, 0.0
        %1796 = vadd.xlane.f32.xlu0 %v1795
        %v1797 = vpop.xlane.xlu0 %1796
        %v1798 = vrcp.pop %v1797
        %v1799 = vmul.f32 %v1794, %v1798
        %v1801 = vsel %vm836, %v1799, 0
        %1803 = vmatprep.subr.mxu0 0.0
        %1804 = vmatpush1.msra.mxu0 0.0
        %1805 = vmatprep.subr.mxu0 0.0
        %1806 = vmatpush1.msra.mxu0 0.0
        %1807 = vmatprep.subr.mxu0 0.0
        %1808 = vmatpush1.msra.mxu0 0.0
        %1809 = vmatprep.subr.mxu0 0.0
        %1810 = vmatpush1.msra.mxu0 0.0
        %1811 = vmatprep.subr.mxu0 0.0
        %1812 = vmatpush1.msra.mxu0 0.0
        %1813 = vmatprep.subr.mxu0 0.0
        %1814 = vmatpush1.msra.mxu0 0.0
        %1815 = vmatprep.subr.mxu0 0.0
        %1816 = vmatpush1.msra.mxu0 0.0
        %1817 = vmatprep.subr.mxu0 0.0
        %1818 = vmatpush1.msra.mxu0 0.0
        %1819 = vmatprep.subr.mxu0 0.0
        %1820 = vmatpush1.msra.mxu0 0.0
        %1821 = vmatprep.subr.mxu0 0.0
        %1822 = vmatpush1.msra.mxu0 0.0
        %1823 = vmatprep.subr.mxu0 0.0
        %1824 = vmatpush1.msra.mxu0 0.0
        %1825 = vmatprep.subr.mxu0 0.0
        %1826 = vmatpush1.msra.mxu0 0.0
        %1827 = vmatprep.subr.mxu0 0.0
        %1828 = vmatpush1.msra.mxu0 0.0
        %1829 = vmatprep.subr.mxu0 0.0
        %1830 = vmatpush1.msra.mxu0 0.0
        %1831 = vmatprep.subr.mxu0 0.0
        %1832 = vmatpush1.msra.mxu0 %v1707
        %1833 = vmatprep.subr.mxu0 0.0
        %1834 = vmatpush1.msra.mxu0 %v1702
        %1835 = vmatprep.subr.mxu0 0.0
        %1836 = vmatpush2.msra.mxu0 0.0
        %1837 = vmatprep.subr.mxu0 0.0
        %1838 = vmatpush2.msra.mxu0 0.0
        %1839 = vmatprep.subr.mxu0 0.0
        %1840 = vmatpush2.msra.mxu0 0.0
        %1841 = vmatprep.subr.mxu0 0.0
        %1842 = vmatpush2.msra.mxu0 0.0
        %1843 = vmatprep.subr.mxu0 0.0
        %1844 = vmatpush2.msra.mxu0 0.0
        %1845 = vmatprep.subr.mxu0 0.0
        %1846 = vmatpush2.msra.mxu0 0.0
        %1847 = vmatprep.subr.mxu0 0.0
        %1848 = vmatpush2.msra.mxu0 0.0
        %1849 = vmatprep.subr.mxu0 0.0
        %1850 = vmatpush2.msra.mxu0 0.0
        %1851 = vmatprep.subr.mxu0 0.0
        %1852 = vmatpush2.msra.mxu0 0.0
        %1853 = vmatprep.subr.mxu0 0.0
        %1854 = vmatpush2.msra.mxu0 0.0
        %1855 = vmatprep.subr.mxu0 0.0
        %1856 = vmatpush2.msra.mxu0 0.0
        %1857 = vmatprep.subr.mxu0 0.0
        %1858 = vmatpush2.msra.mxu0 0.0
        %1859 = vmatprep.subr.mxu0 0.0
        %1860 = vmatpush2.msra.mxu0 0.0
        %1861 = vmatprep.subr.mxu0 0.0
        %1862 = vmatpush2.msra.mxu0 0.0
        %1863 = vmatprep.subr.mxu0 0.0
        %1864 = vmatpush2.msra.mxu0 0.0
        %1865 = vmatprep.subr.mxu0 0.0
        %1866 = vmatpush2.msra.mxu0 0.0
        %1867 = vmatprep.mubr.f32.mxu0 0.0
        %1868 = vmatmul.mubr.f32.gmra.mxu0 %v1801
        %v1869 = vpop.f32.mrf.mxu0
        %v1870 = vadd.f32 0.0, %v1869
        %v1871 = vpop.f32.mrf.mxu0
        %1872 = vdwg.mxu0
        %s1873 = scalar_lea.vmem %s5, 8
        %v1874 = vld [vmem:[%s1873] sm:$0xf]
        %v1876 = vsel %vm756, %v1870, 0
        %v1879 = vsel %vm1325, %v1874, 0
        %1881 = vmatprep.subr.mxu0 0.0
        %1882 = vmatpush1.msra.mxu0 0.0
        %1883 = vmatprep.subr.mxu0 0.0
        %1884 = vmatpush1.msra.mxu0 0.0
        %1885 = vmatprep.subr.mxu0 0.0
        %1886 = vmatpush1.msra.mxu0 0.0
        %1887 = vmatprep.subr.mxu0 0.0
        %1888 = vmatpush1.msra.mxu0 0.0
        %1889 = vmatprep.subr.mxu0 0.0
        %1890 = vmatpush1.msra.mxu0 0.0
        %1891 = vmatprep.subr.mxu0 0.0
        %1892 = vmatpush1.msra.mxu0 0.0
        %1893 = vmatprep.subr.mxu0 0.0
        %1894 = vmatpush1.msra.mxu0 0.0
        %1895 = vmatprep.subr.mxu0 0.0
        %1896 = vmatpush1.msra.mxu0 0.0
        %1897 = vmatprep.subr.mxu0 0.0
        %1898 = vmatpush1.msra.mxu0 0.0
        %1899 = vmatprep.subr.mxu0 0.0
        %1900 = vmatpush1.msra.mxu0 0.0
        %1901 = vmatprep.subr.mxu0 0.0
        %1902 = vmatpush1.msra.mxu0 0.0
        %1903 = vmatprep.subr.mxu0 0.0
        %1904 = vmatpush1.msra.mxu0 0.0
        %1905 = vmatprep.subr.mxu0 0.0
        %1906 = vmatpush1.msra.mxu0 0.0
        %1907 = vmatprep.subr.mxu0 0.0
        %1908 = vmatpush1.msra.mxu0 0.0
        %1909 = vmatprep.subr.mxu0 0.0
        %1910 = vmatpush1.msra.mxu0 0.0
        %1911 = vmatprep.subr.mxu0 0.0
        %1912 = vmatpush1.msra.mxu0 %v1879
        %1913 = vmatprep.subr.mxu0 0.0
        %1914 = vmatpush2.msra.mxu0 0.0
        %1915 = vmatprep.subr.mxu0 0.0
        %1916 = vmatpush2.msra.mxu0 0.0
        %1917 = vmatprep.subr.mxu0 0.0
        %1918 = vmatpush2.msra.mxu0 0.0
        %1919 = vmatprep.subr.mxu0 0.0
        %1920 = vmatpush2.msra.mxu0 0.0
        %1921 = vmatprep.subr.mxu0 0.0
        %1922 = vmatpush2.msra.mxu0 0.0
        %1923 = vmatprep.subr.mxu0 0.0
        %1924 = vmatpush2.msra.mxu0 0.0
        %1925 = vmatprep.subr.mxu0 0.0
        %1926 = vmatpush2.msra.mxu0 0.0
        %1927 = vmatprep.subr.mxu0 0.0
        %1928 = vmatpush2.msra.mxu0 0.0
        %1929 = vmatprep.subr.mxu0 0.0
        %1930 = vmatpush2.msra.mxu0 0.0
        %1931 = vmatprep.subr.mxu0 0.0
        %1932 = vmatpush2.msra.mxu0 0.0
        %1933 = vmatprep.subr.mxu0 0.0
        %1934 = vmatpush2.msra.mxu0 0.0
        %1935 = vmatprep.subr.mxu0 0.0
        %1936 = vmatpush2.msra.mxu0 0.0
        %1937 = vmatprep.subr.mxu0 0.0
        %1938 = vmatpush2.msra.mxu0 0.0
        %1939 = vmatprep.subr.mxu0 0.0
        %1940 = vmatpush2.msra.mxu0 0.0
        %1941 = vmatprep.subr.mxu0 0.0
        %1942 = vmatpush2.msra.mxu0 0.0
        %1943 = vmatprep.subr.mxu0 0.0
        %1944 = vmatpush2.msra.mxu0 0.0
        %1945 = vmatprep.mubr.f32.mxu0 0.0
        %1946 = vmatmul.mubr.f32.gmra.mxu0 %v1876
        %v1947 = vpop.f32.mrf.mxu0
        %v1948 = vadd.f32 0.0, %v1947
        %v1949 = vpop.f32.mrf.mxu0
        %1950 = vdwg.mxu0
        %v1951 = vadd.f32 %v1472, %v1948
        %s1952 = scalar_lea.vmem %s2, 96
        %v1953 = vld [vmem:[%s1952] sm:$0xff]
        %v1954 = vld [vmem:[%s1952 + $0x8] sm:$0xff]
        %v1955 = vld [vmem:[%s1952 + $0x10] sm:$0xff]
        %v1956 = vld [vmem:[%s1952 + $0x18] sm:$0xff]
        %1957 = vmatprep.subr.mxu0 0.0
        %1958 = vmatpush1.msra.mxu0 0.0
        %1959 = vmatprep.subr.mxu0 0.0
        %1960 = vmatpush1.msra.mxu0 0.0
        %1961 = vmatprep.subr.mxu0 0.0
        %1962 = vmatpush1.msra.mxu0 0.0
        %1963 = vmatprep.subr.mxu0 0.0
        %1964 = vmatpush1.msra.mxu0 0.0
        %1965 = vmatprep.subr.mxu0 0.0
        %1966 = vmatpush1.msra.mxu0 0.0
        %1967 = vmatprep.subr.mxu0 0.0
        %1968 = vmatpush1.msra.mxu0 0.0
        %1969 = vmatprep.subr.mxu0 0.0
        %1970 = vmatpush1.msra.mxu0 0.0
        %1971 = vmatprep.subr.mxu0 0.0
        %1972 = vmatpush1.msra.mxu0 0.0
        %1973 = vmatprep.subr.mxu0 0.0
        %1974 = vmatpush1.msra.mxu0 0.0
        %1975 = vmatprep.subr.mxu0 0.0
        %1976 = vmatpush1.msra.mxu0 0.0
        %1977 = vmatprep.subr.mxu0 0.0
        %1978 = vmatpush1.msra.mxu0 0.0
        %1979 = vmatprep.subr.mxu0 0.0
        %1980 = vmatpush1.msra.mxu0 0.0
        %1981 = vmatprep.subr.mxu0 0.0
        %1982 = vmatpush1.msra.mxu0 %v1956
        %1983 = vmatprep.subr.mxu0 0.0
        %1984 = vmatpush1.msra.mxu0 %v1955
        %1985 = vmatprep.subr.mxu0 0.0
        %1986 = vmatpush1.msra.mxu0 %v1954
        %1987 = vmatprep.subr.mxu0 0.0
        %1988 = vmatpush1.msra.mxu0 %v1953
        %1989 = vmatprep.subr.mxu0 0.0
        %1990 = vmatpush2.msra.mxu0 0.0
        %1991 = vmatprep.subr.mxu0 0.0
        %1992 = vmatpush2.msra.mxu0 0.0
        %1993 = vmatprep.subr.mxu0 0.0
        %1994 = vmatpush2.msra.mxu0 0.0
        %1995 = vmatprep.subr.mxu0 0.0
        %1996 = vmatpush2.msra.mxu0 0.0
        %1997 = vmatprep.subr.mxu0 0.0
        %1998 = vmatpush2.msra.mxu0 0.0
        %1999 = vmatprep.subr.mxu0 0.0
        %2000 = vmatpush2.msra.mxu0 0.0
        %2001 = vmatprep.subr.mxu0 0.0
        %2002 = vmatpush2.msra.mxu0 0.0
        %2003 = vmatprep.subr.mxu0 0.0
        %2004 = vmatpush2.msra.mxu0 0.0
        %2005 = vmatprep.subr.mxu0 0.0
        %2006 = vmatpush2.msra.mxu0 0.0
        %2007 = vmatprep.subr.mxu0 0.0
        %2008 = vmatpush2.msra.mxu0 0.0
        %2009 = vmatprep.subr.mxu0 0.0
        %2010 = vmatpush2.msra.mxu0 0.0
        %2011 = vmatprep.subr.mxu0 0.0
        %2012 = vmatpush2.msra.mxu0 0.0
        %2013 = vmatprep.subr.mxu0 0.0
        %2014 = vmatpush2.msra.mxu0 0.0
        %2015 = vmatprep.subr.mxu0 0.0
        %2016 = vmatpush2.msra.mxu0 0.0
        %2017 = vmatprep.subr.mxu0 0.0
        %2018 = vmatpush2.msra.mxu0 0.0
        %2019 = vmatprep.subr.mxu0 0.0
        %2020 = vmatpush2.msra.mxu0 0.0
        %2021 = vmatprep.mubr.f32.mxu0 0.0
        %2022 = vmatmul.mubr.f32.gmra.mxu0 %v520
        %v2023 = vpop.f32.mrf.mxu0
        %v2024 = vadd.f32 0.0, %v2023
        %v2025 = vpop.f32.mrf.mxu0
        %2026 = vdwg.mxu0
        %s2027 = scalar_lea.vmem %s3, 96
        %v2028 = vld [vmem:[%s2027] sm:$0xff]
        %v2029 = vld [vmem:[%s2027 + $0x8] sm:$0xff]
        %v2030 = vld [vmem:[%s2027 + $0x10] sm:$0xff]
        %v2031 = vld [vmem:[%s2027 + $0x18] sm:$0xff]
        %2032 = vmatprep.subr.mxu0 0.0
        %2033 = vmatpush1.msra.mxu0 0.0
        %2034 = vmatprep.subr.mxu0 0.0
        %2035 = vmatpush1.msra.mxu0 0.0
        %2036 = vmatprep.subr.mxu0 0.0
        %2037 = vmatpush1.msra.mxu0 0.0
        %2038 = vmatprep.subr.mxu0 0.0
        %2039 = vmatpush1.msra.mxu0 0.0
        %2040 = vmatprep.subr.mxu0 0.0
        %2041 = vmatpush1.msra.mxu0 0.0
        %2042 = vmatprep.subr.mxu0 0.0
        %2043 = vmatpush1.msra.mxu0 0.0
        %2044 = vmatprep.subr.mxu0 0.0
        %2045 = vmatpush1.msra.mxu0 0.0
        %2046 = vmatprep.subr.mxu0 0.0
        %2047 = vmatpush1.msra.mxu0 0.0
        %2048 = vmatprep.subr.mxu0 0.0
        %2049 = vmatpush1.msra.mxu0 0.0
        %2050 = vmatprep.subr.mxu0 0.0
        %2051 = vmatpush1.msra.mxu0 0.0
        %2052 = vmatprep.subr.mxu0 0.0
        %2053 = vmatpush1.msra.mxu0 0.0
        %2054 = vmatprep.subr.mxu0 0.0
        %2055 = vmatpush1.msra.mxu0 0.0
        %2056 = vmatprep.subr.mxu0 0.0
        %2057 = vmatpush1.msra.mxu0 %v2031
        %2058 = vmatprep.subr.mxu0 0.0
        %2059 = vmatpush1.msra.mxu0 %v2030
        %2060 = vmatprep.subr.mxu0 0.0
        %2061 = vmatpush1.msra.mxu0 %v2029
        %2062 = vmatprep.subr.mxu0 0.0
        %2063 = vmatpush1.msra.mxu0 %v2028
        %2064 = vmatprep.subr.mxu0 0.0
        %2065 = vmatpush2.msra.mxu0 0.0
        %2066 = vmatprep.subr.mxu0 0.0
        %2067 = vmatpush2.msra.mxu0 0.0
        %2068 = vmatprep.subr.mxu0 0.0
        %2069 = vmatpush2.msra.mxu0 0.0
        %2070 = vmatprep.subr.mxu0 0.0
        %2071 = vmatpush2.msra.mxu0 0.0
        %2072 = vmatprep.subr.mxu0 0.0
        %2073 = vmatpush2.msra.mxu0 0.0
        %2074 = vmatprep.subr.mxu0 0.0
        %2075 = vmatpush2.msra.mxu0 0.0
        %2076 = vmatprep.subr.mxu0 0.0
        %2077 = vmatpush2.msra.mxu0 0.0
        %2078 = vmatprep.subr.mxu0 0.0
        %2079 = vmatpush2.msra.mxu0 0.0
        %2080 = vmatprep.subr.mxu0 0.0
        %2081 = vmatpush2.msra.mxu0 0.0
        %2082 = vmatprep.subr.mxu0 0.0
        %2083 = vmatpush2.msra.mxu0 0.0
        %2084 = vmatprep.subr.mxu0 0.0
        %2085 = vmatpush2.msra.mxu0 0.0
        %2086 = vmatprep.subr.mxu0 0.0
        %2087 = vmatpush2.msra.mxu0 0.0
        %2088 = vmatprep.subr.mxu0 0.0
        %2089 = vmatpush2.msra.mxu0 0.0
        %2090 = vmatprep.subr.mxu0 0.0
        %2091 = vmatpush2.msra.mxu0 0.0
        %2092 = vmatprep.subr.mxu0 0.0
        %2093 = vmatpush2.msra.mxu0 0.0
        %2094 = vmatprep.subr.mxu0 0.0
        %2095 = vmatpush2.msra.mxu0 0.0
        %2096 = vmatprep.mubr.f32.mxu0 0.0
        %2097 = vmatmul.mubr.f32.gmra.mxu0 %v597
        %v2098 = vpop.f32.mrf.mxu0
        %v2099 = vadd.f32 0.0, %v2098
        %v2100 = vpop.f32.mrf.mxu0
        %2101 = vmatprep.mubr.f32.mxu0 0.0
        %2102 = vmatmul.mubr.f32.gmra.mxu0 %v600
        %v2103 = vpop.f32.mrf.mxu0
        %v2104 = vadd.f32 0.0, %v2103
        %v2105 = vpop.f32.mrf.mxu0
        %2106 = vdwg.mxu0
        %s2107 = scalar_lea.vmem %s4, 96
        %v2108 = vld [vmem:[%s2107] sm:$0xff]
        %v2109 = vld [vmem:[%s2107 + $0x8] sm:$0xff]
        %v2110 = vld [vmem:[%s2107 + $0x10] sm:$0xff]
        %v2111 = vld [vmem:[%s2107 + $0x18] sm:$0xff]
        %2112 = vmatprep.subr.mxu0 0.0
        %2113 = vmatpush1.msra.mxu0 0.0
        %2114 = vmatprep.subr.mxu0 0.0
        %2115 = vmatpush1.msra.mxu0 0.0
        %2116 = vmatprep.subr.mxu0 0.0
        %2117 = vmatpush1.msra.mxu0 0.0
        %2118 = vmatprep.subr.mxu0 0.0
        %2119 = vmatpush1.msra.mxu0 0.0
        %2120 = vmatprep.subr.mxu0 0.0
        %2121 = vmatpush1.msra.mxu0 0.0
        %2122 = vmatprep.subr.mxu0 0.0
        %2123 = vmatpush1.msra.mxu0 0.0
        %2124 = vmatprep.subr.mxu0 0.0
        %2125 = vmatpush1.msra.mxu0 0.0
        %2126 = vmatprep.subr.mxu0 0.0
        %2127 = vmatpush1.msra.mxu0 0.0
        %2128 = vmatprep.subr.mxu0 0.0
        %2129 = vmatpush1.msra.mxu0 0.0
        %2130 = vmatprep.subr.mxu0 0.0
        %2131 = vmatpush1.msra.mxu0 0.0
        %2132 = vmatprep.subr.mxu0 0.0
        %2133 = vmatpush1.msra.mxu0 0.0
        %2134 = vmatprep.subr.mxu0 0.0
        %2135 = vmatpush1.msra.mxu0 0.0
        %2136 = vmatprep.subr.mxu0 0.0
        %2137 = vmatpush1.msra.mxu0 %v2111
        %2138 = vmatprep.subr.mxu0 0.0
        %2139 = vmatpush1.msra.mxu0 %v2110
        %2140 = vmatprep.subr.mxu0 0.0
        %2141 = vmatpush1.msra.mxu0 %v2109
        %2142 = vmatprep.subr.mxu0 0.0
        %2143 = vmatpush1.msra.mxu0 %v2108
        %2144 = vmatprep.subr.mxu0 0.0
        %2145 = vmatpush2.msra.mxu0 0.0
        %2146 = vmatprep.subr.mxu0 0.0
        %2147 = vmatpush2.msra.mxu0 0.0
        %2148 = vmatprep.subr.mxu0 0.0
        %2149 = vmatpush2.msra.mxu0 0.0
        %2150 = vmatprep.subr.mxu0 0.0
        %2151 = vmatpush2.msra.mxu0 0.0
        %2152 = vmatprep.subr.mxu0 0.0
        %2153 = vmatpush2.msra.mxu0 0.0
        %2154 = vmatprep.subr.mxu0 0.0
        %2155 = vmatpush2.msra.mxu0 0.0
        %2156 = vmatprep.subr.mxu0 0.0
        %2157 = vmatpush2.msra.mxu0 0.0
        %2158 = vmatprep.subr.mxu0 0.0
        %2159 = vmatpush2.msra.mxu0 0.0
        %2160 = vmatprep.subr.mxu0 0.0
        %2161 = vmatpush2.msra.mxu0 0.0
        %2162 = vmatprep.subr.mxu0 0.0
        %2163 = vmatpush2.msra.mxu0 0.0
        %2164 = vmatprep.subr.mxu0 0.0
        %2165 = vmatpush2.msra.mxu0 0.0
        %2166 = vmatprep.subr.mxu0 0.0
        %2167 = vmatpush2.msra.mxu0 0.0
        %2168 = vmatprep.subr.mxu0 0.0
        %2169 = vmatpush2.msra.mxu0 0.0
        %2170 = vmatprep.subr.mxu0 0.0
        %2171 = vmatpush2.msra.mxu0 0.0
        %2172 = vmatprep.subr.mxu0 0.0
        %2173 = vmatpush2.msra.mxu0 0.0
        %2174 = vmatprep.subr.mxu0 0.0
        %2175 = vmatpush2.msra.mxu0 0.0
        %2176 = vmatprep.mubr.f32.mxu0 0.0
        %2177 = vmatmul.mubr.f32.gmra.mxu0 %v597
        %v2178 = vpop.f32.mrf.mxu0
        %v2179 = vadd.f32 0.0, %v2178
        %v2180 = vpop.f32.mrf.mxu0
        %2181 = vmatprep.mubr.f32.mxu0 0.0
        %2182 = vmatmul.mubr.f32.gmra.mxu0 %v600
        %v2183 = vpop.f32.mrf.mxu0
        %v2184 = vadd.f32 0.0, %v2183
        %v2185 = vpop.f32.mrf.mxu0
        %2186 = vdwg.mxu0
        %v2188 = vsel %vm756, %v2024, 0
        %v2191 = vsel %vm756, %v2099, 0
        %v2194 = vsel %vm756, %v2104, 0
        %2196 = vmatprep.subr.mxu0 0.0
        %2197 = vmatpush1.xpose.msra.mxu0 0.0
        %2198 = vmatprep.subr.mxu0 0.0
        %2199 = vmatpush1.xpose.msra.mxu0 0.0
        %2200 = vmatprep.subr.mxu0 0.0
        %2201 = vmatpush1.xpose.msra.mxu0 0.0
        %2202 = vmatprep.subr.mxu0 0.0
        %2203 = vmatpush1.xpose.msra.mxu0 0.0
        %2204 = vmatprep.subr.mxu0 0.0
        %2205 = vmatpush1.xpose.msra.mxu0 0.0
        %2206 = vmatprep.subr.mxu0 0.0
        %2207 = vmatpush1.xpose.msra.mxu0 0.0
        %2208 = vmatprep.subr.mxu0 0.0
        %2209 = vmatpush1.xpose.msra.mxu0 0.0
        %2210 = vmatprep.subr.mxu0 0.0
        %2211 = vmatpush1.xpose.msra.mxu0 0.0
        %2212 = vmatprep.subr.mxu0 0.0
        %2213 = vmatpush1.xpose.msra.mxu0 0.0
        %2214 = vmatprep.subr.mxu0 0.0
        %2215 = vmatpush1.xpose.msra.mxu0 0.0
        %2216 = vmatprep.subr.mxu0 0.0
        %2217 = vmatpush1.xpose.msra.mxu0 0.0
        %2218 = vmatprep.subr.mxu0 0.0
        %2219 = vmatpush1.xpose.msra.mxu0 0.0
        %2220 = vmatprep.subr.mxu0 0.0
        %2221 = vmatpush1.xpose.msra.mxu0 0.0
        %2222 = vmatprep.subr.mxu0 0.0
        %2223 = vmatpush1.xpose.msra.mxu0 0.0
        %2224 = vmatprep.subr.mxu0 0.0
        %2225 = vmatpush1.xpose.msra.mxu0 %v2194
        %2226 = vmatprep.subr.mxu0 0.0
        %2227 = vmatpush1.xpose.msra.mxu0 %v2191
        %2228 = vmatprep.subr.mxu0 0.0
        %2229 = vmatpush2.xpose.msra.mxu0 0.0
        %2230 = vmatprep.subr.mxu0 0.0
        %2231 = vmatpush2.xpose.msra.mxu0 0.0
        %2232 = vmatprep.subr.mxu0 0.0
        %2233 = vmatpush2.xpose.msra.mxu0 0.0
        %2234 = vmatprep.subr.mxu0 0.0
        %2235 = vmatpush2.xpose.msra.mxu0 0.0
        %2236 = vmatprep.subr.mxu0 0.0
        %2237 = vmatpush2.xpose.msra.mxu0 0.0
        %2238 = vmatprep.subr.mxu0 0.0
        %2239 = vmatpush2.xpose.msra.mxu0 0.0
        %2240 = vmatprep.subr.mxu0 0.0
        %2241 = vmatpush2.xpose.msra.mxu0 0.0
        %2242 = vmatprep.subr.mxu0 0.0
        %2243 = vmatpush2.xpose.msra.mxu0 0.0
        %2244 = vmatprep.subr.mxu0 0.0
        %2245 = vmatpush2.xpose.msra.mxu0 0.0
        %2246 = vmatprep.subr.mxu0 0.0
        %2247 = vmatpush2.xpose.msra.mxu0 0.0
        %2248 = vmatprep.subr.mxu0 0.0
        %2249 = vmatpush2.xpose.msra.mxu0 0.0
        %2250 = vmatprep.subr.mxu0 0.0
        %2251 = vmatpush2.xpose.msra.mxu0 0.0
        %2252 = vmatprep.subr.mxu0 0.0
        %2253 = vmatpush2.xpose.msra.mxu0 0.0
        %2254 = vmatprep.subr.mxu0 0.0
        %2255 = vmatpush2.xpose.msra.mxu0 0.0
        %2256 = vmatprep.subr.mxu0 0.0
        %2257 = vmatpush2.xpose.msra.mxu0 0.0
        %2258 = vmatprep.subr.mxu0 0.0
        %2259 = vmatpush2.xpose.msra.mxu0 0.0
        %2260 = vmatprep.mubr.f32.mxu0 0.0
        %2261 = vmatmul.mubr.f32.gmra.mxu0 %v2188
        %v2262 = vpop.f32.mrf.mxu0
        %v2263 = vadd.f32 0.0, %v2262
        %v2264 = vpop.f32.mrf.mxu0
        %2265 = vdwg.mxu0
        %v2266 = vsel %vm836, %v2263, -inf
        %2267 = vmax.xlane.f32.xlu0 %v2266
        %v2268 = vpop.xlane.xlu0 %2267
        %v2269 = vsub.f32 %v2263, %v2268
        %v2270 = vmul.f32 %v2269, 1.442695
        %v2271 = vpow.pop %v2270
        %v2272 = vsel %vm836, %v2271, 0.0
        %2273 = vadd.xlane.f32.xlu0 %v2272
        %v2274 = vpop.xlane.xlu0 %2273
        %v2275 = vrcp.pop %v2274
        %v2276 = vmul.f32 %v2271, %v2275
        %v2278 = vsel %vm836, %v2276, 0
        %2280 = vmatprep.subr.mxu0 0.0
        %2281 = vmatpush1.msra.mxu0 0.0
        %2282 = vmatprep.subr.mxu0 0.0
        %2283 = vmatpush1.msra.mxu0 0.0
        %2284 = vmatprep.subr.mxu0 0.0
        %2285 = vmatpush1.msra.mxu0 0.0
        %2286 = vmatprep.subr.mxu0 0.0
        %2287 = vmatpush1.msra.mxu0 0.0
        %2288 = vmatprep.subr.mxu0 0.0
        %2289 = vmatpush1.msra.mxu0 0.0
        %2290 = vmatprep.subr.mxu0 0.0
        %2291 = vmatpush1.msra.mxu0 0.0
        %2292 = vmatprep.subr.mxu0 0.0
        %2293 = vmatpush1.msra.mxu0 0.0
        %2294 = vmatprep.subr.mxu0 0.0
        %2295 = vmatpush1.msra.mxu0 0.0
        %2296 = vmatprep.subr.mxu0 0.0
        %2297 = vmatpush1.msra.mxu0 0.0
        %2298 = vmatprep.subr.mxu0 0.0
        %2299 = vmatpush1.msra.mxu0 0.0
        %2300 = vmatprep.subr.mxu0 0.0
        %2301 = vmatpush1.msra.mxu0 0.0
        %2302 = vmatprep.subr.mxu0 0.0
        %2303 = vmatpush1.msra.mxu0 0.0
        %2304 = vmatprep.subr.mxu0 0.0
        %2305 = vmatpush1.msra.mxu0 0.0
        %2306 = vmatprep.subr.mxu0 0.0
        %2307 = vmatpush1.msra.mxu0 0.0
        %2308 = vmatprep.subr.mxu0 0.0
        %2309 = vmatpush1.msra.mxu0 %v2184
        %2310 = vmatprep.subr.mxu0 0.0
        %2311 = vmatpush1.msra.mxu0 %v2179
        %2312 = vmatprep.subr.mxu0 0.0
        %2313 = vmatpush2.msra.mxu0 0.0
        %2314 = vmatprep.subr.mxu0 0.0
        %2315 = vmatpush2.msra.mxu0 0.0
        %2316 = vmatprep.subr.mxu0 0.0
        %2317 = vmatpush2.msra.mxu0 0.0
        %2318 = vmatprep.subr.mxu0 0.0
        %2319 = vmatpush2.msra.mxu0 0.0
        %2320 = vmatprep.subr.mxu0 0.0
        %2321 = vmatpush2.msra.mxu0 0.0
        %2322 = vmatprep.subr.mxu0 0.0
        %2323 = vmatpush2.msra.mxu0 0.0
        %2324 = vmatprep.subr.mxu0 0.0
        %2325 = vmatpush2.msra.mxu0 0.0
        %2326 = vmatprep.subr.mxu0 0.0
        %2327 = vmatpush2.msra.mxu0 0.0
        %2328 = vmatprep.subr.mxu0 0.0
        %2329 = vmatpush2.msra.mxu0 0.0
        %2330 = vmatprep.subr.mxu0 0.0
        %2331 = vmatpush2.msra.mxu0 0.0
        %2332 = vmatprep.subr.mxu0 0.0
        %2333 = vmatpush2.msra.mxu0 0.0
        %2334 = vmatprep.subr.mxu0 0.0
        %2335 = vmatpush2.msra.mxu0 0.0
        %2336 = vmatprep.subr.mxu0 0.0
        %2337 = vmatpush2.msra.mxu0 0.0
        %2338 = vmatprep.subr.mxu0 0.0
        %2339 = vmatpush2.msra.mxu0 0.0
        %2340 = vmatprep.subr.mxu0 0.0
        %2341 = vmatpush2.msra.mxu0 0.0
        %2342 = vmatprep.subr.mxu0 0.0
        %2343 = vmatpush2.msra.mxu0 0.0
        %2344 = vmatprep.mubr.f32.mxu0 0.0
        %2345 = vmatmul.mubr.f32.gmra.mxu0 %v2278
        %v2346 = vpop.f32.mrf.mxu0
        %v2347 = vadd.f32 0.0, %v2346
        %v2348 = vpop.f32.mrf.mxu0
        %2349 = vdwg.mxu0
        %s2350 = scalar_lea.vmem %s5, 12
        %v2351 = vld [vmem:[%s2350] sm:$0xf]
        %v2353 = vsel %vm756, %v2347, 0
        %v2356 = vsel %vm1325, %v2351, 0
        %2358 = vmatprep.subr.mxu0 0.0
        %2359 = vmatpush1.msra.mxu0 0.0
        %2360 = vmatprep.subr.mxu0 0.0
        %2361 = vmatpush1.msra.mxu0 0.0
        %2362 = vmatprep.subr.mxu0 0.0
        %2363 = vmatpush1.msra.mxu0 0.0
        %2364 = vmatprep.subr.mxu0 0.0
        %2365 = vmatpush1.msra.mxu0 0.0
        %2366 = vmatprep.subr.mxu0 0.0
        %2367 = vmatpush1.msra.mxu0 0.0
        %2368 = vmatprep.subr.mxu0 0.0
        %2369 = vmatpush1.msra.mxu0 0.0
        %2370 = vmatprep.subr.mxu0 0.0
        %2371 = vmatpush1.msra.mxu0 0.0
        %2372 = vmatprep.subr.mxu0 0.0
        %2373 = vmatpush1.msra.mxu0 0.0
        %2374 = vmatprep.subr.mxu0 0.0
        %2375 = vmatpush1.msra.mxu0 0.0
        %2376 = vmatprep.subr.mxu0 0.0
        %2377 = vmatpush1.msra.mxu0 0.0
        %2378 = vmatprep.subr.mxu0 0.0
        %2379 = vmatpush1.msra.mxu0 0.0
        %2380 = vmatprep.subr.mxu0 0.0
        %2381 = vmatpush1.msra.mxu0 0.0
        %2382 = vmatprep.subr.mxu0 0.0
        %2383 = vmatpush1.msra.mxu0 0.0
        %2384 = vmatprep.subr.mxu0 0.0
        %2385 = vmatpush1.msra.mxu0 0.0
        %2386 = vmatprep.subr.mxu0 0.0
        %2387 = vmatpush1.msra.mxu0 0.0
        %2388 = vmatprep.subr.mxu0 0.0
        %2389 = vmatpush1.msra.mxu0 %v2356
        %2390 = vmatprep.subr.mxu0 0.0
        %2391 = vmatpush2.msra.mxu0 0.0
        %2392 = vmatprep.subr.mxu0 0.0
        %2393 = vmatpush2.msra.mxu0 0.0
        %2394 = vmatprep.subr.mxu0 0.0
        %2395 = vmatpush2.msra.mxu0 0.0
        %2396 = vmatprep.subr.mxu0 0.0
        %2397 = vmatpush2.msra.mxu0 0.0
        %2398 = vmatprep.subr.mxu0 0.0
        %2399 = vmatpush2.msra.mxu0 0.0
        %2400 = vmatprep.subr.mxu0 0.0
        %2401 = vmatpush2.msra.mxu0 0.0
        %2402 = vmatprep.subr.mxu0 0.0
        %2403 = vmatpush2.msra.mxu0 0.0
        %2404 = vmatprep.subr.mxu0 0.0
        %2405 = vmatpush2.msra.mxu0 0.0
        %2406 = vmatprep.subr.mxu0 0.0
        %2407 = vmatpush2.msra.mxu0 0.0
        %2408 = vmatprep.subr.mxu0 0.0
        %2409 = vmatpush2.msra.mxu0 0.0
        %2410 = vmatprep.subr.mxu0 0.0
        %2411 = vmatpush2.msra.mxu0 0.0
        %2412 = vmatprep.subr.mxu0 0.0
        %2413 = vmatpush2.msra.mxu0 0.0
        %2414 = vmatprep.subr.mxu0 0.0
        %2415 = vmatpush2.msra.mxu0 0.0
        %2416 = vmatprep.subr.mxu0 0.0
        %2417 = vmatpush2.msra.mxu0 0.0
        %2418 = vmatprep.subr.mxu0 0.0
        %2419 = vmatpush2.msra.mxu0 0.0
        %2420 = vmatprep.subr.mxu0 0.0
        %2421 = vmatpush2.msra.mxu0 0.0
        %2422 = vmatprep.mubr.f32.mxu0 0.0
        %2423 = vmatmul.mubr.f32.gmra.mxu0 %v2353
        %v2424 = vpop.f32.mrf.mxu0
        %v2425 = vadd.f32 0.0, %v2424
        %v2426 = vpop.f32.mrf.mxu0
        %2427 = vdwg.mxu0
        %v2428 = vadd.f32 %v1951, %v2425
        %s2429 = scalar_lea.vmem %s2, 128
        %v2430 = vld [vmem:[%s2429] sm:$0xff]
        %v2431 = vld [vmem:[%s2429 + $0x8] sm:$0xff]
        %v2432 = vld [vmem:[%s2429 + $0x10] sm:$0xff]
        %v2433 = vld [vmem:[%s2429 + $0x18] sm:$0xff]
        %2434 = vmatprep.subr.mxu0 0.0
        %2435 = vmatpush1.msra.mxu0 0.0
        %2436 = vmatprep.subr.mxu0 0.0
        %2437 = vmatpush1.msra.mxu0 0.0
        %2438 = vmatprep.subr.mxu0 0.0
        %2439 = vmatpush1.msra.mxu0 0.0
        %2440 = vmatprep.subr.mxu0 0.0
        %2441 = vmatpush1.msra.mxu0 0.0
        %2442 = vmatprep.subr.mxu0 0.0
        %2443 = vmatpush1.msra.mxu0 0.0
        %2444 = vmatprep.subr.mxu0 0.0
        %2445 = vmatpush1.msra.mxu0 0.0
        %2446 = vmatprep.subr.mxu0 0.0
        %2447 = vmatpush1.msra.mxu0 0.0
        %2448 = vmatprep.subr.mxu0 0.0
        %2449 = vmatpush1.msra.mxu0 0.0
        %2450 = vmatprep.subr.mxu0 0.0
        %2451 = vmatpush1.msra.mxu0 0.0
        %2452 = vmatprep.subr.mxu0 0.0
        %2453 = vmatpush1.msra.mxu0 0.0
        %2454 = vmatprep.subr.mxu0 0.0
        %2455 = vmatpush1.msra.mxu0 0.0
        %2456 = vmatprep.subr.mxu0 0.0
        %2457 = vmatpush1.msra.mxu0 0.0
        %2458 = vmatprep.subr.mxu0 0.0
        %2459 = vmatpush1.msra.mxu0 %v2433
        %2460 = vmatprep.subr.mxu0 0.0
        %2461 = vmatpush1.msra.mxu0 %v2432
        %2462 = vmatprep.subr.mxu0 0.0
        %2463 = vmatpush1.msra.mxu0 %v2431
        %2464 = vmatprep.subr.mxu0 0.0
        %2465 = vmatpush1.msra.mxu0 %v2430
        %2466 = vmatprep.subr.mxu0 0.0
        %2467 = vmatpush2.msra.mxu0 0.0
        %2468 = vmatprep.subr.mxu0 0.0
        %2469 = vmatpush2.msra.mxu0 0.0
        %2470 = vmatprep.subr.mxu0 0.0
        %2471 = vmatpush2.msra.mxu0 0.0
        %2472 = vmatprep.subr.mxu0 0.0
        %2473 = vmatpush2.msra.mxu0 0.0
        %2474 = vmatprep.subr.mxu0 0.0
        %2475 = vmatpush2.msra.mxu0 0.0
        %2476 = vmatprep.subr.mxu0 0.0
        %2477 = vmatpush2.msra.mxu0 0.0
        %2478 = vmatprep.subr.mxu0 0.0
        %2479 = vmatpush2.msra.mxu0 0.0
        %2480 = vmatprep.subr.mxu0 0.0
        %2481 = vmatpush2.msra.mxu0 0.0
        %2482 = vmatprep.subr.mxu0 0.0
        %2483 = vmatpush2.msra.mxu0 0.0
        %2484 = vmatprep.subr.mxu0 0.0
        %2485 = vmatpush2.msra.mxu0 0.0
        %2486 = vmatprep.subr.mxu0 0.0
        %2487 = vmatpush2.msra.mxu0 0.0
        %2488 = vmatprep.subr.mxu0 0.0
        %2489 = vmatpush2.msra.mxu0 0.0
        %2490 = vmatprep.subr.mxu0 0.0
        %2491 = vmatpush2.msra.mxu0 0.0
        %2492 = vmatprep.subr.mxu0 0.0
        %2493 = vmatpush2.msra.mxu0 0.0
        %2494 = vmatprep.subr.mxu0 0.0
        %2495 = vmatpush2.msra.mxu0 0.0
        %2496 = vmatprep.subr.mxu0 0.0
        %2497 = vmatpush2.msra.mxu0 0.0
        %2498 = vmatprep.mubr.f32.mxu0 0.0
        %2499 = vmatmul.mubr.f32.gmra.mxu0 %v520
        %v2500 = vpop.f32.mrf.mxu0
        %v2501 = vadd.f32 0.0, %v2500
        %v2502 = vpop.f32.mrf.mxu0
        %2503 = vdwg.mxu0
        %s2504 = scalar_lea.vmem %s3, 128
        %v2505 = vld [vmem:[%s2504] sm:$0xff]
        %v2506 = vld [vmem:[%s2504 + $0x8] sm:$0xff]
        %v2507 = vld [vmem:[%s2504 + $0x10] sm:$0xff]
        %v2508 = vld [vmem:[%s2504 + $0x18] sm:$0xff]
        %2509 = vmatprep.subr.mxu0 0.0
        %2510 = vmatpush1.msra.mxu0 0.0
        %2511 = vmatprep.subr.mxu0 0.0
        %2512 = vmatpush1.msra.mxu0 0.0
        %2513 = vmatprep.subr.mxu0 0.0
        %2514 = vmatpush1.msra.mxu0 0.0
        %2515 = vmatprep.subr.mxu0 0.0
        %2516 = vmatpush1.msra.mxu0 0.0
        %2517 = vmatprep.subr.mxu0 0.0
        %2518 = vmatpush1.msra.mxu0 0.0
        %2519 = vmatprep.subr.mxu0 0.0
        %2520 = vmatpush1.msra.mxu0 0.0
        %2521 = vmatprep.subr.mxu0 0.0
        %2522 = vmatpush1.msra.mxu0 0.0
        %2523 = vmatprep.subr.mxu0 0.0
        %2524 = vmatpush1.msra.mxu0 0.0
        %2525 = vmatprep.subr.mxu0 0.0
        %2526 = vmatpush1.msra.mxu0 0.0
        %2527 = vmatprep.subr.mxu0 0.0
        %2528 = vmatpush1.msra.mxu0 0.0
        %2529 = vmatprep.subr.mxu0 0.0
        %2530 = vmatpush1.msra.mxu0 0.0
        %2531 = vmatprep.subr.mxu0 0.0
        %2532 = vmatpush1.msra.mxu0 0.0
        %2533 = vmatprep.subr.mxu0 0.0
        %2534 = vmatpush1.msra.mxu0 %v2508
        %2535 = vmatprep.subr.mxu0 0.0
        %2536 = vmatpush1.msra.mxu0 %v2507
        %2537 = vmatprep.subr.mxu0 0.0
        %2538 = vmatpush1.msra.mxu0 %v2506
        %2539 = vmatprep.subr.mxu0 0.0
        %2540 = vmatpush1.msra.mxu0 %v2505
        %2541 = vmatprep.subr.mxu0 0.0
        %2542 = vmatpush2.msra.mxu0 0.0
        %2543 = vmatprep.subr.mxu0 0.0
        %2544 = vmatpush2.msra.mxu0 0.0
        %2545 = vmatprep.subr.mxu0 0.0
        %2546 = vmatpush2.msra.mxu0 0.0
        %2547 = vmatprep.subr.mxu0 0.0
        %2548 = vmatpush2.msra.mxu0 0.0
        %2549 = vmatprep.subr.mxu0 0.0
        %2550 = vmatpush2.msra.mxu0 0.0
        %2551 = vmatprep.subr.mxu0 0.0
        %2552 = vmatpush2.msra.mxu0 0.0
        %2553 = vmatprep.subr.mxu0 0.0
        %2554 = vmatpush2.msra.mxu0 0.0
        %2555 = vmatprep.subr.mxu0 0.0
        %2556 = vmatpush2.msra.mxu0 0.0
        %2557 = vmatprep.subr.mxu0 0.0
        %2558 = vmatpush2.msra.mxu0 0.0
        %2559 = vmatprep.subr.mxu0 0.0
        %2560 = vmatpush2.msra.mxu0 0.0
        %2561 = vmatprep.subr.mxu0 0.0
        %2562 = vmatpush2.msra.mxu0 0.0
        %2563 = vmatprep.subr.mxu0 0.0
        %2564 = vmatpush2.msra.mxu0 0.0
        %2565 = vmatprep.subr.mxu0 0.0
        %2566 = vmatpush2.msra.mxu0 0.0
        %2567 = vmatprep.subr.mxu0 0.0
        %2568 = vmatpush2.msra.mxu0 0.0
        %2569 = vmatprep.subr.mxu0 0.0
        %2570 = vmatpush2.msra.mxu0 0.0
        %2571 = vmatprep.subr.mxu0 0.0
        %2572 = vmatpush2.msra.mxu0 0.0
        %2573 = vmatprep.mubr.f32.mxu0 0.0
        %2574 = vmatmul.mubr.f32.gmra.mxu0 %v597
        %v2575 = vpop.f32.mrf.mxu0
        %v2576 = vadd.f32 0.0, %v2575
        %v2577 = vpop.f32.mrf.mxu0
        %2578 = vmatprep.mubr.f32.mxu0 0.0
        %2579 = vmatmul.mubr.f32.gmra.mxu0 %v600
        %v2580 = vpop.f32.mrf.mxu0
        %v2581 = vadd.f32 0.0, %v2580
        %v2582 = vpop.f32.mrf.mxu0
        %2583 = vdwg.mxu0
        %s2584 = scalar_lea.vmem %s4, 128
        %v2585 = vld [vmem:[%s2584] sm:$0xff]
        %v2586 = vld [vmem:[%s2584 + $0x8] sm:$0xff]
        %v2587 = vld [vmem:[%s2584 + $0x10] sm:$0xff]
        %v2588 = vld [vmem:[%s2584 + $0x18] sm:$0xff]
        %2589 = vmatprep.subr.mxu0 0.0
        %2590 = vmatpush1.msra.mxu0 0.0
        %2591 = vmatprep.subr.mxu0 0.0
        %2592 = vmatpush1.msra.mxu0 0.0
        %2593 = vmatprep.subr.mxu0 0.0
        %2594 = vmatpush1.msra.mxu0 0.0
        %2595 = vmatprep.subr.mxu0 0.0
        %2596 = vmatpush1.msra.mxu0 0.0
        %2597 = vmatprep.subr.mxu0 0.0
        %2598 = vmatpush1.msra.mxu0 0.0
        %2599 = vmatprep.subr.mxu0 0.0
        %2600 = vmatpush1.msra.mxu0 0.0
        %2601 = vmatprep.subr.mxu0 0.0
        %2602 = vmatpush1.msra.mxu0 0.0
        %2603 = vmatprep.subr.mxu0 0.0
        %2604 = vmatpush1.msra.mxu0 0.0
        %2605 = vmatprep.subr.mxu0 0.0
        %2606 = vmatpush1.msra.mxu0 0.0
        %2607 = vmatprep.subr.mxu0 0.0
        %2608 = vmatpush1.msra.mxu0 0.0
        %2609 = vmatprep.subr.mxu0 0.0
        %2610 = vmatpush1.msra.mxu0 0.0
        %2611 = vmatprep.subr.mxu0 0.0
        %2612 = vmatpush1.msra.mxu0 0.0
        %2613 = vmatprep.subr.mxu0 0.0
        %2614 = vmatpush1.msra.mxu0 %v2588
        %2615 = vmatprep.subr.mxu0 0.0
        %2616 = vmatpush1.msra.mxu0 %v2587
        %2617 = vmatprep.subr.mxu0 0.0
        %2618 = vmatpush1.msra.mxu0 %v2586
        %2619 = vmatprep.subr.mxu0 0.0
        %2620 = vmatpush1.msra.mxu0 %v2585
        %2621 = vmatprep.subr.mxu0 0.0
        %2622 = vmatpush2.msra.mxu0 0.0
        %2623 = vmatprep.subr.mxu0 0.0
        %2624 = vmatpush2.msra.mxu0 0.0
        %2625 = vmatprep.subr.mxu0 0.0
        %2626 = vmatpush2.msra.mxu0 0.0
        %2627 = vmatprep.subr.mxu0 0.0
        %2628 = vmatpush2.msra.mxu0 0.0
        %2629 = vmatprep.subr.mxu0 0.0
        %2630 = vmatpush2.msra.mxu0 0.0
        %2631 = vmatprep.subr.mxu0 0.0
        %2632 = vmatpush2.msra.mxu0 0.0
        %2633 = vmatprep.subr.mxu0 0.0
        %2634 = vmatpush2.msra.mxu0 0.0
        %2635 = vmatprep.subr.mxu0 0.0
        %2636 = vmatpush2.msra.mxu0 0.0
        %2637 = vmatprep.subr.mxu0 0.0
        %2638 = vmatpush2.msra.mxu0 0.0
        %2639 = vmatprep.subr.mxu0 0.0
        %2640 = vmatpush2.msra.mxu0 0.0
        %2641 = vmatprep.subr.mxu0 0.0
        %2642 = vmatpush2.msra.mxu0 0.0
        %2643 = vmatprep.subr.mxu0 0.0
        %2644 = vmatpush2.msra.mxu0 0.0
        %2645 = vmatprep.subr.mxu0 0.0
        %2646 = vmatpush2.msra.mxu0 0.0
        %2647 = vmatprep.subr.mxu0 0.0
        %2648 = vmatpush2.msra.mxu0 0.0
        %2649 = vmatprep.subr.mxu0 0.0
        %2650 = vmatpush2.msra.mxu0 0.0
        %2651 = vmatprep.subr.mxu0 0.0
        %2652 = vmatpush2.msra.mxu0 0.0
        %2653 = vmatprep.mubr.f32.mxu0 0.0
        %2654 = vmatmul.mubr.f32.gmra.mxu0 %v597
        %v2655 = vpop.f32.mrf.mxu0
        %v2656 = vadd.f32 0.0, %v2655
        %v2657 = vpop.f32.mrf.mxu0
        %2658 = vmatprep.mubr.f32.mxu0 0.0
        %2659 = vmatmul.mubr.f32.gmra.mxu0 %v600
        %v2660 = vpop.f32.mrf.mxu0
        %v2661 = vadd.f32 0.0, %v2660
        %v2662 = vpop.f32.mrf.mxu0
        %2663 = vdwg.mxu0
        %v2665 = vsel %vm756, %v2501, 0
        %v2668 = vsel %vm756, %v2576, 0
        %v2671 = vsel %vm756, %v2581, 0
        %2673 = vmatprep.subr.mxu0 0.0
        %2674 = vmatpush1.xpose.msra.mxu0 0.0
        %2675 = vmatprep.subr.mxu0 0.0
        %2676 = vmatpush1.xpose.msra.mxu0 0.0
        %2677 = vmatprep.subr.mxu0 0.0
        %2678 = vmatpush1.xpose.msra.mxu0 0.0
        %2679 = vmatprep.subr.mxu0 0.0
        %2680 = vmatpush1.xpose.msra.mxu0 0.0
        %2681 = vmatprep.subr.mxu0 0.0
        %2682 = vmatpush1.xpose.msra.mxu0 0.0
        %2683 = vmatprep.subr.mxu0 0.0
        %2684 = vmatpush1.xpose.msra.mxu0 0.0
        %2685 = vmatprep.subr.mxu0 0.0
        %2686 = vmatpush1.xpose.msra.mxu0 0.0
        %2687 = vmatprep.subr.mxu0 0.0
        %2688 = vmatpush1.xpose.msra.mxu0 0.0
        %2689 = vmatprep.subr.mxu0 0.0
        %2690 = vmatpush1.xpose.msra.mxu0 0.0
        %2691 = vmatprep.subr.mxu0 0.0
        %2692 = vmatpush1.xpose.msra.mxu0 0.0
        %2693 = vmatprep.subr.mxu0 0.0
        %2694 = vmatpush1.xpose.msra.mxu0 0.0
        %2695 = vmatprep.subr.mxu0 0.0
        %2696 = vmatpush1.xpose.msra.mxu0 0.0
        %2697 = vmatprep.subr.mxu0 0.0
        %2698 = vmatpush1.xpose.msra.mxu0 0.0
        %2699 = vmatprep.subr.mxu0 0.0
        %2700 = vmatpush1.xpose.msra.mxu0 0.0
        %2701 = vmatprep.subr.mxu0 0.0
        %2702 = vmatpush1.xpose.msra.mxu0 %v2671
        %2703 = vmatprep.subr.mxu0 0.0
        %2704 = vmatpush1.xpose.msra.mxu0 %v2668
        %2705 = vmatprep.subr.mxu0 0.0
        %2706 = vmatpush2.xpose.msra.mxu0 0.0
        %2707 = vmatprep.subr.mxu0 0.0
        %2708 = vmatpush2.xpose.msra.mxu0 0.0
        %2709 = vmatprep.subr.mxu0 0.0
        %2710 = vmatpush2.xpose.msra.mxu0 0.0
        %2711 = vmatprep.subr.mxu0 0.0
        %2712 = vmatpush2.xpose.msra.mxu0 0.0
        %2713 = vmatprep.subr.mxu0 0.0
        %2714 = vmatpush2.xpose.msra.mxu0 0.0
        %2715 = vmatprep.subr.mxu0 0.0
        %2716 = vmatpush2.xpose.msra.mxu0 0.0
        %2717 = vmatprep.subr.mxu0 0.0
        %2718 = vmatpush2.xpose.msra.mxu0 0.0
        %2719 = vmatprep.subr.mxu0 0.0
        %2720 = vmatpush2.xpose.msra.mxu0 0.0
        %2721 = vmatprep.subr.mxu0 0.0
        %2722 = vmatpush2.xpose.msra.mxu0 0.0
        %2723 = vmatprep.subr.mxu0 0.0
        %2724 = vmatpush2.xpose.msra.mxu0 0.0
        %2725 = vmatprep.subr.mxu0 0.0
        %2726 = vmatpush2.xpose.msra.mxu0 0.0
        %2727 = vmatprep.subr.mxu0 0.0
        %2728 = vmatpush2.xpose.msra.mxu0 0.0
        %2729 = vmatprep.subr.mxu0 0.0
        %2730 = vmatpush2.xpose.msra.mxu0 0.0
        %2731 = vmatprep.subr.mxu0 0.0
        %2732 = vmatpush2.xpose.msra.mxu0 0.0
        %2733 = vmatprep.subr.mxu0 0.0
        %2734 = vmatpush2.xpose.msra.mxu0 0.0
        %2735 = vmatprep.subr.mxu0 0.0
        %2736 = vmatpush2.xpose.msra.mxu0 0.0
        %2737 = vmatprep.mubr.f32.mxu0 0.0
        %2738 = vmatmul.mubr.f32.gmra.mxu0 %v2665
        %v2739 = vpop.f32.mrf.mxu0
        %v2740 = vadd.f32 0.0, %v2739
        %v2741 = vpop.f32.mrf.mxu0
        %2742 = vdwg.mxu0
        %v2743 = vsel %vm836, %v2740, -inf
        %2744 = vmax.xlane.f32.xlu0 %v2743
        %v2745 = vpop.xlane.xlu0 %2744
        %v2746 = vsub.f32 %v2740, %v2745
        %v2747 = vmul.f32 %v2746, 1.442695
        %v2748 = vpow.pop %v2747
        %v2749 = vsel %vm836, %v2748, 0.0
        %2750 = vadd.xlane.f32.xlu0 %v2749
        %v2751 = vpop.xlane.xlu0 %2750
        %v2752 = vrcp.pop %v2751
        %v2753 = vmul.f32 %v2748, %v2752
        %v2755 = vsel %vm836, %v2753, 0
        %2757 = vmatprep.subr.mxu0 0.0
        %2758 = vmatpush1.msra.mxu0 0.0
        %2759 = vmatprep.subr.mxu0 0.0
        %2760 = vmatpush1.msra.mxu0 0.0
        %2761 = vmatprep.subr.mxu0 0.0
        %2762 = vmatpush1.msra.mxu0 0.0
        %2763 = vmatprep.subr.mxu0 0.0
        %2764 = vmatpush1.msra.mxu0 0.0
        %2765 = vmatprep.subr.mxu0 0.0
        %2766 = vmatpush1.msra.mxu0 0.0
        %2767 = vmatprep.subr.mxu0 0.0
        %2768 = vmatpush1.msra.mxu0 0.0
        %2769 = vmatprep.subr.mxu0 0.0
        %2770 = vmatpush1.msra.mxu0 0.0
        %2771 = vmatprep.subr.mxu0 0.0
        %2772 = vmatpush1.msra.mxu0 0.0
        %2773 = vmatprep.subr.mxu0 0.0
        %2774 = vmatpush1.msra.mxu0 0.0
        %2775 = vmatprep.subr.mxu0 0.0
        %2776 = vmatpush1.msra.mxu0 0.0
        %2777 = vmatprep.subr.mxu0 0.0
        %2778 = vmatpush1.msra.mxu0 0.0
        %2779 = vmatprep.subr.mxu0 0.0
        %2780 = vmatpush1.msra.mxu0 0.0
        %2781 = vmatprep.subr.mxu0 0.0
        %2782 = vmatpush1.msra.mxu0 0.0
        %2783 = vmatprep.subr.mxu0 0.0
        %2784 = vmatpush1.msra.mxu0 0.0
        %2785 = vmatprep.subr.mxu0 0.0
        %2786 = vmatpush1.msra.mxu0 %v2661
        %2787 = vmatprep.subr.mxu0 0.0
        %2788 = vmatpush1.msra.mxu0 %v2656
        %2789 = vmatprep.subr.mxu0 0.0
        %2790 = vmatpush2.msra.mxu0 0.0
        %2791 = vmatprep.subr.mxu0 0.0
        %2792 = vmatpush2.msra.mxu0 0.0
        %2793 = vmatprep.subr.mxu0 0.0
        %2794 = vmatpush2.msra.mxu0 0.0
        %2795 = vmatprep.subr.mxu0 0.0
        %2796 = vmatpush2.msra.mxu0 0.0
        %2797 = vmatprep.subr.mxu0 0.0
        %2798 = vmatpush2.msra.mxu0 0.0
        %2799 = vmatprep.subr.mxu0 0.0
        %2800 = vmatpush2.msra.mxu0 0.0
        %2801 = vmatprep.subr.mxu0 0.0
        %2802 = vmatpush2.msra.mxu0 0.0
        %2803 = vmatprep.subr.mxu0 0.0
        %2804 = vmatpush2.msra.mxu0 0.0
        %2805 = vmatprep.subr.mxu0 0.0
        %2806 = vmatpush2.msra.mxu0 0.0
        %2807 = vmatprep.subr.mxu0 0.0
        %2808 = vmatpush2.msra.mxu0 0.0
        %2809 = vmatprep.subr.mxu0 0.0
        %2810 = vmatpush2.msra.mxu0 0.0
        %2811 = vmatprep.subr.mxu0 0.0
        %2812 = vmatpush2.msra.mxu0 0.0
        %2813 = vmatprep.subr.mxu0 0.0
        %2814 = vmatpush2.msra.mxu0 0.0
        %2815 = vmatprep.subr.mxu0 0.0
        %2816 = vmatpush2.msra.mxu0 0.0
        %2817 = vmatprep.subr.mxu0 0.0
        %2818 = vmatpush2.msra.mxu0 0.0
        %2819 = vmatprep.subr.mxu0 0.0
        %2820 = vmatpush2.msra.mxu0 0.0
        %2821 = vmatprep.mubr.f32.mxu0 0.0
        %2822 = vmatmul.mubr.f32.gmra.mxu0 %v2755
        %v2823 = vpop.f32.mrf.mxu0
        %v2824 = vadd.f32 0.0, %v2823
        %v2825 = vpop.f32.mrf.mxu0
        %2826 = vdwg.mxu0
        %s2827 = scalar_lea.vmem %s5, 16
        %v2828 = vld [vmem:[%s2827] sm:$0xf]
        %v2830 = vsel %vm756, %v2824, 0
        %v2833 = vsel %vm1325, %v2828, 0
        %2835 = vmatprep.subr.mxu0 0.0
        %2836 = vmatpush1.msra.mxu0 0.0
        %2837 = vmatprep.subr.mxu0 0.0
        %2838 = vmatpush1.msra.mxu0 0.0
        %2839 = vmatprep.subr.mxu0 0.0
        %2840 = vmatpush1.msra.mxu0 0.0
        %2841 = vmatprep.subr.mxu0 0.0
        %2842 = vmatpush1.msra.mxu0 0.0
        %2843 = vmatprep.subr.mxu0 0.0
        %2844 = vmatpush1.msra.mxu0 0.0
        %2845 = vmatprep.subr.mxu0 0.0
        %2846 = vmatpush1.msra.mxu0 0.0
        %2847 = vmatprep.subr.mxu0 0.0
        %2848 = vmatpush1.msra.mxu0 0.0
        %2849 = vmatprep.subr.mxu0 0.0
        %2850 = vmatpush1.msra.mxu0 0.0
        %2851 = vmatprep.subr.mxu0 0.0
        %2852 = vmatpush1.msra.mxu0 0.0
        %2853 = vmatprep.subr.mxu0 0.0
        %2854 = vmatpush1.msra.mxu0 0.0
        %2855 = vmatprep.subr.mxu0 0.0
        %2856 = vmatpush1.msra.mxu0 0.0
        %2857 = vmatprep.subr.mxu0 0.0
        %2858 = vmatpush1.msra.mxu0 0.0
        %2859 = vmatprep.subr.mxu0 0.0
        %2860 = vmatpush1.msra.mxu0 0.0
        %2861 = vmatprep.subr.mxu0 0.0
        %2862 = vmatpush1.msra.mxu0 0.0
        %2863 = vmatprep.subr.mxu0 0.0
        %2864 = vmatpush1.msra.mxu0 0.0
        %2865 = vmatprep.subr.mxu0 0.0
        %2866 = vmatpush1.msra.mxu0 %v2833
        %2867 = vmatprep.subr.mxu0 0.0
        %2868 = vmatpush2.msra.mxu0 0.0
        %2869 = vmatprep.subr.mxu0 0.0
        %2870 = vmatpush2.msra.mxu0 0.0
        %2871 = vmatprep.subr.mxu0 0.0
        %2872 = vmatpush2.msra.mxu0 0.0
        %2873 = vmatprep.subr.mxu0 0.0
        %2874 = vmatpush2.msra.mxu0 0.0
        %2875 = vmatprep.subr.mxu0 0.0
        %2876 = vmatpush2.msra.mxu0 0.0
        %2877 = vmatprep.subr.mxu0 0.0
        %2878 = vmatpush2.msra.mxu0 0.0
        %2879 = vmatprep.subr.mxu0 0.0
        %2880 = vmatpush2.msra.mxu0 0.0
        %2881 = vmatprep.subr.mxu0 0.0
        %2882 = vmatpush2.msra.mxu0 0.0
        %2883 = vmatprep.subr.mxu0 0.0
        %2884 = vmatpush2.msra.mxu0 0.0
        %2885 = vmatprep.subr.mxu0 0.0
        %2886 = vmatpush2.msra.mxu0 0.0
        %2887 = vmatprep.subr.mxu0 0.0
        %2888 = vmatpush2.msra.mxu0 0.0
        %2889 = vmatprep.subr.mxu0 0.0
        %2890 = vmatpush2.msra.mxu0 0.0
        %2891 = vmatprep.subr.mxu0 0.0
        %2892 = vmatpush2.msra.mxu0 0.0
        %2893 = vmatprep.subr.mxu0 0.0
        %2894 = vmatpush2.msra.mxu0 0.0
        %2895 = vmatprep.subr.mxu0 0.0
        %2896 = vmatpush2.msra.mxu0 0.0
        %2897 = vmatprep.subr.mxu0 0.0
        %2898 = vmatpush2.msra.mxu0 0.0
        %2899 = vmatprep.mubr.f32.mxu0 0.0
        %2900 = vmatmul.mubr.f32.gmra.mxu0 %v2830
        %v2901 = vpop.f32.mrf.mxu0
        %v2902 = vadd.f32 0.0, %v2901
        %v2903 = vpop.f32.mrf.mxu0
        %2904 = vdwg.mxu0
        %v2905 = vadd.f32 %v2428, %v2902
        %s2906 = scalar_lea.vmem %s2, 160
        %v2907 = vld [vmem:[%s2906] sm:$0xff]
        %v2908 = vld [vmem:[%s2906 + $0x8] sm:$0xff]
        %v2909 = vld [vmem:[%s2906 + $0x10] sm:$0xff]
        %v2910 = vld [vmem:[%s2906 + $0x18] sm:$0xff]
        %2911 = vmatprep.subr.mxu0 0.0
        %2912 = vmatpush1.msra.mxu0 0.0
        %2913 = vmatprep.subr.mxu0 0.0
        %2914 = vmatpush1.msra.mxu0 0.0
        %2915 = vmatprep.subr.mxu0 0.0
        %2916 = vmatpush1.msra.mxu0 0.0
        %2917 = vmatprep.subr.mxu0 0.0
        %2918 = vmatpush1.msra.mxu0 0.0
        %2919 = vmatprep.subr.mxu0 0.0
        %2920 = vmatpush1.msra.mxu0 0.0
        %2921 = vmatprep.subr.mxu0 0.0
        %2922 = vmatpush1.msra.mxu0 0.0
        %2923 = vmatprep.subr.mxu0 0.0
        %2924 = vmatpush1.msra.mxu0 0.0
        %2925 = vmatprep.subr.mxu0 0.0
        %2926 = vmatpush1.msra.mxu0 0.0
        %2927 = vmatprep.subr.mxu0 0.0
        %2928 = vmatpush1.msra.mxu0 0.0
        %2929 = vmatprep.subr.mxu0 0.0
        %2930 = vmatpush1.msra.mxu0 0.0
        %2931 = vmatprep.subr.mxu0 0.0
        %2932 = vmatpush1.msra.mxu0 0.0
        %2933 = vmatprep.subr.mxu0 0.0
        %2934 = vmatpush1.msra.mxu0 0.0
        %2935 = vmatprep.subr.mxu0 0.0
        %2936 = vmatpush1.msra.mxu0 %v2910
        %2937 = vmatprep.subr.mxu0 0.0
        %2938 = vmatpush1.msra.mxu0 %v2909
        %2939 = vmatprep.subr.mxu0 0.0
        %2940 = vmatpush1.msra.mxu0 %v2908
        %2941 = vmatprep.subr.mxu0 0.0
        %2942 = vmatpush1.msra.mxu0 %v2907
        %2943 = vmatprep.subr.mxu0 0.0
        %2944 = vmatpush2.msra.mxu0 0.0
        %2945 = vmatprep.subr.mxu0 0.0
        %2946 = vmatpush2.msra.mxu0 0.0
        %2947 = vmatprep.subr.mxu0 0.0
        %2948 = vmatpush2.msra.mxu0 0.0
        %2949 = vmatprep.subr.mxu0 0.0
        %2950 = vmatpush2.msra.mxu0 0.0
        %2951 = vmatprep.subr.mxu0 0.0
        %2952 = vmatpush2.msra.mxu0 0.0
        %2953 = vmatprep.subr.mxu0 0.0
        %2954 = vmatpush2.msra.mxu0 0.0
        %2955 = vmatprep.subr.mxu0 0.0
        %2956 = vmatpush2.msra.mxu0 0.0
        %2957 = vmatprep.subr.mxu0 0.0
        %2958 = vmatpush2.msra.mxu0 0.0
        %2959 = vmatprep.subr.mxu0 0.0
        %2960 = vmatpush2.msra.mxu0 0.0
        %2961 = vmatprep.subr.mxu0 0.0
        %2962 = vmatpush2.msra.mxu0 0.0
        %2963 = vmatprep.subr.mxu0 0.0
        %2964 = vmatpush2.msra.mxu0 0.0
        %2965 = vmatprep.subr.mxu0 0.0
        %2966 = vmatpush2.msra.mxu0 0.0
        %2967 = vmatprep.subr.mxu0 0.0
        %2968 = vmatpush2.msra.mxu0 0.0
        %2969 = vmatprep.subr.mxu0 0.0
        %2970 = vmatpush2.msra.mxu0 0.0
        %2971 = vmatprep.subr.mxu0 0.0
        %2972 = vmatpush2.msra.mxu0 0.0
        %2973 = vmatprep.subr.mxu0 0.0
        %2974 = vmatpush2.msra.mxu0 0.0
        %2975 = vmatprep.mubr.f32.mxu0 0.0
        %2976 = vmatmul.mubr.f32.gmra.mxu0 %v520
        %v2977 = vpop.f32.mrf.mxu0
        %v2978 = vadd.f32 0.0, %v2977
        %v2979 = vpop.f32.mrf.mxu0
        %2980 = vdwg.mxu0
        %s2981 = scalar_lea.vmem %s3, 160
        %v2982 = vld [vmem:[%s2981] sm:$0xff]
        %v2983 = vld [vmem:[%s2981 + $0x8] sm:$0xff]
        %v2984 = vld [vmem:[%s2981 + $0x10] sm:$0xff]
        %v2985 = vld [vmem:[%s2981 + $0x18] sm:$0xff]
        %2986 = vmatprep.subr.mxu0 0.0
        %2987 = vmatpush1.msra.mxu0 0.0
        %2988 = vmatprep.subr.mxu0 0.0
        %2989 = vmatpush1.msra.mxu0 0.0
        %2990 = vmatprep.subr.mxu0 0.0
        %2991 = vmatpush1.msra.mxu0 0.0
        %2992 = vmatprep.subr.mxu0 0.0
        %2993 = vmatpush1.msra.mxu0 0.0
        %2994 = vmatprep.subr.mxu0 0.0
        %2995 = vmatpush1.msra.mxu0 0.0
        %2996 = vmatprep.subr.mxu0 0.0
        %2997 = vmatpush1.msra.mxu0 0.0
        %2998 = vmatprep.subr.mxu0 0.0
        %2999 = vmatpush1.msra.mxu0 0.0
        %3000 = vmatprep.subr.mxu0 0.0
        %3001 = vmatpush1.msra.mxu0 0.0
        %3002 = vmatprep.subr.mxu0 0.0
        %3003 = vmatpush1.msra.mxu0 0.0
        %3004 = vmatprep.subr.mxu0 0.0
        %3005 = vmatpush1.msra.mxu0 0.0
        %3006 = vmatprep.subr.mxu0 0.0
        %3007 = vmatpush1.msra.mxu0 0.0
        %3008 = vmatprep.subr.mxu0 0.0
        %3009 = vmatpush1.msra.mxu0 0.0
        %3010 = vmatprep.subr.mxu0 0.0
        %3011 = vmatpush1.msra.mxu0 %v2985
        %3012 = vmatprep.subr.mxu0 0.0
        %3013 = vmatpush1.msra.mxu0 %v2984
        %3014 = vmatprep.subr.mxu0 0.0
        %3015 = vmatpush1.msra.mxu0 %v2983
        %3016 = vmatprep.subr.mxu0 0.0
        %3017 = vmatpush1.msra.mxu0 %v2982
        %3018 = vmatprep.subr.mxu0 0.0
        %3019 = vmatpush2.msra.mxu0 0.0
        %3020 = vmatprep.subr.mxu0 0.0
        %3021 = vmatpush2.msra.mxu0 0.0
        %3022 = vmatprep.subr.mxu0 0.0
        %3023 = vmatpush2.msra.mxu0 0.0
        %3024 = vmatprep.subr.mxu0 0.0
        %3025 = vmatpush2.msra.mxu0 0.0
        %3026 = vmatprep.subr.mxu0 0.0
        %3027 = vmatpush2.msra.mxu0 0.0
        %3028 = vmatprep.subr.mxu0 0.0
        %3029 = vmatpush2.msra.mxu0 0.0
        %3030 = vmatprep.subr.mxu0 0.0
        %3031 = vmatpush2.msra.mxu0 0.0
        %3032 = vmatprep.subr.mxu0 0.0
        %3033 = vmatpush2.msra.mxu0 0.0
        %3034 = vmatprep.subr.mxu0 0.0
        %3035 = vmatpush2.msra.mxu0 0.0
        %3036 = vmatprep.subr.mxu0 0.0
        %3037 = vmatpush2.msra.mxu0 0.0
        %3038 = vmatprep.subr.mxu0 0.0
        %3039 = vmatpush2.msra.mxu0 0.0
        %3040 = vmatprep.subr.mxu0 0.0
        %3041 = vmatpush2.msra.mxu0 0.0
        %3042 = vmatprep.subr.mxu0 0.0
        %3043 = vmatpush2.msra.mxu0 0.0
        %3044 = vmatprep.subr.mxu0 0.0
        %3045 = vmatpush2.msra.mxu0 0.0
        %3046 = vmatprep.subr.mxu0 0.0
        %3047 = vmatpush2.msra.mxu0 0.0
        %3048 = vmatprep.subr.mxu0 0.0
        %3049 = vmatpush2.msra.mxu0 0.0
        %3050 = vmatprep.mubr.f32.mxu0 0.0
        %3051 = vmatmul.mubr.f32.gmra.mxu0 %v597
        %v3052 = vpop.f32.mrf.mxu0
        %v3053 = vadd.f32 0.0, %v3052
        %v3054 = vpop.f32.mrf.mxu0
        %3055 = vmatprep.mubr.f32.mxu0 0.0
        %3056 = vmatmul.mubr.f32.gmra.mxu0 %v600
        %v3057 = vpop.f32.mrf.mxu0
        %v3058 = vadd.f32 0.0, %v3057
        %v3059 = vpop.f32.mrf.mxu0
        %3060 = vdwg.mxu0
        %s3061 = scalar_lea.vmem %s4, 160
        %v3062 = vld [vmem:[%s3061] sm:$0xff]
        %v3063 = vld [vmem:[%s3061 + $0x8] sm:$0xff]
        %v3064 = vld [vmem:[%s3061 + $0x10] sm:$0xff]
        %v3065 = vld [vmem:[%s3061 + $0x18] sm:$0xff]
        %3066 = vmatprep.subr.mxu0 0.0
        %3067 = vmatpush1.msra.mxu0 0.0
        %3068 = vmatprep.subr.mxu0 0.0
        %3069 = vmatpush1.msra.mxu0 0.0
        %3070 = vmatprep.subr.mxu0 0.0
        %3071 = vmatpush1.msra.mxu0 0.0
        %3072 = vmatprep.subr.mxu0 0.0
        %3073 = vmatpush1.msra.mxu0 0.0
        %3074 = vmatprep.subr.mxu0 0.0
        %3075 = vmatpush1.msra.mxu0 0.0
        %3076 = vmatprep.subr.mxu0 0.0
        %3077 = vmatpush1.msra.mxu0 0.0
        %3078 = vmatprep.subr.mxu0 0.0
        %3079 = vmatpush1.msra.mxu0 0.0
        %3080 = vmatprep.subr.mxu0 0.0
        %3081 = vmatpush1.msra.mxu0 0.0
        %3082 = vmatprep.subr.mxu0 0.0
        %3083 = vmatpush1.msra.mxu0 0.0
        %3084 = vmatprep.subr.mxu0 0.0
        %3085 = vmatpush1.msra.mxu0 0.0
        %3086 = vmatprep.subr.mxu0 0.0
        %3087 = vmatpush1.msra.mxu0 0.0
        %3088 = vmatprep.subr.mxu0 0.0
        %3089 = vmatpush1.msra.mxu0 0.0
        %3090 = vmatprep.subr.mxu0 0.0
        %3091 = vmatpush1.msra.mxu0 %v3065
        %3092 = vmatprep.subr.mxu0 0.0
        %3093 = vmatpush1.msra.mxu0 %v3064
        %3094 = vmatprep.subr.mxu0 0.0
        %3095 = vmatpush1.msra.mxu0 %v3063
        %3096 = vmatprep.subr.mxu0 0.0
        %3097 = vmatpush1.msra.mxu0 %v3062
        %3098 = vmatprep.subr.mxu0 0.0
        %3099 = vmatpush2.msra.mxu0 0.0
        %3100 = vmatprep.subr.mxu0 0.0
        %3101 = vmatpush2.msra.mxu0 0.0
        %3102 = vmatprep.subr.mxu0 0.0
        %3103 = vmatpush2.msra.mxu0 0.0
        %3104 = vmatprep.subr.mxu0 0.0
        %3105 = vmatpush2.msra.mxu0 0.0
        %3106 = vmatprep.subr.mxu0 0.0
        %3107 = vmatpush2.msra.mxu0 0.0
        %3108 = vmatprep.subr.mxu0 0.0
        %3109 = vmatpush2.msra.mxu0 0.0
        %3110 = vmatprep.subr.mxu0 0.0
        %3111 = vmatpush2.msra.mxu0 0.0
        %3112 = vmatprep.subr.mxu0 0.0
        %3113 = vmatpush2.msra.mxu0 0.0
        %3114 = vmatprep.subr.mxu0 0.0
        %3115 = vmatpush2.msra.mxu0 0.0
        %3116 = vmatprep.subr.mxu0 0.0
        %3117 = vmatpush2.msra.mxu0 0.0
        %3118 = vmatprep.subr.mxu0 0.0
        %3119 = vmatpush2.msra.mxu0 0.0
        %3120 = vmatprep.subr.mxu0 0.0
        %3121 = vmatpush2.msra.mxu0 0.0
        %3122 = vmatprep.subr.mxu0 0.0
        %3123 = vmatpush2.msra.mxu0 0.0
        %3124 = vmatprep.subr.mxu0 0.0
        %3125 = vmatpush2.msra.mxu0 0.0
        %3126 = vmatprep.subr.mxu0 0.0
        %3127 = vmatpush2.msra.mxu0 0.0
        %3128 = vmatprep.subr.mxu0 0.0
        %3129 = vmatpush2.msra.mxu0 0.0
        %3130 = vmatprep.mubr.f32.mxu0 0.0
        %3131 = vmatmul.mubr.f32.gmra.mxu0 %v597
        %v3132 = vpop.f32.mrf.mxu0
        %v3133 = vadd.f32 0.0, %v3132
        %v3134 = vpop.f32.mrf.mxu0
        %3135 = vmatprep.mubr.f32.mxu0 0.0
        %3136 = vmatmul.mubr.f32.gmra.mxu0 %v600
        %v3137 = vpop.f32.mrf.mxu0
        %v3138 = vadd.f32 0.0, %v3137
        %v3139 = vpop.f32.mrf.mxu0
        %3140 = vdwg.mxu0
        %v3142 = vsel %vm756, %v2978, 0
        %v3145 = vsel %vm756, %v3053, 0
        %v3148 = vsel %vm756, %v3058, 0
        %3150 = vmatprep.subr.mxu0 0.0
        %3151 = vmatpush1.xpose.msra.mxu0 0.0
        %3152 = vmatprep.subr.mxu0 0.0
        %3153 = vmatpush1.xpose.msra.mxu0 0.0
        %3154 = vmatprep.subr.mxu0 0.0
        %3155 = vmatpush1.xpose.msra.mxu0 0.0
        %3156 = vmatprep.subr.mxu0 0.0
        %3157 = vmatpush1.xpose.msra.mxu0 0.0
        %3158 = vmatprep.subr.mxu0 0.0
        %3159 = vmatpush1.xpose.msra.mxu0 0.0
        %3160 = vmatprep.subr.mxu0 0.0
        %3161 = vmatpush1.xpose.msra.mxu0 0.0
        %3162 = vmatprep.subr.mxu0 0.0
        %3163 = vmatpush1.xpose.msra.mxu0 0.0
        %3164 = vmatprep.subr.mxu0 0.0
        %3165 = vmatpush1.xpose.msra.mxu0 0.0
        %3166 = vmatprep.subr.mxu0 0.0
        %3167 = vmatpush1.xpose.msra.mxu0 0.0
        %3168 = vmatprep.subr.mxu0 0.0
        %3169 = vmatpush1.xpose.msra.mxu0 0.0
        %3170 = vmatprep.subr.mxu0 0.0
        %3171 = vmatpush1.xpose.msra.mxu0 0.0
        %3172 = vmatprep.subr.mxu0 0.0
        %3173 = vmatpush1.xpose.msra.mxu0 0.0
        %3174 = vmatprep.subr.mxu0 0.0
        %3175 = vmatpush1.xpose.msra.mxu0 0.0
        %3176 = vmatprep.subr.mxu0 0.0
        %3177 = vmatpush1.xpose.msra.mxu0 0.0
        %3178 = vmatprep.subr.mxu0 0.0
        %3179 = vmatpush1.xpose.msra.mxu0 %v3148
        %3180 = vmatprep.subr.mxu0 0.0
        %3181 = vmatpush1.xpose.msra.mxu0 %v3145
        %3182 = vmatprep.subr.mxu0 0.0
        %3183 = vmatpush2.xpose.msra.mxu0 0.0
        %3184 = vmatprep.subr.mxu0 0.0
        %3185 = vmatpush2.xpose.msra.mxu0 0.0
        %3186 = vmatprep.subr.mxu0 0.0
        %3187 = vmatpush2.xpose.msra.mxu0 0.0
        %3188 = vmatprep.subr.mxu0 0.0
        %3189 = vmatpush2.xpose.msra.mxu0 0.0
        %3190 = vmatprep.subr.mxu0 0.0
        %3191 = vmatpush2.xpose.msra.mxu0 0.0
        %3192 = vmatprep.subr.mxu0 0.0
        %3193 = vmatpush2.xpose.msra.mxu0 0.0
        %3194 = vmatprep.subr.mxu0 0.0
        %3195 = vmatpush2.xpose.msra.mxu0 0.0
        %3196 = vmatprep.subr.mxu0 0.0
        %3197 = vmatpush2.xpose.msra.mxu0 0.0
        %3198 = vmatprep.subr.mxu0 0.0
        %3199 = vmatpush2.xpose.msra.mxu0 0.0
        %3200 = vmatprep.subr.mxu0 0.0
        %3201 = vmatpush2.xpose.msra.mxu0 0.0
        %3202 = vmatprep.subr.mxu0 0.0
        %3203 = vmatpush2.xpose.msra.mxu0 0.0
        %3204 = vmatprep.subr.mxu0 0.0
        %3205 = vmatpush2.xpose.msra.mxu0 0.0
        %3206 = vmatprep.subr.mxu0 0.0
        %3207 = vmatpush2.xpose.msra.mxu0 0.0
        %3208 = vmatprep.subr.mxu0 0.0
        %3209 = vmatpush2.xpose.msra.mxu0 0.0
        %3210 = vmatprep.subr.mxu0 0.0
        %3211 = vmatpush2.xpose.msra.mxu0 0.0
        %3212 = vmatprep.subr.mxu0 0.0
        %3213 = vmatpush2.xpose.msra.mxu0 0.0
        %3214 = vmatprep.mubr.f32.mxu0 0.0
        %3215 = vmatmul.mubr.f32.gmra.mxu0 %v3142
        %v3216 = vpop.f32.mrf.mxu0
        %v3217 = vadd.f32 0.0, %v3216
        %v3218 = vpop.f32.mrf.mxu0
        %3219 = vdwg.mxu0
        %v3220 = vsel %vm836, %v3217, -inf
        %3221 = vmax.xlane.f32.xlu0 %v3220
        %v3222 = vpop.xlane.xlu0 %3221
        %v3223 = vsub.f32 %v3217, %v3222
        %v3224 = vmul.f32 %v3223, 1.442695
        %v3225 = vpow.pop %v3224
        %v3226 = vsel %vm836, %v3225, 0.0
        %3227 = vadd.xlane.f32.xlu0 %v3226
        %v3228 = vpop.xlane.xlu0 %3227
        %v3229 = vrcp.pop %v3228
        %v3230 = vmul.f32 %v3225, %v3229
        %v3232 = vsel %vm836, %v3230, 0
        %3234 = vmatprep.subr.mxu0 0.0
        %3235 = vmatpush1.msra.mxu0 0.0
        %3236 = vmatprep.subr.mxu0 0.0
        %3237 = vmatpush1.msra.mxu0 0.0
        %3238 = vmatprep.subr.mxu0 0.0
        %3239 = vmatpush1.msra.mxu0 0.0
        %3240 = vmatprep.subr.mxu0 0.0
        %3241 = vmatpush1.msra.mxu0 0.0
        %3242 = vmatprep.subr.mxu0 0.0
        %3243 = vmatpush1.msra.mxu0 0.0
        %3244 = vmatprep.subr.mxu0 0.0
        %3245 = vmatpush1.msra.mxu0 0.0
        %3246 = vmatprep.subr.mxu0 0.0
        %3247 = vmatpush1.msra.mxu0 0.0
        %3248 = vmatprep.subr.mxu0 0.0
        %3249 = vmatpush1.msra.mxu0 0.0
        %3250 = vmatprep.subr.mxu0 0.0
        %3251 = vmatpush1.msra.mxu0 0.0
        %3252 = vmatprep.subr.mxu0 0.0
        %3253 = vmatpush1.msra.mxu0 0.0
        %3254 = vmatprep.subr.mxu0 0.0
        %3255 = vmatpush1.msra.mxu0 0.0
        %3256 = vmatprep.subr.mxu0 0.0
        %3257 = vmatpush1.msra.mxu0 0.0
        %3258 = vmatprep.subr.mxu0 0.0
        %3259 = vmatpush1.msra.mxu0 0.0
        %3260 = vmatprep.subr.mxu0 0.0
        %3261 = vmatpush1.msra.mxu0 0.0
        %3262 = vmatprep.subr.mxu0 0.0
        %3263 = vmatpush1.msra.mxu0 %v3138
        %3264 = vmatprep.subr.mxu0 0.0
        %3265 = vmatpush1.msra.mxu0 %v3133
        %3266 = vmatprep.subr.mxu0 0.0
        %3267 = vmatpush2.msra.mxu0 0.0
        %3268 = vmatprep.subr.mxu0 0.0
        %3269 = vmatpush2.msra.mxu0 0.0
        %3270 = vmatprep.subr.mxu0 0.0
        %3271 = vmatpush2.msra.mxu0 0.0
        %3272 = vmatprep.subr.mxu0 0.0
        %3273 = vmatpush2.msra.mxu0 0.0
        %3274 = vmatprep.subr.mxu0 0.0
        %3275 = vmatpush2.msra.mxu0 0.0
        %3276 = vmatprep.subr.mxu0 0.0
        %3277 = vmatpush2.msra.mxu0 0.0
        %3278 = vmatprep.subr.mxu0 0.0
        %3279 = vmatpush2.msra.mxu0 0.0
        %3280 = vmatprep.subr.mxu0 0.0
        %3281 = vmatpush2.msra.mxu0 0.0
        %3282 = vmatprep.subr.mxu0 0.0
        %3283 = vmatpush2.msra.mxu0 0.0
        %3284 = vmatprep.subr.mxu0 0.0
        %3285 = vmatpush2.msra.mxu0 0.0
        %3286 = vmatprep.subr.mxu0 0.0
        %3287 = vmatpush2.msra.mxu0 0.0
        %3288 = vmatprep.subr.mxu0 0.0
        %3289 = vmatpush2.msra.mxu0 0.0
        %3290 = vmatprep.subr.mxu0 0.0
        %3291 = vmatpush2.msra.mxu0 0.0
        %3292 = vmatprep.subr.mxu0 0.0
        %3293 = vmatpush2.msra.mxu0 0.0
        %3294 = vmatprep.subr.mxu0 0.0
        %3295 = vmatpush2.msra.mxu0 0.0
        %3296 = vmatprep.subr.mxu0 0.0
        %3297 = vmatpush2.msra.mxu0 0.0
        %3298 = vmatprep.mubr.f32.mxu0 0.0
        %3299 = vmatmul.mubr.f32.gmra.mxu0 %v3232
        %v3300 = vpop.f32.mrf.mxu0
        %v3301 = vadd.f32 0.0, %v3300
        %v3302 = vpop.f32.mrf.mxu0
        %3303 = vdwg.mxu0
        %s3304 = scalar_lea.vmem %s5, 20
        %v3305 = vld [vmem:[%s3304] sm:$0xf]
        %v3307 = vsel %vm756, %v3301, 0
        %v3310 = vsel %vm1325, %v3305, 0
        %3312 = vmatprep.subr.mxu0 0.0
        %3313 = vmatpush1.msra.mxu0 0.0
        %3314 = vmatprep.subr.mxu0 0.0
        %3315 = vmatpush1.msra.mxu0 0.0
        %3316 = vmatprep.subr.mxu0 0.0
        %3317 = vmatpush1.msra.mxu0 0.0
        %3318 = vmatprep.subr.mxu0 0.0
        %3319 = vmatpush1.msra.mxu0 0.0
        %3320 = vmatprep.subr.mxu0 0.0
        %3321 = vmatpush1.msra.mxu0 0.0
        %3322 = vmatprep.subr.mxu0 0.0
        %3323 = vmatpush1.msra.mxu0 0.0
        %3324 = vmatprep.subr.mxu0 0.0
        %3325 = vmatpush1.msra.mxu0 0.0
        %3326 = vmatprep.subr.mxu0 0.0
        %3327 = vmatpush1.msra.mxu0 0.0
        %3328 = vmatprep.subr.mxu0 0.0
        %3329 = vmatpush1.msra.mxu0 0.0
        %3330 = vmatprep.subr.mxu0 0.0
        %3331 = vmatpush1.msra.mxu0 0.0
        %3332 = vmatprep.subr.mxu0 0.0
        %3333 = vmatpush1.msra.mxu0 0.0
        %3334 = vmatprep.subr.mxu0 0.0
        %3335 = vmatpush1.msra.mxu0 0.0
        %3336 = vmatprep.subr.mxu0 0.0
        %3337 = vmatpush1.msra.mxu0 0.0
        %3338 = vmatprep.subr.mxu0 0.0
        %3339 = vmatpush1.msra.mxu0 0.0
        %3340 = vmatprep.subr.mxu0 0.0
        %3341 = vmatpush1.msra.mxu0 0.0
        %3342 = vmatprep.subr.mxu0 0.0
        %3343 = vmatpush1.msra.mxu0 %v3310
        %3344 = vmatprep.subr.mxu0 0.0
        %3345 = vmatpush2.msra.mxu0 0.0
        %3346 = vmatprep.subr.mxu0 0.0
        %3347 = vmatpush2.msra.mxu0 0.0
        %3348 = vmatprep.subr.mxu0 0.0
        %3349 = vmatpush2.msra.mxu0 0.0
        %3350 = vmatprep.subr.mxu0 0.0
        %3351 = vmatpush2.msra.mxu0 0.0
        %3352 = vmatprep.subr.mxu0 0.0
        %3353 = vmatpush2.msra.mxu0 0.0
        %3354 = vmatprep.subr.mxu0 0.0
        %3355 = vmatpush2.msra.mxu0 0.0
        %3356 = vmatprep.subr.mxu0 0.0
        %3357 = vmatpush2.msra.mxu0 0.0
        %3358 = vmatprep.subr.mxu0 0.0
        %3359 = vmatpush2.msra.mxu0 0.0
        %3360 = vmatprep.subr.mxu0 0.0
        %3361 = vmatpush2.msra.mxu0 0.0
        %3362 = vmatprep.subr.mxu0 0.0
        %3363 = vmatpush2.msra.mxu0 0.0
        %3364 = vmatprep.subr.mxu0 0.0
        %3365 = vmatpush2.msra.mxu0 0.0
        %3366 = vmatprep.subr.mxu0 0.0
        %3367 = vmatpush2.msra.mxu0 0.0
        %3368 = vmatprep.subr.mxu0 0.0
        %3369 = vmatpush2.msra.mxu0 0.0
        %3370 = vmatprep.subr.mxu0 0.0
        %3371 = vmatpush2.msra.mxu0 0.0
        %3372 = vmatprep.subr.mxu0 0.0
        %3373 = vmatpush2.msra.mxu0 0.0
        %3374 = vmatprep.subr.mxu0 0.0
        %3375 = vmatpush2.msra.mxu0 0.0
        %3376 = vmatprep.mubr.f32.mxu0 0.0
        %3377 = vmatmul.mubr.f32.gmra.mxu0 %v3307
        %v3378 = vpop.f32.mrf.mxu0
        %v3379 = vadd.f32 0.0, %v3378
        %v3380 = vpop.f32.mrf.mxu0
        %3381 = vdwg.mxu0
        %v3382 = vadd.f32 %v2905, %v3379
        %s3383 = scalar_lea.vmem %s2, 192
        %v3384 = vld [vmem:[%s3383] sm:$0xff]
        %v3385 = vld [vmem:[%s3383 + $0x8] sm:$0xff]
        %v3386 = vld [vmem:[%s3383 + $0x10] sm:$0xff]
        %v3387 = vld [vmem:[%s3383 + $0x18] sm:$0xff]
        %3388 = vmatprep.subr.mxu0 0.0
        %3389 = vmatpush1.msra.mxu0 0.0
        %3390 = vmatprep.subr.mxu0 0.0
        %3391 = vmatpush1.msra.mxu0 0.0
        %3392 = vmatprep.subr.mxu0 0.0
        %3393 = vmatpush1.msra.mxu0 0.0
        %3394 = vmatprep.subr.mxu0 0.0
        %3395 = vmatpush1.msra.mxu0 0.0
        %3396 = vmatprep.subr.mxu0 0.0
        %3397 = vmatpush1.msra.mxu0 0.0
        %3398 = vmatprep.subr.mxu0 0.0
        %3399 = vmatpush1.msra.mxu0 0.0
        %3400 = vmatprep.subr.mxu0 0.0
        %3401 = vmatpush1.msra.mxu0 0.0
        %3402 = vmatprep.subr.mxu0 0.0
        %3403 = vmatpush1.msra.mxu0 0.0
        %3404 = vmatprep.subr.mxu0 0.0
        %3405 = vmatpush1.msra.mxu0 0.0
        %3406 = vmatprep.subr.mxu0 0.0
        %3407 = vmatpush1.msra.mxu0 0.0
        %3408 = vmatprep.subr.mxu0 0.0
        %3409 = vmatpush1.msra.mxu0 0.0
        %3410 = vmatprep.subr.mxu0 0.0
        %3411 = vmatpush1.msra.mxu0 0.0
        %3412 = vmatprep.subr.mxu0 0.0
        %3413 = vmatpush1.msra.mxu0 %v3387
        %3414 = vmatprep.subr.mxu0 0.0
        %3415 = vmatpush1.msra.mxu0 %v3386
        %3416 = vmatprep.subr.mxu0 0.0
        %3417 = vmatpush1.msra.mxu0 %v3385
        %3418 = vmatprep.subr.mxu0 0.0
        %3419 = vmatpush1.msra.mxu0 %v3384
        %3420 = vmatprep.subr.mxu0 0.0
        %3421 = vmatpush2.msra.mxu0 0.0
        %3422 = vmatprep.subr.mxu0 0.0
        %3423 = vmatpush2.msra.mxu0 0.0
        %3424 = vmatprep.subr.mxu0 0.0
        %3425 = vmatpush2.msra.mxu0 0.0
        %3426 = vmatprep.subr.mxu0 0.0
        %3427 = vmatpush2.msra.mxu0 0.0
        %3428 = vmatprep.subr.mxu0 0.0
        %3429 = vmatpush2.msra.mxu0 0.0
        %3430 = vmatprep.subr.mxu0 0.0
        %3431 = vmatpush2.msra.mxu0 0.0
        %3432 = vmatprep.subr.mxu0 0.0
        %3433 = vmatpush2.msra.mxu0 0.0
        %3434 = vmatprep.subr.mxu0 0.0
        %3435 = vmatpush2.msra.mxu0 0.0
        %3436 = vmatprep.subr.mxu0 0.0
        %3437 = vmatpush2.msra.mxu0 0.0
        %3438 = vmatprep.subr.mxu0 0.0
        %3439 = vmatpush2.msra.mxu0 0.0
        %3440 = vmatprep.subr.mxu0 0.0
        %3441 = vmatpush2.msra.mxu0 0.0
        %3442 = vmatprep.subr.mxu0 0.0
        %3443 = vmatpush2.msra.mxu0 0.0
        %3444 = vmatprep.subr.mxu0 0.0
        %3445 = vmatpush2.msra.mxu0 0.0
        %3446 = vmatprep.subr.mxu0 0.0
        %3447 = vmatpush2.msra.mxu0 0.0
        %3448 = vmatprep.subr.mxu0 0.0
        %3449 = vmatpush2.msra.mxu0 0.0
        %3450 = vmatprep.subr.mxu0 0.0
        %3451 = vmatpush2.msra.mxu0 0.0
        %3452 = vmatprep.mubr.f32.mxu0 0.0
        %3453 = vmatmul.mubr.f32.gmra.mxu0 %v520
        %v3454 = vpop.f32.mrf.mxu0
        %v3455 = vadd.f32 0.0, %v3454
        %v3456 = vpop.f32.mrf.mxu0
        %3457 = vdwg.mxu0
        %s3458 = scalar_lea.vmem %s3, 192
        %v3459 = vld [vmem:[%s3458] sm:$0xff]
        %v3460 = vld [vmem:[%s3458 + $0x8] sm:$0xff]
        %v3461 = vld [vmem:[%s3458 + $0x10] sm:$0xff]
        %v3462 = vld [vmem:[%s3458 + $0x18] sm:$0xff]
        %3463 = vmatprep.subr.mxu0 0.0
        %3464 = vmatpush1.msra.mxu0 0.0
        %3465 = vmatprep.subr.mxu0 0.0
        %3466 = vmatpush1.msra.mxu0 0.0
        %3467 = vmatprep.subr.mxu0 0.0
        %3468 = vmatpush1.msra.mxu0 0.0
        %3469 = vmatprep.subr.mxu0 0.0
        %3470 = vmatpush1.msra.mxu0 0.0
        %3471 = vmatprep.subr.mxu0 0.0
        %3472 = vmatpush1.msra.mxu0 0.0
        %3473 = vmatprep.subr.mxu0 0.0
        %3474 = vmatpush1.msra.mxu0 0.0
        %3475 = vmatprep.subr.mxu0 0.0
        %3476 = vmatpush1.msra.mxu0 0.0
        %3477 = vmatprep.subr.mxu0 0.0
        %3478 = vmatpush1.msra.mxu0 0.0
        %3479 = vmatprep.subr.mxu0 0.0
        %3480 = vmatpush1.msra.mxu0 0.0
        %3481 = vmatprep.subr.mxu0 0.0
        %3482 = vmatpush1.msra.mxu0 0.0
        %3483 = vmatprep.subr.mxu0 0.0
        %3484 = vmatpush1.msra.mxu0 0.0
        %3485 = vmatprep.subr.mxu0 0.0
        %3486 = vmatpush1.msra.mxu0 0.0
        %3487 = vmatprep.subr.mxu0 0.0
        %3488 = vmatpush1.msra.mxu0 %v3462
        %3489 = vmatprep.subr.mxu0 0.0
        %3490 = vmatpush1.msra.mxu0 %v3461
        %3491 = vmatprep.subr.mxu0 0.0
        %3492 = vmatpush1.msra.mxu0 %v3460
        %3493 = vmatprep.subr.mxu0 0.0
        %3494 = vmatpush1.msra.mxu0 %v3459
        %3495 = vmatprep.subr.mxu0 0.0
        %3496 = vmatpush2.msra.mxu0 0.0
        %3497 = vmatprep.subr.mxu0 0.0
        %3498 = vmatpush2.msra.mxu0 0.0
        %3499 = vmatprep.subr.mxu0 0.0
        %3500 = vmatpush2.msra.mxu0 0.0
        %3501 = vmatprep.subr.mxu0 0.0
        %3502 = vmatpush2.msra.mxu0 0.0
        %3503 = vmatprep.subr.mxu0 0.0
        %3504 = vmatpush2.msra.mxu0 0.0
        %3505 = vmatprep.subr.mxu0 0.0
        %3506 = vmatpush2.msra.mxu0 0.0
        %3507 = vmatprep.subr.mxu0 0.0
        %3508 = vmatpush2.msra.mxu0 0.0
        %3509 = vmatprep.subr.mxu0 0.0
        %3510 = vmatpush2.msra.mxu0 0.0
        %3511 = vmatprep.subr.mxu0 0.0
        %3512 = vmatpush2.msra.mxu0 0.0
        %3513 = vmatprep.subr.mxu0 0.0
        %3514 = vmatpush2.msra.mxu0 0.0
        %3515 = vmatprep.subr.mxu0 0.0
        %3516 = vmatpush2.msra.mxu0 0.0
        %3517 = vmatprep.subr.mxu0 0.0
        %3518 = vmatpush2.msra.mxu0 0.0
        %3519 = vmatprep.subr.mxu0 0.0
        %3520 = vmatpush2.msra.mxu0 0.0
        %3521 = vmatprep.subr.mxu0 0.0
        %3522 = vmatpush2.msra.mxu0 0.0
        %3523 = vmatprep.subr.mxu0 0.0
        %3524 = vmatpush2.msra.mxu0 0.0
        %3525 = vmatprep.subr.mxu0 0.0
        %3526 = vmatpush2.msra.mxu0 0.0
        %3527 = vmatprep.mubr.f32.mxu0 0.0
        %3528 = vmatmul.mubr.f32.gmra.mxu0 %v597
        %v3529 = vpop.f32.mrf.mxu0
        %v3530 = vadd.f32 0.0, %v3529
        %v3531 = vpop.f32.mrf.mxu0
        %3532 = vmatprep.mubr.f32.mxu0 0.0
        %3533 = vmatmul.mubr.f32.gmra.mxu0 %v600
        %v3534 = vpop.f32.mrf.mxu0
        %v3535 = vadd.f32 0.0, %v3534
        %v3536 = vpop.f32.mrf.mxu0
        %3537 = vdwg.mxu0
        %s3538 = scalar_lea.vmem %s4, 192
        %v3539 = vld [vmem:[%s3538] sm:$0xff]
        %v3540 = vld [vmem:[%s3538 + $0x8] sm:$0xff]
        %v3541 = vld [vmem:[%s3538 + $0x10] sm:$0xff]
        %v3542 = vld [vmem:[%s3538 + $0x18] sm:$0xff]
        %3543 = vmatprep.subr.mxu0 0.0
        %3544 = vmatpush1.msra.mxu0 0.0
        %3545 = vmatprep.subr.mxu0 0.0
        %3546 = vmatpush1.msra.mxu0 0.0
        %3547 = vmatprep.subr.mxu0 0.0
        %3548 = vmatpush1.msra.mxu0 0.0
        %3549 = vmatprep.subr.mxu0 0.0
        %3550 = vmatpush1.msra.mxu0 0.0
        %3551 = vmatprep.subr.mxu0 0.0
        %3552 = vmatpush1.msra.mxu0 0.0
        %3553 = vmatprep.subr.mxu0 0.0
        %3554 = vmatpush1.msra.mxu0 0.0
        %3555 = vmatprep.subr.mxu0 0.0
        %3556 = vmatpush1.msra.mxu0 0.0
        %3557 = vmatprep.subr.mxu0 0.0
        %3558 = vmatpush1.msra.mxu0 0.0
        %3559 = vmatprep.subr.mxu0 0.0
        %3560 = vmatpush1.msra.mxu0 0.0
        %3561 = vmatprep.subr.mxu0 0.0
        %3562 = vmatpush1.msra.mxu0 0.0
        %3563 = vmatprep.subr.mxu0 0.0
        %3564 = vmatpush1.msra.mxu0 0.0
        %3565 = vmatprep.subr.mxu0 0.0
        %3566 = vmatpush1.msra.mxu0 0.0
        %3567 = vmatprep.subr.mxu0 0.0
        %3568 = vmatpush1.msra.mxu0 %v3542
        %3569 = vmatprep.subr.mxu0 0.0
        %3570 = vmatpush1.msra.mxu0 %v3541
        %3571 = vmatprep.subr.mxu0 0.0
        %3572 = vmatpush1.msra.mxu0 %v3540
        %3573 = vmatprep.subr.mxu0 0.0
        %3574 = vmatpush1.msra.mxu0 %v3539
        %3575 = vmatprep.subr.mxu0 0.0
        %3576 = vmatpush2.msra.mxu0 0.0
        %3577 = vmatprep.subr.mxu0 0.0
        %3578 = vmatpush2.msra.mxu0 0.0
        %3579 = vmatprep.subr.mxu0 0.0
        %3580 = vmatpush2.msra.mxu0 0.0
        %3581 = vmatprep.subr.mxu0 0.0
        %3582 = vmatpush2.msra.mxu0 0.0
        %3583 = vmatprep.subr.mxu0 0.0
        %3584 = vmatpush2.msra.mxu0 0.0
        %3585 = vmatprep.subr.mxu0 0.0
        %3586 = vmatpush2.msra.mxu0 0.0
        %3587 = vmatprep.subr.mxu0 0.0
        %3588 = vmatpush2.msra.mxu0 0.0
        %3589 = vmatprep.subr.mxu0 0.0
        %3590 = vmatpush2.msra.mxu0 0.0
        %3591 = vmatprep.subr.mxu0 0.0
        %3592 = vmatpush2.msra.mxu0 0.0
        %3593 = vmatprep.subr.mxu0 0.0
        %3594 = vmatpush2.msra.mxu0 0.0
        %3595 = vmatprep.subr.mxu0 0.0
        %3596 = vmatpush2.msra.mxu0 0.0
        %3597 = vmatprep.subr.mxu0 0.0
        %3598 = vmatpush2.msra.mxu0 0.0
        %3599 = vmatprep.subr.mxu0 0.0
        %3600 = vmatpush2.msra.mxu0 0.0
        %3601 = vmatprep.subr.mxu0 0.0
        %3602 = vmatpush2.msra.mxu0 0.0
        %3603 = vmatprep.subr.mxu0 0.0
        %3604 = vmatpush2.msra.mxu0 0.0
        %3605 = vmatprep.subr.mxu0 0.0
        %3606 = vmatpush2.msra.mxu0 0.0
        %3607 = vmatprep.mubr.f32.mxu0 0.0
        %3608 = vmatmul.mubr.f32.gmra.mxu0 %v597
        %v3609 = vpop.f32.mrf.mxu0
        %v3610 = vadd.f32 0.0, %v3609
        %v3611 = vpop.f32.mrf.mxu0
        %3612 = vmatprep.mubr.f32.mxu0 0.0
        %3613 = vmatmul.mubr.f32.gmra.mxu0 %v600
        %v3614 = vpop.f32.mrf.mxu0
        %v3615 = vadd.f32 0.0, %v3614
        %v3616 = vpop.f32.mrf.mxu0
        %3617 = vdwg.mxu0
        %v3619 = vsel %vm756, %v3455, 0
        %v3622 = vsel %vm756, %v3530, 0
        %v3625 = vsel %vm756, %v3535, 0
        %3627 = vmatprep.subr.mxu0 0.0
        %3628 = vmatpush1.xpose.msra.mxu0 0.0
        %3629 = vmatprep.subr.mxu0 0.0
        %3630 = vmatpush1.xpose.msra.mxu0 0.0
        %3631 = vmatprep.subr.mxu0 0.0
        %3632 = vmatpush1.xpose.msra.mxu0 0.0
        %3633 = vmatprep.subr.mxu0 0.0
        %3634 = vmatpush1.xpose.msra.mxu0 0.0
        %3635 = vmatprep.subr.mxu0 0.0
        %3636 = vmatpush1.xpose.msra.mxu0 0.0
        %3637 = vmatprep.subr.mxu0 0.0
        %3638 = vmatpush1.xpose.msra.mxu0 0.0
        %3639 = vmatprep.subr.mxu0 0.0
        %3640 = vmatpush1.xpose.msra.mxu0 0.0
        %3641 = vmatprep.subr.mxu0 0.0
        %3642 = vmatpush1.xpose.msra.mxu0 0.0
        %3643 = vmatprep.subr.mxu0 0.0
        %3644 = vmatpush1.xpose.msra.mxu0 0.0
        %3645 = vmatprep.subr.mxu0 0.0
        %3646 = vmatpush1.xpose.msra.mxu0 0.0
        %3647 = vmatprep.subr.mxu0 0.0
        %3648 = vmatpush1.xpose.msra.mxu0 0.0
        %3649 = vmatprep.subr.mxu0 0.0
        %3650 = vmatpush1.xpose.msra.mxu0 0.0
        %3651 = vmatprep.subr.mxu0 0.0
        %3652 = vmatpush1.xpose.msra.mxu0 0.0
        %3653 = vmatprep.subr.mxu0 0.0
        %3654 = vmatpush1.xpose.msra.mxu0 0.0
        %3655 = vmatprep.subr.mxu0 0.0
        %3656 = vmatpush1.xpose.msra.mxu0 %v3625
        %3657 = vmatprep.subr.mxu0 0.0
        %3658 = vmatpush1.xpose.msra.mxu0 %v3622
        %3659 = vmatprep.subr.mxu0 0.0
        %3660 = vmatpush2.xpose.msra.mxu0 0.0
        %3661 = vmatprep.subr.mxu0 0.0
        %3662 = vmatpush2.xpose.msra.mxu0 0.0
        %3663 = vmatprep.subr.mxu0 0.0
        %3664 = vmatpush2.xpose.msra.mxu0 0.0
        %3665 = vmatprep.subr.mxu0 0.0
        %3666 = vmatpush2.xpose.msra.mxu0 0.0
        %3667 = vmatprep.subr.mxu0 0.0
        %3668 = vmatpush2.xpose.msra.mxu0 0.0
        %3669 = vmatprep.subr.mxu0 0.0
        %3670 = vmatpush2.xpose.msra.mxu0 0.0
        %3671 = vmatprep.subr.mxu0 0.0
        %3672 = vmatpush2.xpose.msra.mxu0 0.0
        %3673 = vmatprep.subr.mxu0 0.0
        %3674 = vmatpush2.xpose.msra.mxu0 0.0
        %3675 = vmatprep.subr.mxu0 0.0
        %3676 = vmatpush2.xpose.msra.mxu0 0.0
        %3677 = vmatprep.subr.mxu0 0.0
        %3678 = vmatpush2.xpose.msra.mxu0 0.0
        %3679 = vmatprep.subr.mxu0 0.0
        %3680 = vmatpush2.xpose.msra.mxu0 0.0
        %3681 = vmatprep.subr.mxu0 0.0
        %3682 = vmatpush2.xpose.msra.mxu0 0.0
        %3683 = vmatprep.subr.mxu0 0.0
        %3684 = vmatpush2.xpose.msra.mxu0 0.0
        %3685 = vmatprep.subr.mxu0 0.0
        %3686 = vmatpush2.xpose.msra.mxu0 0.0
        %3687 = vmatprep.subr.mxu0 0.0
        %3688 = vmatpush2.xpose.msra.mxu0 0.0
        %3689 = vmatprep.subr.mxu0 0.0
        %3690 = vmatpush2.xpose.msra.mxu0 0.0
        %3691 = vmatprep.mubr.f32.mxu0 0.0
        %3692 = vmatmul.mubr.f32.gmra.mxu0 %v3619
        %v3693 = vpop.f32.mrf.mxu0
        %v3694 = vadd.f32 0.0, %v3693
        %v3695 = vpop.f32.mrf.mxu0
        %3696 = vdwg.mxu0
        %v3697 = vsel %vm836, %v3694, -inf
        %3698 = vmax.xlane.f32.xlu0 %v3697
        %v3699 = vpop.xlane.xlu0 %3698
        %v3700 = vsub.f32 %v3694, %v3699
        %v3701 = vmul.f32 %v3700, 1.442695
        %v3702 = vpow.pop %v3701
        %v3703 = vsel %vm836, %v3702, 0.0
        %3704 = vadd.xlane.f32.xlu0 %v3703
        %v3705 = vpop.xlane.xlu0 %3704
        %v3706 = vrcp.pop %v3705
        %v3707 = vmul.f32 %v3702, %v3706
        %v3709 = vsel %vm836, %v3707, 0
        %3711 = vmatprep.subr.mxu0 0.0
        %3712 = vmatpush1.msra.mxu0 0.0
        %3713 = vmatprep.subr.mxu0 0.0
        %3714 = vmatpush1.msra.mxu0 0.0
        %3715 = vmatprep.subr.mxu0 0.0
        %3716 = vmatpush1.msra.mxu0 0.0
        %3717 = vmatprep.subr.mxu0 0.0
        %3718 = vmatpush1.msra.mxu0 0.0
        %3719 = vmatprep.subr.mxu0 0.0
        %3720 = vmatpush1.msra.mxu0 0.0
        %3721 = vmatprep.subr.mxu0 0.0
        %3722 = vmatpush1.msra.mxu0 0.0
        %3723 = vmatprep.subr.mxu0 0.0
        %3724 = vmatpush1.msra.mxu0 0.0
        %3725 = vmatprep.subr.mxu0 0.0
        %3726 = vmatpush1.msra.mxu0 0.0
        %3727 = vmatprep.subr.mxu0 0.0
        %3728 = vmatpush1.msra.mxu0 0.0
        %3729 = vmatprep.subr.mxu0 0.0
        %3730 = vmatpush1.msra.mxu0 0.0
        %3731 = vmatprep.subr.mxu0 0.0
        %3732 = vmatpush1.msra.mxu0 0.0
        %3733 = vmatprep.subr.mxu0 0.0
        %3734 = vmatpush1.msra.mxu0 0.0
        %3735 = vmatprep.subr.mxu0 0.0
        %3736 = vmatpush1.msra.mxu0 0.0
        %3737 = vmatprep.subr.mxu0 0.0
        %3738 = vmatpush1.msra.mxu0 0.0
        %3739 = vmatprep.subr.mxu0 0.0
        %3740 = vmatpush1.msra.mxu0 %v3615
        %3741 = vmatprep.subr.mxu0 0.0
        %3742 = vmatpush1.msra.mxu0 %v3610
        %3743 = vmatprep.subr.mxu0 0.0
        %3744 = vmatpush2.msra.mxu0 0.0
        %3745 = vmatprep.subr.mxu0 0.0
        %3746 = vmatpush2.msra.mxu0 0.0
        %3747 = vmatprep.subr.mxu0 0.0
        %3748 = vmatpush2.msra.mxu0 0.0
        %3749 = vmatprep.subr.mxu0 0.0
        %3750 = vmatpush2.msra.mxu0 0.0
        %3751 = vmatprep.subr.mxu0 0.0
        %3752 = vmatpush2.msra.mxu0 0.0
        %3753 = vmatprep.subr.mxu0 0.0
        %3754 = vmatpush2.msra.mxu0 0.0
        %3755 = vmatprep.subr.mxu0 0.0
        %3756 = vmatpush2.msra.mxu0 0.0
        %3757 = vmatprep.subr.mxu0 0.0
        %3758 = vmatpush2.msra.mxu0 0.0
        %3759 = vmatprep.subr.mxu0 0.0
        %3760 = vmatpush2.msra.mxu0 0.0
        %3761 = vmatprep.subr.mxu0 0.0
        %3762 = vmatpush2.msra.mxu0 0.0
        %3763 = vmatprep.subr.mxu0 0.0
        %3764 = vmatpush2.msra.mxu0 0.0
        %3765 = vmatprep.subr.mxu0 0.0
        %3766 = vmatpush2.msra.mxu0 0.0
        %3767 = vmatprep.subr.mxu0 0.0
        %3768 = vmatpush2.msra.mxu0 0.0
        %3769 = vmatprep.subr.mxu0 0.0
        %3770 = vmatpush2.msra.mxu0 0.0
        %3771 = vmatprep.subr.mxu0 0.0
        %3772 = vmatpush2.msra.mxu0 0.0
        %3773 = vmatprep.subr.mxu0 0.0
        %3774 = vmatpush2.msra.mxu0 0.0
        %3775 = vmatprep.mubr.f32.mxu0 0.0
        %3776 = vmatmul.mubr.f32.gmra.mxu0 %v3709
        %v3777 = vpop.f32.mrf.mxu0
        %v3778 = vadd.f32 0.0, %v3777
        %v3779 = vpop.f32.mrf.mxu0
        %3780 = vdwg.mxu0
        %s3781 = scalar_lea.vmem %s5, 24
        %v3782 = vld [vmem:[%s3781] sm:$0xf]
        %v3784 = vsel %vm756, %v3778, 0
        %v3787 = vsel %vm1325, %v3782, 0
        %3789 = vmatprep.subr.mxu0 0.0
        %3790 = vmatpush1.msra.mxu0 0.0
        %3791 = vmatprep.subr.mxu0 0.0
        %3792 = vmatpush1.msra.mxu0 0.0
        %3793 = vmatprep.subr.mxu0 0.0
        %3794 = vmatpush1.msra.mxu0 0.0
        %3795 = vmatprep.subr.mxu0 0.0
        %3796 = vmatpush1.msra.mxu0 0.0
        %3797 = vmatprep.subr.mxu0 0.0
        %3798 = vmatpush1.msra.mxu0 0.0
        %3799 = vmatprep.subr.mxu0 0.0
        %3800 = vmatpush1.msra.mxu0 0.0
        %3801 = vmatprep.subr.mxu0 0.0
        %3802 = vmatpush1.msra.mxu0 0.0
        %3803 = vmatprep.subr.mxu0 0.0
        %3804 = vmatpush1.msra.mxu0 0.0
        %3805 = vmatprep.subr.mxu0 0.0
        %3806 = vmatpush1.msra.mxu0 0.0
        %3807 = vmatprep.subr.mxu0 0.0
        %3808 = vmatpush1.msra.mxu0 0.0
        %3809 = vmatprep.subr.mxu0 0.0
        %3810 = vmatpush1.msra.mxu0 0.0
        %3811 = vmatprep.subr.mxu0 0.0
        %3812 = vmatpush1.msra.mxu0 0.0
        %3813 = vmatprep.subr.mxu0 0.0
        %3814 = vmatpush1.msra.mxu0 0.0
        %3815 = vmatprep.subr.mxu0 0.0
        %3816 = vmatpush1.msra.mxu0 0.0
        %3817 = vmatprep.subr.mxu0 0.0
        %3818 = vmatpush1.msra.mxu0 0.0
        %3819 = vmatprep.subr.mxu0 0.0
        %3820 = vmatpush1.msra.mxu0 %v3787
        %3821 = vmatprep.subr.mxu0 0.0
        %3822 = vmatpush2.msra.mxu0 0.0
        %3823 = vmatprep.subr.mxu0 0.0
        %3824 = vmatpush2.msra.mxu0 0.0
        %3825 = vmatprep.subr.mxu0 0.0
        %3826 = vmatpush2.msra.mxu0 0.0
        %3827 = vmatprep.subr.mxu0 0.0
        %3828 = vmatpush2.msra.mxu0 0.0
        %3829 = vmatprep.subr.mxu0 0.0
        %3830 = vmatpush2.msra.mxu0 0.0
        %3831 = vmatprep.subr.mxu0 0.0
        %3832 = vmatpush2.msra.mxu0 0.0
        %3833 = vmatprep.subr.mxu0 0.0
        %3834 = vmatpush2.msra.mxu0 0.0
        %3835 = vmatprep.subr.mxu0 0.0
        %3836 = vmatpush2.msra.mxu0 0.0
        %3837 = vmatprep.subr.mxu0 0.0
        %3838 = vmatpush2.msra.mxu0 0.0
        %3839 = vmatprep.subr.mxu0 0.0
        %3840 = vmatpush2.msra.mxu0 0.0
        %3841 = vmatprep.subr.mxu0 0.0
        %3842 = vmatpush2.msra.mxu0 0.0
        %3843 = vmatprep.subr.mxu0 0.0
        %3844 = vmatpush2.msra.mxu0 0.0
        %3845 = vmatprep.subr.mxu0 0.0
        %3846 = vmatpush2.msra.mxu0 0.0
        %3847 = vmatprep.subr.mxu0 0.0
        %3848 = vmatpush2.msra.mxu0 0.0
        %3849 = vmatprep.subr.mxu0 0.0
        %3850 = vmatpush2.msra.mxu0 0.0
        %3851 = vmatprep.subr.mxu0 0.0
        %3852 = vmatpush2.msra.mxu0 0.0
        %3853 = vmatprep.mubr.f32.mxu0 0.0
        %3854 = vmatmul.mubr.f32.gmra.mxu0 %v3784
        %v3855 = vpop.f32.mrf.mxu0
        %v3856 = vadd.f32 0.0, %v3855
        %v3857 = vpop.f32.mrf.mxu0
        %3858 = vdwg.mxu0
        %v3859 = vadd.f32 %v3382, %v3856
        %s3860 = scalar_lea.vmem %s2, 224
        %v3861 = vld [vmem:[%s3860] sm:$0xff]
        %v3862 = vld [vmem:[%s3860 + $0x8] sm:$0xff]
        %v3863 = vld [vmem:[%s3860 + $0x10] sm:$0xff]
        %v3864 = vld [vmem:[%s3860 + $0x18] sm:$0xff]
        %3865 = vmatprep.subr.mxu0 0.0
        %3866 = vmatpush1.msra.mxu0 0.0
        %3867 = vmatprep.subr.mxu0 0.0
        %3868 = vmatpush1.msra.mxu0 0.0
        %3869 = vmatprep.subr.mxu0 0.0
        %3870 = vmatpush1.msra.mxu0 0.0
        %3871 = vmatprep.subr.mxu0 0.0
        %3872 = vmatpush1.msra.mxu0 0.0
        %3873 = vmatprep.subr.mxu0 0.0
        %3874 = vmatpush1.msra.mxu0 0.0
        %3875 = vmatprep.subr.mxu0 0.0
        %3876 = vmatpush1.msra.mxu0 0.0
        %3877 = vmatprep.subr.mxu0 0.0
        %3878 = vmatpush1.msra.mxu0 0.0
        %3879 = vmatprep.subr.mxu0 0.0
        %3880 = vmatpush1.msra.mxu0 0.0
        %3881 = vmatprep.subr.mxu0 0.0
        %3882 = vmatpush1.msra.mxu0 0.0
        %3883 = vmatprep.subr.mxu0 0.0
        %3884 = vmatpush1.msra.mxu0 0.0
        %3885 = vmatprep.subr.mxu0 0.0
        %3886 = vmatpush1.msra.mxu0 0.0
        %3887 = vmatprep.subr.mxu0 0.0
        %3888 = vmatpush1.msra.mxu0 0.0
        %3889 = vmatprep.subr.mxu0 0.0
        %3890 = vmatpush1.msra.mxu0 %v3864
        %3891 = vmatprep.subr.mxu0 0.0
        %3892 = vmatpush1.msra.mxu0 %v3863
        %3893 = vmatprep.subr.mxu0 0.0
        %3894 = vmatpush1.msra.mxu0 %v3862
        %3895 = vmatprep.subr.mxu0 0.0
        %3896 = vmatpush1.msra.mxu0 %v3861
        %3897 = vmatprep.subr.mxu0 0.0
        %3898 = vmatpush2.msra.mxu0 0.0
        %3899 = vmatprep.subr.mxu0 0.0
        %3900 = vmatpush2.msra.mxu0 0.0
        %3901 = vmatprep.subr.mxu0 0.0
        %3902 = vmatpush2.msra.mxu0 0.0
        %3903 = vmatprep.subr.mxu0 0.0
        %3904 = vmatpush2.msra.mxu0 0.0
        %3905 = vmatprep.subr.mxu0 0.0
        %3906 = vmatpush2.msra.mxu0 0.0
        %3907 = vmatprep.subr.mxu0 0.0
        %3908 = vmatpush2.msra.mxu0 0.0
        %3909 = vmatprep.subr.mxu0 0.0
        %3910 = vmatpush2.msra.mxu0 0.0
        %3911 = vmatprep.subr.mxu0 0.0
        %3912 = vmatpush2.msra.mxu0 0.0
        %3913 = vmatprep.subr.mxu0 0.0
        %3914 = vmatpush2.msra.mxu0 0.0
        %3915 = vmatprep.subr.mxu0 0.0
        %3916 = vmatpush2.msra.mxu0 0.0
        %3917 = vmatprep.subr.mxu0 0.0
        %3918 = vmatpush2.msra.mxu0 0.0
        %3919 = vmatprep.subr.mxu0 0.0
        %3920 = vmatpush2.msra.mxu0 0.0
        %3921 = vmatprep.subr.mxu0 0.0
        %3922 = vmatpush2.msra.mxu0 0.0
        %3923 = vmatprep.subr.mxu0 0.0
        %3924 = vmatpush2.msra.mxu0 0.0
        %3925 = vmatprep.subr.mxu0 0.0
        %3926 = vmatpush2.msra.mxu0 0.0
        %3927 = vmatprep.subr.mxu0 0.0
        %3928 = vmatpush2.msra.mxu0 0.0
        %3929 = vmatprep.mubr.f32.mxu0 0.0
        %3930 = vmatmul.mubr.f32.gmra.mxu0 %v520
        %v3931 = vpop.f32.mrf.mxu0
        %v3932 = vadd.f32 0.0, %v3931
        %v3933 = vpop.f32.mrf.mxu0
        %3934 = vdwg.mxu0
        %s3935 = scalar_lea.vmem %s3, 224
        %v3936 = vld [vmem:[%s3935] sm:$0xff]
        %v3937 = vld [vmem:[%s3935 + $0x8] sm:$0xff]
        %v3938 = vld [vmem:[%s3935 + $0x10] sm:$0xff]
        %v3939 = vld [vmem:[%s3935 + $0x18] sm:$0xff]
        %3940 = vmatprep.subr.mxu0 0.0
        %3941 = vmatpush1.msra.mxu0 0.0
        %3942 = vmatprep.subr.mxu0 0.0
        %3943 = vmatpush1.msra.mxu0 0.0
        %3944 = vmatprep.subr.mxu0 0.0
        %3945 = vmatpush1.msra.mxu0 0.0
        %3946 = vmatprep.subr.mxu0 0.0
        %3947 = vmatpush1.msra.mxu0 0.0
        %3948 = vmatprep.subr.mxu0 0.0
        %3949 = vmatpush1.msra.mxu0 0.0
        %3950 = vmatprep.subr.mxu0 0.0
        %3951 = vmatpush1.msra.mxu0 0.0
        %3952 = vmatprep.subr.mxu0 0.0
        %3953 = vmatpush1.msra.mxu0 0.0
        %3954 = vmatprep.subr.mxu0 0.0
        %3955 = vmatpush1.msra.mxu0 0.0
        %3956 = vmatprep.subr.mxu0 0.0
        %3957 = vmatpush1.msra.mxu0 0.0
        %3958 = vmatprep.subr.mxu0 0.0
        %3959 = vmatpush1.msra.mxu0 0.0
        %3960 = vmatprep.subr.mxu0 0.0
        %3961 = vmatpush1.msra.mxu0 0.0
        %3962 = vmatprep.subr.mxu0 0.0
        %3963 = vmatpush1.msra.mxu0 0.0
        %3964 = vmatprep.subr.mxu0 0.0
        %3965 = vmatpush1.msra.mxu0 %v3939
        %3966 = vmatprep.subr.mxu0 0.0
        %3967 = vmatpush1.msra.mxu0 %v3938
        %3968 = vmatprep.subr.mxu0 0.0
        %3969 = vmatpush1.msra.mxu0 %v3937
        %3970 = vmatprep.subr.mxu0 0.0
        %3971 = vmatpush1.msra.mxu0 %v3936
        %3972 = vmatprep.subr.mxu0 0.0
        %3973 = vmatpush2.msra.mxu0 0.0
        %3974 = vmatprep.subr.mxu0 0.0
        %3975 = vmatpush2.msra.mxu0 0.0
        %3976 = vmatprep.subr.mxu0 0.0
        %3977 = vmatpush2.msra.mxu0 0.0
        %3978 = vmatprep.subr.mxu0 0.0
        %3979 = vmatpush2.msra.mxu0 0.0
        %3980 = vmatprep.subr.mxu0 0.0
        %3981 = vmatpush2.msra.mxu0 0.0
        %3982 = vmatprep.subr.mxu0 0.0
        %3983 = vmatpush2.msra.mxu0 0.0
        %3984 = vmatprep.subr.mxu0 0.0
        %3985 = vmatpush2.msra.mxu0 0.0
        %3986 = vmatprep.subr.mxu0 0.0
        %3987 = vmatpush2.msra.mxu0 0.0
        %3988 = vmatprep.subr.mxu0 0.0
        %3989 = vmatpush2.msra.mxu0 0.0
        %3990 = vmatprep.subr.mxu0 0.0
        %3991 = vmatpush2.msra.mxu0 0.0
        %3992 = vmatprep.subr.mxu0 0.0
        %3993 = vmatpush2.msra.mxu0 0.0
        %3994 = vmatprep.subr.mxu0 0.0
        %3995 = vmatpush2.msra.mxu0 0.0
        %3996 = vmatprep.subr.mxu0 0.0
        %3997 = vmatpush2.msra.mxu0 0.0
        %3998 = vmatprep.subr.mxu0 0.0
        %3999 = vmatpush2.msra.mxu0 0.0
        %4000 = vmatprep.subr.mxu0 0.0
        %4001 = vmatpush2.msra.mxu0 0.0
        %4002 = vmatprep.subr.mxu0 0.0
        %4003 = vmatpush2.msra.mxu0 0.0
        %4004 = vmatprep.mubr.f32.mxu0 0.0
        %4005 = vmatmul.mubr.f32.gmra.mxu0 %v597
        %v4006 = vpop.f32.mrf.mxu0
        %v4007 = vadd.f32 0.0, %v4006
        %v4008 = vpop.f32.mrf.mxu0
        %4009 = vmatprep.mubr.f32.mxu0 0.0
        %4010 = vmatmul.mubr.f32.gmra.mxu0 %v600
        %v4011 = vpop.f32.mrf.mxu0
        %v4012 = vadd.f32 0.0, %v4011
        %v4013 = vpop.f32.mrf.mxu0
        %4014 = vdwg.mxu0
        %s4015 = scalar_lea.vmem %s4, 224
        %v4016 = vld [vmem:[%s4015] sm:$0xff]
        %v4017 = vld [vmem:[%s4015 + $0x8] sm:$0xff]
        %v4018 = vld [vmem:[%s4015 + $0x10] sm:$0xff]
        %v4019 = vld [vmem:[%s4015 + $0x18] sm:$0xff]
        %4020 = vmatprep.subr.mxu0 0.0
        %4021 = vmatpush1.msra.mxu0 0.0
        %4022 = vmatprep.subr.mxu0 0.0
        %4023 = vmatpush1.msra.mxu0 0.0
        %4024 = vmatprep.subr.mxu0 0.0
        %4025 = vmatpush1.msra.mxu0 0.0
        %4026 = vmatprep.subr.mxu0 0.0
        %4027 = vmatpush1.msra.mxu0 0.0
        %4028 = vmatprep.subr.mxu0 0.0
        %4029 = vmatpush1.msra.mxu0 0.0
        %4030 = vmatprep.subr.mxu0 0.0
        %4031 = vmatpush1.msra.mxu0 0.0
        %4032 = vmatprep.subr.mxu0 0.0
        %4033 = vmatpush1.msra.mxu0 0.0
        %4034 = vmatprep.subr.mxu0 0.0
        %4035 = vmatpush1.msra.mxu0 0.0
        %4036 = vmatprep.subr.mxu0 0.0
        %4037 = vmatpush1.msra.mxu0 0.0
        %4038 = vmatprep.subr.mxu0 0.0
        %4039 = vmatpush1.msra.mxu0 0.0
        %4040 = vmatprep.subr.mxu0 0.0
        %4041 = vmatpush1.msra.mxu0 0.0
        %4042 = vmatprep.subr.mxu0 0.0
        %4043 = vmatpush1.msra.mxu0 0.0
        %4044 = vmatprep.subr.mxu0 0.0
        %4045 = vmatpush1.msra.mxu0 %v4019
        %4046 = vmatprep.subr.mxu0 0.0
        %4047 = vmatpush1.msra.mxu0 %v4018
        %4048 = vmatprep.subr.mxu0 0.0
        %4049 = vmatpush1.msra.mxu0 %v4017
        %4050 = vmatprep.subr.mxu0 0.0
        %4051 = vmatpush1.msra.mxu0 %v4016
        %4052 = vmatprep.subr.mxu0 0.0
        %4053 = vmatpush2.msra.mxu0 0.0
        %4054 = vmatprep.subr.mxu0 0.0
        %4055 = vmatpush2.msra.mxu0 0.0
        %4056 = vmatprep.subr.mxu0 0.0
        %4057 = vmatpush2.msra.mxu0 0.0
        %4058 = vmatprep.subr.mxu0 0.0
        %4059 = vmatpush2.msra.mxu0 0.0
        %4060 = vmatprep.subr.mxu0 0.0
        %4061 = vmatpush2.msra.mxu0 0.0
        %4062 = vmatprep.subr.mxu0 0.0
        %4063 = vmatpush2.msra.mxu0 0.0
        %4064 = vmatprep.subr.mxu0 0.0
        %4065 = vmatpush2.msra.mxu0 0.0
        %4066 = vmatprep.subr.mxu0 0.0
        %4067 = vmatpush2.msra.mxu0 0.0
        %4068 = vmatprep.subr.mxu0 0.0
        %4069 = vmatpush2.msra.mxu0 0.0
        %4070 = vmatprep.subr.mxu0 0.0
        %4071 = vmatpush2.msra.mxu0 0.0
        %4072 = vmatprep.subr.mxu0 0.0
        %4073 = vmatpush2.msra.mxu0 0.0
        %4074 = vmatprep.subr.mxu0 0.0
        %4075 = vmatpush2.msra.mxu0 0.0
        %4076 = vmatprep.subr.mxu0 0.0
        %4077 = vmatpush2.msra.mxu0 0.0
        %4078 = vmatprep.subr.mxu0 0.0
        %4079 = vmatpush2.msra.mxu0 0.0
        %4080 = vmatprep.subr.mxu0 0.0
        %4081 = vmatpush2.msra.mxu0 0.0
        %4082 = vmatprep.subr.mxu0 0.0
        %4083 = vmatpush2.msra.mxu0 0.0
        %4084 = vmatprep.mubr.f32.mxu0 0.0
        %4085 = vmatmul.mubr.f32.gmra.mxu0 %v597
        %v4086 = vpop.f32.mrf.mxu0
        %v4087 = vadd.f32 0.0, %v4086
        %v4088 = vpop.f32.mrf.mxu0
        %4089 = vmatprep.mubr.f32.mxu0 0.0
        %4090 = vmatmul.mubr.f32.gmra.mxu0 %v600
        %v4091 = vpop.f32.mrf.mxu0
        %v4092 = vadd.f32 0.0, %v4091
        %v4093 = vpop.f32.mrf.mxu0
        %4094 = vdwg.mxu0
        %v4096 = vsel %vm756, %v3932, 0
        %v4099 = vsel %vm756, %v4007, 0
        %v4102 = vsel %vm756, %v4012, 0
        %4104 = vmatprep.subr.mxu0 0.0
        %4105 = vmatpush1.xpose.msra.mxu0 0.0
        %4106 = vmatprep.subr.mxu0 0.0
        %4107 = vmatpush1.xpose.msra.mxu0 0.0
        %4108 = vmatprep.subr.mxu0 0.0
        %4109 = vmatpush1.xpose.msra.mxu0 0.0
        %4110 = vmatprep.subr.mxu0 0.0
        %4111 = vmatpush1.xpose.msra.mxu0 0.0
        %4112 = vmatprep.subr.mxu0 0.0
        %4113 = vmatpush1.xpose.msra.mxu0 0.0
        %4114 = vmatprep.subr.mxu0 0.0
        %4115 = vmatpush1.xpose.msra.mxu0 0.0
        %4116 = vmatprep.subr.mxu0 0.0
        %4117 = vmatpush1.xpose.msra.mxu0 0.0
        %4118 = vmatprep.subr.mxu0 0.0
        %4119 = vmatpush1.xpose.msra.mxu0 0.0
        %4120 = vmatprep.subr.mxu0 0.0
        %4121 = vmatpush1.xpose.msra.mxu0 0.0
        %4122 = vmatprep.subr.mxu0 0.0
        %4123 = vmatpush1.xpose.msra.mxu0 0.0
        %4124 = vmatprep.subr.mxu0 0.0
        %4125 = vmatpush1.xpose.msra.mxu0 0.0
        %4126 = vmatprep.subr.mxu0 0.0
        %4127 = vmatpush1.xpose.msra.mxu0 0.0
        %4128 = vmatprep.subr.mxu0 0.0
        %4129 = vmatpush1.xpose.msra.mxu0 0.0
        %4130 = vmatprep.subr.mxu0 0.0
        %4131 = vmatpush1.xpose.msra.mxu0 0.0
        %4132 = vmatprep.subr.mxu0 0.0
        %4133 = vmatpush1.xpose.msra.mxu0 %v4102
        %4134 = vmatprep.subr.mxu0 0.0
        %4135 = vmatpush1.xpose.msra.mxu0 %v4099
        %4136 = vmatprep.subr.mxu0 0.0
        %4137 = vmatpush2.xpose.msra.mxu0 0.0
        %4138 = vmatprep.subr.mxu0 0.0
        %4139 = vmatpush2.xpose.msra.mxu0 0.0
        %4140 = vmatprep.subr.mxu0 0.0
        %4141 = vmatpush2.xpose.msra.mxu0 0.0
        %4142 = vmatprep.subr.mxu0 0.0
        %4143 = vmatpush2.xpose.msra.mxu0 0.0
        %4144 = vmatprep.subr.mxu0 0.0
        %4145 = vmatpush2.xpose.msra.mxu0 0.0
        %4146 = vmatprep.subr.mxu0 0.0
        %4147 = vmatpush2.xpose.msra.mxu0 0.0
        %4148 = vmatprep.subr.mxu0 0.0
        %4149 = vmatpush2.xpose.msra.mxu0 0.0
        %4150 = vmatprep.subr.mxu0 0.0
        %4151 = vmatpush2.xpose.msra.mxu0 0.0
        %4152 = vmatprep.subr.mxu0 0.0
        %4153 = vmatpush2.xpose.msra.mxu0 0.0
        %4154 = vmatprep.subr.mxu0 0.0
        %4155 = vmatpush2.xpose.msra.mxu0 0.0
        %4156 = vmatprep.subr.mxu0 0.0
        %4157 = vmatpush2.xpose.msra.mxu0 0.0
        %4158 = vmatprep.subr.mxu0 0.0
        %4159 = vmatpush2.xpose.msra.mxu0 0.0
        %4160 = vmatprep.subr.mxu0 0.0
        %4161 = vmatpush2.xpose.msra.mxu0 0.0
        %4162 = vmatprep.subr.mxu0 0.0
        %4163 = vmatpush2.xpose.msra.mxu0 0.0
        %4164 = vmatprep.subr.mxu0 0.0
        %4165 = vmatpush2.xpose.msra.mxu0 0.0
        %4166 = vmatprep.subr.mxu0 0.0
        %4167 = vmatpush2.xpose.msra.mxu0 0.0
        %4168 = vmatprep.mubr.f32.mxu0 0.0
        %4169 = vmatmul.mubr.f32.gmra.mxu0 %v4096
        %v4170 = vpop.f32.mrf.mxu0
        %v4171 = vadd.f32 0.0, %v4170
        %v4172 = vpop.f32.mrf.mxu0
        %4173 = vdwg.mxu0
        %v4174 = vsel %vm836, %v4171, -inf
        %4175 = vmax.xlane.f32.xlu0 %v4174
        %v4176 = vpop.xlane.xlu0 %4175
        %v4177 = vsub.f32 %v4171, %v4176
        %v4178 = vmul.f32 %v4177, 1.442695
        %v4179 = vpow.pop %v4178
        %v4180 = vsel %vm836, %v4179, 0.0
        %4181 = vadd.xlane.f32.xlu0 %v4180
        %v4182 = vpop.xlane.xlu0 %4181
        %v4183 = vrcp.pop %v4182
        %v4184 = vmul.f32 %v4179, %v4183
        %v4186 = vsel %vm836, %v4184, 0
        %4188 = vmatprep.subr.mxu0 0.0
        %4189 = vmatpush1.msra.mxu0 0.0
        %4190 = vmatprep.subr.mxu0 0.0
        %4191 = vmatpush1.msra.mxu0 0.0
        %4192 = vmatprep.subr.mxu0 0.0
        %4193 = vmatpush1.msra.mxu0 0.0
        %4194 = vmatprep.subr.mxu0 0.0
        %4195 = vmatpush1.msra.mxu0 0.0
        %4196 = vmatprep.subr.mxu0 0.0
        %4197 = vmatpush1.msra.mxu0 0.0
        %4198 = vmatprep.subr.mxu0 0.0
        %4199 = vmatpush1.msra.mxu0 0.0
        %4200 = vmatprep.subr.mxu0 0.0
        %4201 = vmatpush1.msra.mxu0 0.0
        %4202 = vmatprep.subr.mxu0 0.0
        %4203 = vmatpush1.msra.mxu0 0.0
        %4204 = vmatprep.subr.mxu0 0.0
        %4205 = vmatpush1.msra.mxu0 0.0
        %4206 = vmatprep.subr.mxu0 0.0
        %4207 = vmatpush1.msra.mxu0 0.0
        %4208 = vmatprep.subr.mxu0 0.0
        %4209 = vmatpush1.msra.mxu0 0.0
        %4210 = vmatprep.subr.mxu0 0.0
        %4211 = vmatpush1.msra.mxu0 0.0
        %4212 = vmatprep.subr.mxu0 0.0
        %4213 = vmatpush1.msra.mxu0 0.0
        %4214 = vmatprep.subr.mxu0 0.0
        %4215 = vmatpush1.msra.mxu0 0.0
        %4216 = vmatprep.subr.mxu0 0.0
        %4217 = vmatpush1.msra.mxu0 %v4092
        %4218 = vmatprep.subr.mxu0 0.0
        %4219 = vmatpush1.msra.mxu0 %v4087
        %4220 = vmatprep.subr.mxu0 0.0
        %4221 = vmatpush2.msra.mxu0 0.0
        %4222 = vmatprep.subr.mxu0 0.0
        %4223 = vmatpush2.msra.mxu0 0.0
        %4224 = vmatprep.subr.mxu0 0.0
        %4225 = vmatpush2.msra.mxu0 0.0
        %4226 = vmatprep.subr.mxu0 0.0
        %4227 = vmatpush2.msra.mxu0 0.0
        %4228 = vmatprep.subr.mxu0 0.0
        %4229 = vmatpush2.msra.mxu0 0.0
        %4230 = vmatprep.subr.mxu0 0.0
        %4231 = vmatpush2.msra.mxu0 0.0
        %4232 = vmatprep.subr.mxu0 0.0
        %4233 = vmatpush2.msra.mxu0 0.0
        %4234 = vmatprep.subr.mxu0 0.0
        %4235 = vmatpush2.msra.mxu0 0.0
        %4236 = vmatprep.subr.mxu0 0.0
        %4237 = vmatpush2.msra.mxu0 0.0
        %4238 = vmatprep.subr.mxu0 0.0
        %4239 = vmatpush2.msra.mxu0 0.0
        %4240 = vmatprep.subr.mxu0 0.0
        %4241 = vmatpush2.msra.mxu0 0.0
        %4242 = vmatprep.subr.mxu0 0.0
        %4243 = vmatpush2.msra.mxu0 0.0
        %4244 = vmatprep.subr.mxu0 0.0
        %4245 = vmatpush2.msra.mxu0 0.0
        %4246 = vmatprep.subr.mxu0 0.0
        %4247 = vmatpush2.msra.mxu0 0.0
        %4248 = vmatprep.subr.mxu0 0.0
        %4249 = vmatpush2.msra.mxu0 0.0
        %4250 = vmatprep.subr.mxu0 0.0
        %4251 = vmatpush2.msra.mxu0 0.0
        %4252 = vmatprep.mubr.f32.mxu0 0.0
        %4253 = vmatmul.mubr.f32.gmra.mxu0 %v4186
        %v4254 = vpop.f32.mrf.mxu0
        %v4255 = vadd.f32 0.0, %v4254
        %v4256 = vpop.f32.mrf.mxu0
        %4257 = vdwg.mxu0
        %s4258 = scalar_lea.vmem %s5, 28
        %v4259 = vld [vmem:[%s4258] sm:$0xf]
        %v4261 = vsel %vm756, %v4255, 0
        %v4264 = vsel %vm1325, %v4259, 0
        %4266 = vmatprep.subr.mxu0 0.0
        %4267 = vmatpush1.msra.mxu0 0.0
        %4268 = vmatprep.subr.mxu0 0.0
        %4269 = vmatpush1.msra.mxu0 0.0
        %4270 = vmatprep.subr.mxu0 0.0
        %4271 = vmatpush1.msra.mxu0 0.0
        %4272 = vmatprep.subr.mxu0 0.0
        %4273 = vmatpush1.msra.mxu0 0.0
        %4274 = vmatprep.subr.mxu0 0.0
        %4275 = vmatpush1.msra.mxu0 0.0
        %4276 = vmatprep.subr.mxu0 0.0
        %4277 = vmatpush1.msra.mxu0 0.0
        %4278 = vmatprep.subr.mxu0 0.0
        %4279 = vmatpush1.msra.mxu0 0.0
        %4280 = vmatprep.subr.mxu0 0.0
        %4281 = vmatpush1.msra.mxu0 0.0
        %4282 = vmatprep.subr.mxu0 0.0
        %4283 = vmatpush1.msra.mxu0 0.0
        %4284 = vmatprep.subr.mxu0 0.0
        %4285 = vmatpush1.msra.mxu0 0.0
        %4286 = vmatprep.subr.mxu0 0.0
        %4287 = vmatpush1.msra.mxu0 0.0
        %4288 = vmatprep.subr.mxu0 0.0
        %4289 = vmatpush1.msra.mxu0 0.0
        %4290 = vmatprep.subr.mxu0 0.0
        %4291 = vmatpush1.msra.mxu0 0.0
        %4292 = vmatprep.subr.mxu0 0.0
        %4293 = vmatpush1.msra.mxu0 0.0
        %4294 = vmatprep.subr.mxu0 0.0
        %4295 = vmatpush1.msra.mxu0 0.0
        %4296 = vmatprep.subr.mxu0 0.0
        %4297 = vmatpush1.msra.mxu0 %v4264
        %4298 = vmatprep.subr.mxu0 0.0
        %4299 = vmatpush2.msra.mxu0 0.0
        %4300 = vmatprep.subr.mxu0 0.0
        %4301 = vmatpush2.msra.mxu0 0.0
        %4302 = vmatprep.subr.mxu0 0.0
        %4303 = vmatpush2.msra.mxu0 0.0
        %4304 = vmatprep.subr.mxu0 0.0
        %4305 = vmatpush2.msra.mxu0 0.0
        %4306 = vmatprep.subr.mxu0 0.0
        %4307 = vmatpush2.msra.mxu0 0.0
        %4308 = vmatprep.subr.mxu0 0.0
        %4309 = vmatpush2.msra.mxu0 0.0
        %4310 = vmatprep.subr.mxu0 0.0
        %4311 = vmatpush2.msra.mxu0 0.0
        %4312 = vmatprep.subr.mxu0 0.0
        %4313 = vmatpush2.msra.mxu0 0.0
        %4314 = vmatprep.subr.mxu0 0.0
        %4315 = vmatpush2.msra.mxu0 0.0
        %4316 = vmatprep.subr.mxu0 0.0
        %4317 = vmatpush2.msra.mxu0 0.0
        %4318 = vmatprep.subr.mxu0 0.0
        %4319 = vmatpush2.msra.mxu0 0.0
        %4320 = vmatprep.subr.mxu0 0.0
        %4321 = vmatpush2.msra.mxu0 0.0
        %4322 = vmatprep.subr.mxu0 0.0
        %4323 = vmatpush2.msra.mxu0 0.0
        %4324 = vmatprep.subr.mxu0 0.0
        %4325 = vmatpush2.msra.mxu0 0.0
        %4326 = vmatprep.subr.mxu0 0.0
        %4327 = vmatpush2.msra.mxu0 0.0
        %4328 = vmatprep.subr.mxu0 0.0
        %4329 = vmatpush2.msra.mxu0 0.0
        %4330 = vmatprep.mubr.f32.mxu0 0.0
        %4331 = vmatmul.mubr.f32.gmra.mxu0 %v4261
        %v4332 = vpop.f32.mrf.mxu0
        %v4333 = vadd.f32 0.0, %v4332
        %v4334 = vpop.f32.mrf.mxu0
        %4335 = vdwg.mxu0
        %v4336 = vadd.f32 %v3859, %v4333
        %v4337 = vadd.f32 %v4336, %v511
        %v4338 = vsel %vm518, %v4337, 0.0
        %4339 = vadd.xlane.f32.xlu0 %v4338
        %v4340 = vpop.xlane.xlu0 %4339
        %v4341 = vrcp.pop 32.0
        %v4342 = vmul.f32 %v4340, %v4341
        %v4343 = vsub.f32 %v4337, %v4342
        %v4344 = vmul.f32 %v4343, %v4343
        %v4345 = vsel %vm518, %v4344, 0.0
        %4346 = vadd.xlane.f32.xlu0 %v4345
        %v4347 = vpop.xlane.xlu0 %4346
        %v4348 = vmul.f32 %v4347, %v4341
        %v4349 = vadd.f32 %v4348, 1e-05
        %v4350 = vrsqrt.pop %v4349
        %v4351 = vmul.f32 %v4343, %v4350
        %v4352 = vld [vmem:[%s6] sm:$0x1]
        %v4354 = vlaneseq
        %v4355 = vshrl.u32 %v4354, 7
        %v4356 = vsub.s32 0, %v4355
        %v4357 = vrot.slane %v4352, %v4356
        %v4359 = vmul.f32 %v4351, %v4357
        %v4360 = vld [vmem:[%s7] sm:$0x1]
        %v4362 = vlaneseq
        %v4363 = vshrl.u32 %v4362, 7
        %v4364 = vsub.s32 0, %v4363
        %v4365 = vrot.slane %v4360, %v4364
        %v4367 = vadd.f32 %v4359, %v4365
        %v4368 = vld [vmem:[%s10] sm:$0xff]
        %v4369 = vld [vmem:[%s10 + $0x8] sm:$0xff]
        %v4370 = vld [vmem:[%s10 + $0x10] sm:$0xff]
        %v4371 = vld [vmem:[%s10 + $0x18] sm:$0xff]
        %v4372 = vld [vmem:[%s11] sm:$0x1]
        %v4374 = vlaneseq
        %v4375 = vshrl.u32 %v4374, 7
        %v4376 = vsub.s32 0, %v4375
        %v4377 = vrot.slane %v4372, %v4376
        %v4380 = vsel %vm518, %v4367, 0
        %4382 = vmatprep.subr.mxu0 0.0
        %4383 = vmatpush1.msra.mxu0 0.0
        %4384 = vmatprep.subr.mxu0 0.0
        %4385 = vmatpush1.msra.mxu0 0.0
        %4386 = vmatprep.subr.mxu0 0.0
        %4387 = vmatpush1.msra.mxu0 0.0
        %4388 = vmatprep.subr.mxu0 0.0
        %4389 = vmatpush1.msra.mxu0 0.0
        %4390 = vmatprep.subr.mxu0 0.0
        %4391 = vmatpush1.msra.mxu0 0.0
        %4392 = vmatprep.subr.mxu0 0.0
        %4393 = vmatpush1.msra.mxu0 0.0
        %4394 = vmatprep.subr.mxu0 0.0
        %4395 = vmatpush1.msra.mxu0 0.0
        %4396 = vmatprep.subr.mxu0 0.0
        %4397 = vmatpush1.msra.mxu0 0.0
        %4398 = vmatprep.subr.mxu0 0.0
        %4399 = vmatpush1.msra.mxu0 0.0
        %4400 = vmatprep.subr.mxu0 0.0
        %4401 = vmatpush1.msra.mxu0 0.0
        %4402 = vmatprep.subr.mxu0 0.0
        %4403 = vmatpush1.msra.mxu0 0.0
        %4404 = vmatprep.subr.mxu0 0.0
        %4405 = vmatpush1.msra.mxu0 0.0
        %4406 = vmatprep.subr.mxu0 0.0
        %4407 = vmatpush1.msra.mxu0 %v4371
        %4408 = vmatprep.subr.mxu0 0.0
        %4409 = vmatpush1.msra.mxu0 %v4370
        %4410 = vmatprep.subr.mxu0 0.0
        %4411 = vmatpush1.msra.mxu0 %v4369
        %4412 = vmatprep.subr.mxu0 0.0
        %4413 = vmatpush1.msra.mxu0 %v4368
        %4414 = vmatprep.subr.mxu0 0.0
        %4415 = vmatpush2.msra.mxu0 0.0
        %4416 = vmatprep.subr.mxu0 0.0
        %4417 = vmatpush2.msra.mxu0 0.0
        %4418 = vmatprep.subr.mxu0 0.0
        %4419 = vmatpush2.msra.mxu0 0.0
        %4420 = vmatprep.subr.mxu0 0.0
        %4421 = vmatpush2.msra.mxu0 0.0
        %4422 = vmatprep.subr.mxu0 0.0
        %4423 = vmatpush2.msra.mxu0 0.0
        %4424 = vmatprep.subr.mxu0 0.0
        %4425 = vmatpush2.msra.mxu0 0.0
        %4426 = vmatprep.subr.mxu0 0.0
        %4427 = vmatpush2.msra.mxu0 0.0
        %4428 = vmatprep.subr.mxu0 0.0
        %4429 = vmatpush2.msra.mxu0 0.0
        %4430 = vmatprep.subr.mxu0 0.0
        %4431 = vmatpush2.msra.mxu0 0.0
        %4432 = vmatprep.subr.mxu0 0.0
        %4433 = vmatpush2.msra.mxu0 0.0
        %4434 = vmatprep.subr.mxu0 0.0
        %4435 = vmatpush2.msra.mxu0 0.0
        %4436 = vmatprep.subr.mxu0 0.0
        %4437 = vmatpush2.msra.mxu0 0.0
        %4438 = vmatprep.subr.mxu0 0.0
        %4439 = vmatpush2.msra.mxu0 0.0
        %4440 = vmatprep.subr.mxu0 0.0
        %4441 = vmatpush2.msra.mxu0 0.0
        %4442 = vmatprep.subr.mxu0 0.0
        %4443 = vmatpush2.msra.mxu0 0.0
        %4444 = vmatprep.subr.mxu0 0.0
        %4445 = vmatpush2.msra.mxu0 0.0
        %4446 = vmatprep.mubr.f32.mxu0 0.0
        %4447 = vmatmul.mubr.f32.gmra.mxu0 %v4380
        %v4448 = vpop.f32.mrf.mxu0
        %v4449 = vadd.f32 %v4377, %v4448
        %v4450 = vpop.f32.mrf.mxu0
        %4451 = vdwg.mxu0
        %v4452 = vmul.f32 %v4449, 0.5
        %v4453 = vmul.f32 %v4449, 0.044715
        %v4454 = vmul.f32 %v4453, %v4449
        %v4455 = vmul.f32 %v4454, %v4449
        %v4456 = vadd.f32 %v4449, %v4455
        %v4457 = vmul.f32 %v4456, 0.7978846
        %v4458 = vtanh.pop %v4457
        %v4459 = vadd.f32 %v4458, 1.0
        %v4460 = vmul.f32 %v4452, %v4459
        %v4461 = vld [vmem:[%s12] sm:$0xff]
        %v4462 = vld [vmem:[%s12 + $0x8] sm:$0xff]
        %v4463 = vld [vmem:[%s12 + $0x10] sm:$0xff]
        %v4464 = vld [vmem:[%s12 + $0x18] sm:$0xff]
        %v4465 = vld [vmem:[%s12 + $0x20] sm:$0xff]
        %v4466 = vld [vmem:[%s12 + $0x28] sm:$0xff]
        %v4467 = vld [vmem:[%s12 + $0x30] sm:$0xff]
        %v4468 = vld [vmem:[%s12 + $0x38] sm:$0xff]
        %v4469 = vld [vmem:[%s13] sm:$0x1]
        %v4471 = vlaneseq
        %v4472 = vshrl.u32 %v4471, 7
        %v4473 = vsub.s32 0, %v4472
        %v4474 = vrot.slane %v4469, %v4473
        %vm4476 = vcmask 523264
        %v4478 = vsel %vm4476, %v4460, 0
        %4480 = vmatprep.subr.mxu0 0.0
        %4481 = vmatpush1.msra.mxu0 0.0
        %4482 = vmatprep.subr.mxu0 0.0
        %4483 = vmatpush1.msra.mxu0 0.0
        %4484 = vmatprep.subr.mxu0 0.0
        %4485 = vmatpush1.msra.mxu0 0.0
        %4486 = vmatprep.subr.mxu0 0.0
        %4487 = vmatpush1.msra.mxu0 0.0
        %4488 = vmatprep.subr.mxu0 0.0
        %4489 = vmatpush1.msra.mxu0 0.0
        %4490 = vmatprep.subr.mxu0 0.0
        %4491 = vmatpush1.msra.mxu0 0.0
        %4492 = vmatprep.subr.mxu0 0.0
        %4493 = vmatpush1.msra.mxu0 0.0
        %4494 = vmatprep.subr.mxu0 0.0
        %4495 = vmatpush1.msra.mxu0 0.0
        %4496 = vmatprep.subr.mxu0 0.0
        %4497 = vmatpush1.msra.mxu0 %v4468
        %4498 = vmatprep.subr.mxu0 0.0
        %4499 = vmatpush1.msra.mxu0 %v4467
        %4500 = vmatprep.subr.mxu0 0.0
        %4501 = vmatpush1.msra.mxu0 %v4466
        %4502 = vmatprep.subr.mxu0 0.0
        %4503 = vmatpush1.msra.mxu0 %v4465
        %4504 = vmatprep.subr.mxu0 0.0
        %4505 = vmatpush1.msra.mxu0 %v4464
        %4506 = vmatprep.subr.mxu0 0.0
        %4507 = vmatpush1.msra.mxu0 %v4463
        %4508 = vmatprep.subr.mxu0 0.0
        %4509 = vmatpush1.msra.mxu0 %v4462
        %4510 = vmatprep.subr.mxu0 0.0
        %4511 = vmatpush1.msra.mxu0 %v4461
        %4512 = vmatprep.subr.mxu0 0.0
        %4513 = vmatpush2.msra.mxu0 0.0
        %4514 = vmatprep.subr.mxu0 0.0
        %4515 = vmatpush2.msra.mxu0 0.0
        %4516 = vmatprep.subr.mxu0 0.0
        %4517 = vmatpush2.msra.mxu0 0.0
        %4518 = vmatprep.subr.mxu0 0.0
        %4519 = vmatpush2.msra.mxu0 0.0
        %4520 = vmatprep.subr.mxu0 0.0
        %4521 = vmatpush2.msra.mxu0 0.0
        %4522 = vmatprep.subr.mxu0 0.0
        %4523 = vmatpush2.msra.mxu0 0.0
        %4524 = vmatprep.subr.mxu0 0.0
        %4525 = vmatpush2.msra.mxu0 0.0
        %4526 = vmatprep.subr.mxu0 0.0
        %4527 = vmatpush2.msra.mxu0 0.0
        %4528 = vmatprep.subr.mxu0 0.0
        %4529 = vmatpush2.msra.mxu0 0.0
        %4530 = vmatprep.subr.mxu0 0.0
        %4531 = vmatpush2.msra.mxu0 0.0
        %4532 = vmatprep.subr.mxu0 0.0
        %4533 = vmatpush2.msra.mxu0 0.0
        %4534 = vmatprep.subr.mxu0 0.0
        %4535 = vmatpush2.msra.mxu0 0.0
        %4536 = vmatprep.subr.mxu0 0.0
        %4537 = vmatpush2.msra.mxu0 0.0
        %4538 = vmatprep.subr.mxu0 0.0
        %4539 = vmatpush2.msra.mxu0 0.0
        %4540 = vmatprep.subr.mxu0 0.0
        %4541 = vmatpush2.msra.mxu0 0.0
        %4542 = vmatprep.subr.mxu0 0.0
        %4543 = vmatpush2.msra.mxu0 0.0
        %4544 = vmatprep.mubr.f32.mxu0 0.0
        %4545 = vmatmul.mubr.f32.gmra.mxu0 %v4478
        %v4546 = vpop.f32.mrf.mxu0
        %v4547 = vadd.f32 %v4474, %v4546
        %v4548 = vpop.f32.mrf.mxu0
        %4549 = vdwg.mxu0
        %v4550 = vadd.f32 %v4547, %v4367
        %v4551 = vsel %vm518, %v4550, 0.0
        %4552 = vadd.xlane.f32.xlu0 %v4551
        %v4553 = vpop.xlane.xlu0 %4552
        %v4554 = vmul.f32 %v4553, %v4341
        %v4555 = vsub.f32 %v4550, %v4554
        %v4556 = vmul.f32 %v4555, %v4555
        %v4557 = vsel %vm518, %v4556, 0.0
        %4558 = vadd.xlane.f32.xlu0 %v4557
        %v4559 = vpop.xlane.xlu0 %4558
        %v4560 = vmul.f32 %v4559, %v4341
        %v4561 = vadd.f32 %v4560, 1e-05
        %v4562 = vrsqrt.pop %v4561
        %v4563 = vmul.f32 %v4555, %v4562
        %v4564 = vld [vmem:[%s8] sm:$0x1]
        %v4566 = vlaneseq
        %v4567 = vshrl.u32 %v4566, 7
        %v4568 = vsub.s32 0, %v4567
        %v4569 = vrot.slane %v4564, %v4568
        %v4571 = vmul.f32 %v4563, %v4569
        %v4572 = vld [vmem:[%s9] sm:$0x1]
        %v4574 = vlaneseq
        %v4575 = vshrl.u32 %v4574, 7
        %v4576 = vsub.s32 0, %v4575
        %v4577 = vrot.slane %v4572, %v4576
        %v4579 = vadd.f32 %v4571, %v4577
        %4580 = vst.msk [vmem:[%s497] sm:$0xff] %vm518, %v4579
        %s4581 = sand.u32 %s356, 1
        %s4582 = scalar_lea.sflag [#allocation3], %s4581
        %s4583 = sand.u32 %s356, 1
        %s4584 = smul.addr %s4583, 8
        %s4585 = scalar_lea.vmem [#allocation2], %s4584
        // Predicated region
        $region77: #{tpu_custom_call.1} parent=75 // pred_check
          %p4586 = pneg %p366
        $region78: #{tpu_custom_call.1} parent=75 // pred_check_branch
          %4588 = sbr.rel (%p4586) target = $region80
        $region79: #{tpu_custom_call.1} parent=75 // pred_region
          %s4590 = ssub.s32 128, 128
          %4591 = vsyncadd %s4582, %s4590
          %s4592 = smul.addr %s32, 2
          %s4593 = sadd.s32 %s33, %s4592
          %s4594 = smul.addr %s4593, 128
          %s4595 = scalar_lea.hbm %s14, %s4594
          %s4597 = sshll.u32 %s4585, 4
          %s4598 = int_to_ptr.vmem [resolvable:$true] %s4597
          %4600 = dma.vmem_to_hbm [thread:$0]  %s4598, 128, %s4595, %s4582
        $region80: #{tpu_custom_call.1} parent=75 // pred_fallthru
          _
      $region76: #{tpu_custom_call.1} parent=5 // pred_fallthru
        _
      %p4601 = scmp.le.s32.totalorder 2, %s23
      // Predicated region
      $region81: #{tpu_custom_call.1} parent=5 // pred_check
        %p4602 = pneg %p4601
      $region82: #{tpu_custom_call.1} parent=5 // pred_check_branch
        %4604 = sbr.rel (%p4602) target = $region84
      $region83: #{tpu_custom_call.1} parent=5 // pred_region
        %s4605 = ssub.s32 %s23, 2
        // Predicated region
        $region85: #{tpu_custom_call.1} parent=83 // pred_check
          %p4606 = pneg %p372
        $region86: #{tpu_custom_call.1} parent=83 // pred_check_branch
          %4608 = sbr.rel (%p4606) target = $region88
        $region87: #{tpu_custom_call.1} parent=83 // pred_region
          %s4609 = sand.u32 %s357, 1
          %s4610 = scalar_lea.sflag [#allocation3], %s4609
          %s4611 = sand.u32 %s357, 1
          %s4612 = smul.addr %s4611, 8
          %s4613 = scalar_lea.vmem [#allocation2], %s4612
          %4614 = dma.done %s4610, 128
        $region88: #{tpu_custom_call.1} parent=83 // pred_fallthru
          _
      $region84: #{tpu_custom_call.1} parent=5 // pred_fallthru
        _
    $region6: #{tpu_custom_call.1} parent=1 // loop_footer
      %s27 = sadd.s32 1, %s23
    $region7: #{tpu_custom_call.1} parent=1 // loop_footer_branch
      %22 = sbr.rel target = $region3
    $region8: #{tpu_custom_call.1} parent=1 // loop_exit
      _
    %4615 = vsyncpa [#allocation3], 1
    %s4616 = scalar_lea.sflag [#allocation3], 1
    %4617 = vsyncpa %s4616, 1

</llo_original>
